<compile_context>
chip_gen: v6e
topology: v6e:2x2x1
jax: 0.10.0
libtpu: 0.0.40
codegen_flags: <defaults>
</compile_context>

<pallas_src>
import math

import jax
import jax.numpy as jnp
from jax.experimental import pallas as pl
from jax.experimental.pallas import tpu as pltpu

EXPANSION = 4          # Bottleneck.expansion
BN_EPS = 1e-5          # nn.BatchNorm2d default eps
PAD_W = 16             # left/right zero pad in the conv2 scratch (bf16-tile aligned)


# ----------------------------------------------------------------------------
# Fused kernel (one grid step == one image of H*W rows)
# ----------------------------------------------------------------------------
def _make_bottleneck_kernel(H, W, planes, has_downsample):
    HW = H * W
    Wp = W + 2 * PAD_W

    def body(x_ref, w1_ref, s1_ref, b1_ref, w2_ref, s2_ref, b2_ref,
             w3_ref, s3_ref, b3_ref, ds_refs, o_ref, pad_ref, col_ref):
        # ---- conv1 (1x1) + bn1 + relu : (HW, Cin) -> (HW, planes) ----------
        h = jnp.dot(x_ref[...].astype(jnp.bfloat16), w1_ref[...],
                    preferred_element_type=jnp.float32)
        h = jnp.maximum(h * s1_ref[...] + b1_ref[...], 0.0)

        # ---- stage conv2 input in a zero-haloed bf16 scratch ----------------
        # Only the halo strips are zeroed (not the whole slab); the interior
        # store lands at sublane offset PAD_W (bf16-tile aligned).
        zrow = jnp.zeros((1, Wp, planes), jnp.bfloat16)
        pad_ref[0:1, :, :] = zrow
        pad_ref[H + 1:H + 2, :, :] = zrow
        zcol = jnp.zeros((H + 2, PAD_W, planes), jnp.bfloat16)
        pad_ref[:, 0:PAD_W, :] = zcol
        pad_ref[:, PAD_W + W:Wp, :] = zcol
        pad_ref[1:H + 1, PAD_W:PAD_W + W, :] = (
            h.reshape(H, W, planes).astype(jnp.bfloat16))

        # ---- im2col: 9 shifted patches -> lane-dense (HW, 9*planes) slab ----
        for k in range(9):
            dy, dx = k // 3, k % 3
            off = PAD_W - 1 + dx
            patch = pad_ref[dy:dy + H, off:off + W, :]
            col_ref[:, k * planes:(k + 1) * planes] = patch.reshape(HW, planes)

        # ---- conv2 (3x3, stride 1, pad 1) as ONE K=9*planes matmul ----------
        h2 = jnp.dot(col_ref[...], w2_ref[...],
                     preferred_element_type=jnp.float32)
        h2 = jnp.maximum(h2 * s2_ref[...] + b2_ref[...], 0.0)

        # ---- conv3 (1x1) + bn3 ----------------------------------------------
        out = jnp.dot(h2.astype(jnp.bfloat16), w3_ref[...],
                      preferred_element_type=jnp.float32)
        out = out * s3_ref[...] + b3_ref[...]

        # ---- residual (identity or 1x1 projection + bn), final relu ---------
        # x is re-read here instead of being kept live across conv1..conv3.
        if has_downsample:
            wds_ref, sds_ref, bds_ref = ds_refs
            res = jnp.dot(x_ref[...].astype(jnp.bfloat16), wds_ref[...],
                          preferred_element_type=jnp.float32)
            res = res * sds_ref[...] + bds_ref[...]
        else:
            res = x_ref[...]
        o_ref[...] = jnp.maximum(out + res, 0.0)

    if has_downsample:
        def kernel(x_ref, w1, s1, b1, w2, s2, b2, w3, s3, b3,
                   wds, sds, bds, o_ref, pad_ref, col_ref):
            body(x_ref, w1, s1, b1, w2, s2, b2, w3, s3, b3,
                 (wds, sds, bds), o_ref, pad_ref, col_ref)
    else:
        def kernel(x_ref, w1, s1, b1, w2, s2, b2, w3, s3, b3,
                   o_ref, pad_ref, col_ref):
            body(x_ref, w1, s1, b1, w2, s2, b2, w3, s3, b3,
                 None, o_ref, pad_ref, col_ref)
    return kernel


def bottleneck_forward(x_nchw, params, *, stride=1):
    """Bottleneck forward.  x_nchw: (B, Cin, H, W) f32 (PyTorch NCHW layout)."""
    if stride != 1:
        # TODO(synk): stride>1 / strided downsample conv not implemented.
        raise NotImplementedError("only stride=1 is implemented")
    B, Cin, H, W = x_nchw.shape
    planes = params["w1"].shape[1]
    Cout = params["w3"].shape[1]
    has_ds = "w_ds" in params
    if not has_ds and Cin != Cout:
        raise ValueError("identity residual requires Cin == planes * 4")
    if W % 8 != 0:
        raise ValueError("W must be a multiple of 8 (sublane alignment)")
    HW = H * W
    N = B * HW

    x_flat = (jnp.transpose(x_nchw, (0, 2, 3, 1))
              .reshape(N, Cin).astype(jnp.float32))

    args = [x_flat,
            params["w1"], params["s1"], params["b1"],
            params["w2"], params["s2"], params["b2"],
            params["w3"], params["s3"], params["b3"]]
    if has_ds:
        args += [params["w_ds"], params["s_ds"], params["b_ds"]]

    # Weights / folded-BN params: full-array blocks with constant index_maps
    # so they stay VMEM-resident across grid steps.
    def resident(a):
        return pl.BlockSpec(a.shape, lambda b: (0, 0))

    in_specs = ([pl.BlockSpec((HW, Cin), lambda b: (b, 0))]
                + [resident(a) for a in args[1:]])
    out_specs = pl.BlockSpec((HW, Cout), lambda b: (b, 0))

    flops = 2 * N * (Cin * planes + 9 * planes * planes + planes * Cout
                     + (Cin * Cout if has_ds else 0))
    bytes_accessed = N * Cout * 4 + sum(
        int(a.size) * a.dtype.itemsize for a in args)

    kernel = _make_bottleneck_kernel(H, W, planes, has_ds)
    out_flat = pl.pallas_call(
        kernel,
        out_shape=jax.ShapeDtypeStruct((N, Cout), jnp.float32),
        grid=(B,),
        in_specs=in_specs,
        out_specs=out_specs,
        scratch_shapes=[
            pltpu.VMEM((H + 2, W + 2 * PAD_W, planes), jnp.bfloat16),  # padded act
            pltpu.VMEM((HW, 9 * planes), jnp.bfloat16),                # im2col slab
        ],
        compiler_params=pltpu.CompilerParams(
            dimension_semantics=("parallel",),
            vmem_limit_bytes=48 << 20),
        cost_estimate=pl.CostEstimate(flops=flops, transcendentals=0,
                                      bytes_accessed=bytes_accessed),
    )(*args)
    return jnp.transpose(out_flat.reshape(B, H, W, Cout), (0, 3, 1, 2))


# ----------------------------------------------------------------------------
# Parameter construction (PyTorch-style init, BN folded for inference)
# ----------------------------------------------------------------------------
def _fold_bn(gamma, beta, mean, var, eps=BN_EPS):
    scale = gamma / jnp.sqrt(var + eps)
    bias = beta - mean * scale
    return (scale.reshape(1, -1).astype(jnp.float32),
            bias.reshape(1, -1).astype(jnp.float32))


def _conv_weight(key, fan_in, shape):
    bound = 1.0 / math.sqrt(fan_in)
    return jax.random.uniform(key, shape, jnp.float32, -bound, bound)


def _bn_params(key, c):
    k1, k2, k3, k4 = jax.random.split(key, 4)
    gamma = jax.random.uniform(k1, (c,), jnp.float32, 0.5, 1.5)
    beta = jax.random.uniform(k2, (c,), jnp.float32, -0.1, 0.1)
    mean = 0.1 * jax.random.normal(k3, (c,), jnp.float32)
    var = jax.random.uniform(k4, (c,), jnp.float32, 0.5, 1.5)
    return _fold_bn(gamma, beta, mean, var)


def init_bottleneck(key, inplanes, planes, *, downsample=False):
    """Weights in matmul-friendly layout (bf16):
         w1:  (Cin, planes)          == torch conv1.weight[:, :, 0, 0].T
         w2:  (9*planes, planes)     row k*planes+cin == torch conv2.weight[cout, cin, k//3, k%3]
         w3:  (planes, planes*4)
       BatchNorms folded (eval mode) into (1, C) f32 scale/bias pairs."""
    Cout = planes * EXPANSION
    ks = jax.random.split(key, 8)
    w1 = _conv_weight(ks[0], inplanes, (inplanes, planes))
    s1, b1 = _bn_params(ks[1], planes)
    w2 = _conv_weight(ks[2], 9 * planes, (9, planes, planes)).reshape(
        9 * planes, planes)
    s2, b2 = _bn_params(ks[3], planes)
    w3 = _conv_weight(ks[4], planes, (planes, Cout))
    s3, b3 = _bn_params(ks[5], Cout)
    params = dict(w1=w1.astype(jnp.bfloat16), s1=s1, b1=b1,
                  w2=w2.astype(jnp.bfloat16), s2=s2, b2=b2,
                  w3=w3.astype(jnp.bfloat16), s3=s3, b3=b3)
    if downsample:
        wds = _conv_weight(ks[6], inplanes, (inplanes, Cout))
        sds, bds = _bn_params(ks[7], Cout)
        params.update(w_ds=wds.astype(jnp.bfloat16), s_ds=sds, b_ds=bds)
    return params


# ----------------------------------------------------------------------------
# Pure-JAX reference (identical math & precision, no Pallas)
# ----------------------------------------------------------------------------
def bottleneck_reference(x_nchw, params):
    B, Cin, H, W = x_nchw.shape
    planes = params["w1"].shape[1]
    Cout = params["w3"].shape[1]
    N = B * H * W
    x = jnp.transpose(x_nchw, (0, 2, 3, 1)).reshape(N, Cin).astype(jnp.float32)

    def mm(a, w):
        return jnp.dot(a.astype(jnp.bfloat16), w,
                       preferred_element_type=jnp.float32)

    h = jnp.maximum(mm(x, params["w1"]) * params["s1"] + params["b1"], 0.0)
    hp = jnp.pad(h.reshape(B, H, W, planes).astype(jnp.bfloat16),
                 ((0, 0), (1, 1), (1, 1), (0, 0)))
    col = jnp.concatenate(
        [hp[:, k // 3:k // 3 + H, k % 3:k % 3 + W, :].reshape(N, planes)
         for k in range(9)], axis=-1)                     # (N, 9*planes) bf16
    h2 = jnp.dot(col, params["w2"], preferred_element_type=jnp.float32)
    h2 = jnp.maximum(h2 * params["s2"] + params["b2"], 0.0)
    out = mm(h2, params["w3"]) * params["s3"] + params["b3"]
    if "w_ds" in params:
        res = mm(x, params["w_ds"]) * params["s_ds"] + params["b_ds"]
    else:
        res = x
    y = jnp.maximum(out + res, 0.0)
    return jnp.transpose(y.reshape(B, H, W, Cout), (0, 3, 1, 2))


# ----------------------------------------------------------------------------
if __name__ == "__main__":
    key = jax.random.PRNGKey(0)
    k_param, k_data = jax.random.split(key)

    # Small, lane/sublane-aligned demo: identity residual (downsample=None,
    # stride=1), exactly the PyTorch module defaults.
    B, H, W = 2, 16, 16
    planes = 32
    inplanes = planes * EXPANSION      # 128 -> residual is the identity

    params = init_bottleneck(k_param, inplanes, planes, downsample=False)
    x = jax.random.normal(k_data, (B, inplanes, H, W), dtype=jnp.float32)

    fwd = jax.jit(lambda v: bottleneck_forward(v, params))
    out = fwd(x)
    jax.block_until_ready(out)

    assert out.shape == (B, inplanes, H, W), out.shape
    assert out.dtype == jnp.float32

    ref = bottleneck_reference(x, params)
    max_err = float(jnp.max(jnp.abs(out - ref)))
    assert jnp.allclose(out, ref, atol=2e-2, rtol=2e-2), max_err

    print("KERNEL_OK")
</pallas_src>

<mosaic_0001>
module attributes {stable_mosaic.version = 11 : i64} {
  func.func @kernel(%arg0: i32, %arg1: memref<256x128xf32, #tpu.memory_space<vmem>>, %arg2: memref<128x32xbf16, #tpu.memory_space<vmem>>, %arg3: memref<1x32xf32, #tpu.memory_space<vmem>>, %arg4: memref<1x32xf32, #tpu.memory_space<vmem>>, %arg5: memref<288x32xbf16, #tpu.memory_space<vmem>>, %arg6: memref<1x32xf32, #tpu.memory_space<vmem>>, %arg7: memref<1x32xf32, #tpu.memory_space<vmem>>, %arg8: memref<32x128xbf16, #tpu.memory_space<vmem>>, %arg9: memref<1x128xf32, #tpu.memory_space<vmem>>, %arg10: memref<1x128xf32, #tpu.memory_space<vmem>>, %arg11: memref<256x128xf32, #tpu.memory_space<vmem>>, %arg12: memref<18x48x32xbf16, #tpu.memory_space<vmem>>, %arg13: memref<256x288xbf16, #tpu.memory_space<vmem>>) attributes {dimension_semantics = [#tpu.dimension_semantics<parallel>], iteration_bounds = array<i64: 2>, scalar_prefetch = 0 : i64, scratch_operands = 2 : i64, tpu.core_type = #tpu.core_type<tc>, window_params = [{transform_indices = @transform_0, window_bounds = array<i64: 256, 128>}, {pipeline_mode = #tpu.pipeline_mode<synchronous>, transform_indices = @transform_1, window_bounds = array<i64: 128, 32>}, {pipeline_mode = #tpu.pipeline_mode<synchronous>, transform_indices = @transform_2, window_bounds = array<i64: 1, 32>}, {pipeline_mode = #tpu.pipeline_mode<synchronous>, transform_indices = @transform_3, window_bounds = array<i64: 1, 32>}, {pipeline_mode = #tpu.pipeline_mode<synchronous>, transform_indices = @transform_4, window_bounds = array<i64: 288, 32>}, {pipeline_mode = #tpu.pipeline_mode<synchronous>, transform_indices = @transform_5, window_bounds = array<i64: 1, 32>}, {pipeline_mode = #tpu.pipeline_mode<synchronous>, transform_indices = @transform_6, window_bounds = array<i64: 1, 32>}, {pipeline_mode = #tpu.pipeline_mode<synchronous>, transform_indices = @transform_7, window_bounds = array<i64: 32, 128>}, {pipeline_mode = #tpu.pipeline_mode<synchronous>, transform_indices = @transform_8, window_bounds = array<i64: 1, 128>}, {pipeline_mode = #tpu.pipeline_mode<synchronous>, transform_indices = @transform_9, window_bounds = array<i64: 1, 128>}, {transform_indices = @transform_10, window_bounds = array<i64: 256, 128>}]} {
    %c0 = arith.constant 0 : index
    %c0_0 = arith.constant 0 : index
    %0 = vector.load %arg1[%c0, %c0_0] : memref<256x128xf32, #tpu.memory_space<vmem>>, vector<256x128xf32>
    %1 = arith.truncf %0 : vector<256x128xf32> to vector<256x128xbf16>
    %c0_1 = arith.constant 0 : index
    %c0_2 = arith.constant 0 : index
    %2 = vector.load %arg2[%c0_1, %c0_2] : memref<128x32xbf16, #tpu.memory_space<vmem>>, vector<128x32xbf16>
    %cst = arith.constant dense<0.000000e+00> : vector<256x32xf32>
    %3 = tpu.matmul %1, %2, %cst {dimension_numbers = #tpu.dot_dimension_numbers<[1], [0], [0], [1], [0, 0, 1, 1], [], []>} : vector<256x128xbf16>, vector<128x32xbf16>, vector<256x32xf32> -> vector<256x32xf32>
    %c0_3 = arith.constant 0 : index
    %c0_4 = arith.constant 0 : index
    %4 = vector.load %arg3[%c0_3, %c0_4] : memref<1x32xf32, #tpu.memory_space<vmem>>, vector<1x32xf32>
    %5 = vector.broadcast %4 : vector<1x32xf32> to vector<256x32xf32>
    %6 = arith.mulf %3, %5 : vector<256x32xf32>
    %c0_5 = arith.constant 0 : index
    %c0_6 = arith.constant 0 : index
    %7 = vector.load %arg4[%c0_5, %c0_6] : memref<1x32xf32, #tpu.memory_space<vmem>>, vector<1x32xf32>
    %8 = vector.broadcast %7 : vector<1x32xf32> to vector<256x32xf32>
    %9 = arith.addf %6, %8 : vector<256x32xf32>
    %cst_7 = arith.constant 0.000000e+00 : f32
    %10 = vector.broadcast %cst_7 : f32 to vector<256x32xf32>
    %11 = arith.maximumf %9, %10 : vector<256x32xf32>
    %cst_8 = arith.constant 0.000000e+00 : bf16
    %12 = vector.broadcast %cst_8 : bf16 to vector<1x48x32xbf16>
    %c0_9 = arith.constant 0 : index
    %c0_10 = arith.constant 0 : index
    %c0_11 = arith.constant 0 : index
    %13 = vector.load %arg12[%c0_9, %c0_10, %c0_11] : memref<18x48x32xbf16, #tpu.memory_space<vmem>>, vector<1x48x32xbf16>
    tpu.vector_store %arg12[%c0_9, %c0_10, %c0_11], %12 {strides = array<i32>} : memref<18x48x32xbf16, #tpu.memory_space<vmem>>, vector<1x48x32xbf16>,
    %c17 = arith.constant 17 : index
    %c0_12 = arith.constant 0 : index
    %c0_13 = arith.constant 0 : index
    %14 = vector.load %arg12[%c17, %c0_12, %c0_13] : memref<18x48x32xbf16, #tpu.memory_space<vmem>>, vector<1x48x32xbf16>
    tpu.vector_store %arg12[%c17, %c0_12, %c0_13], %12 {strides = array<i32>} : memref<18x48x32xbf16, #tpu.memory_space<vmem>>, vector<1x48x32xbf16>,
    %cst_14 = arith.constant 0.000000e+00 : bf16
    %15 = vector.broadcast %cst_14 : bf16 to vector<18x16x32xbf16>
    %c0_15 = arith.constant 0 : index
    %c0_16 = arith.constant 0 : index
    %c0_17 = arith.constant 0 : index
    %16 = vector.load %arg12[%c0_15, %c0_16, %c0_17] : memref<18x48x32xbf16, #tpu.memory_space<vmem>>, vector<18x16x32xbf16>
    tpu.vector_store %arg12[%c0_15, %c0_16, %c0_17], %15 {strides = array<i32>} : memref<18x48x32xbf16, #tpu.memory_space<vmem>>, vector<18x16x32xbf16>,
    %c0_18 = arith.constant 0 : index
    %c32 = arith.constant 32 : index
    %c0_19 = arith.constant 0 : index
    %17 = vector.load %arg12[%c0_18, %c32, %c0_19] : memref<18x48x32xbf16, #tpu.memory_space<vmem>>, vector<18x16x32xbf16>
    tpu.vector_store %arg12[%c0_18, %c32, %c0_19], %15 {strides = array<i32>} : memref<18x48x32xbf16, #tpu.memory_space<vmem>>, vector<18x16x32xbf16>,
    %18 = vector.shape_cast %11 : vector<256x32xf32> to vector<16x16x32xf32>
    %19 = arith.truncf %18 : vector<16x16x32xf32> to vector<16x16x32xbf16>
    %c1 = arith.constant 1 : index
    %c16 = arith.constant 16 : index
    %c0_20 = arith.constant 0 : index
    %20 = vector.load %arg12[%c1, %c16, %c0_20] : memref<18x48x32xbf16, #tpu.memory_space<vmem>>, vector<16x16x32xbf16>
    tpu.vector_store %arg12[%c1, %c16, %c0_20], %19 {strides = array<i32>} : memref<18x48x32xbf16, #tpu.memory_space<vmem>>, vector<16x16x32xbf16>,
    %c0_21 = arith.constant 0 : index
    %c15 = arith.constant 15 : index
    %c0_22 = arith.constant 0 : index
    %21 = vector.load %arg12[%c0_21, %c15, %c0_22] : memref<18x48x32xbf16, #tpu.memory_space<vmem>>, vector<16x16x32xbf16>
    %22 = vector.shape_cast %21 : vector<16x16x32xbf16> to vector<256x32xbf16>
    %c0_23 = arith.constant 0 : index
    %c0_24 = arith.constant 0 : index
    %23 = vector.load %arg13[%c0_23, %c0_24] : memref<256x288xbf16, #tpu.memory_space<vmem>>, vector<256x32xbf16>
    tpu.vector_store %arg13[%c0_23, %c0_24], %22 {strides = array<i32>} : memref<256x288xbf16, #tpu.memory_space<vmem>>, vector<256x32xbf16>,
    %c0_25 = arith.constant 0 : index
    %c16_26 = arith.constant 16 : index
    %c0_27 = arith.constant 0 : index
    %24 = vector.load %arg12[%c0_25, %c16_26, %c0_27] : memref<18x48x32xbf16, #tpu.memory_space<vmem>>, vector<16x16x32xbf16>
    %25 = vector.shape_cast %24 : vector<16x16x32xbf16> to vector<256x32xbf16>
    %c0_28 = arith.constant 0 : index
    %c32_29 = arith.constant 32 : index
    %26 = vector.load %arg13[%c0_28, %c32_29] : memref<256x288xbf16, #tpu.memory_space<vmem>>, vector<256x32xbf16>
    tpu.vector_store %arg13[%c0_28, %c32_29], %25 {strides = array<i32>} : memref<256x288xbf16, #tpu.memory_space<vmem>>, vector<256x32xbf16>,
    %c0_30 = arith.constant 0 : index
    %c17_31 = arith.constant 17 : index
    %c0_32 = arith.constant 0 : index
    %27 = vector.load %arg12[%c0_30, %c17_31, %c0_32] : memref<18x48x32xbf16, #tpu.memory_space<vmem>>, vector<16x16x32xbf16>
    %28 = vector.shape_cast %27 : vector<16x16x32xbf16> to vector<256x32xbf16>
    %c0_33 = arith.constant 0 : index
    %c64 = arith.constant 64 : index
    %29 = vector.load %arg13[%c0_33, %c64] : memref<256x288xbf16, #tpu.memory_space<vmem>>, vector<256x32xbf16>
    tpu.vector_store %arg13[%c0_33, %c64], %28 {strides = array<i32>} : memref<256x288xbf16, #tpu.memory_space<vmem>>, vector<256x32xbf16>,
    %c1_34 = arith.constant 1 : index
    %c15_35 = arith.constant 15 : index
    %c0_36 = arith.constant 0 : index
    %30 = vector.load %arg12[%c1_34, %c15_35, %c0_36] : memref<18x48x32xbf16, #tpu.memory_space<vmem>>, vector<16x16x32xbf16>
    %31 = vector.shape_cast %30 : vector<16x16x32xbf16> to vector<256x32xbf16>
    %c0_37 = arith.constant 0 : index
    %c96 = arith.constant 96 : index
    %32 = vector.load %arg13[%c0_37, %c96] : memref<256x288xbf16, #tpu.memory_space<vmem>>, vector<256x32xbf16>
    tpu.vector_store %arg13[%c0_37, %c96], %31 {strides = array<i32>} : memref<256x288xbf16, #tpu.memory_space<vmem>>, vector<256x32xbf16>,
    %c1_38 = arith.constant 1 : index
    %c16_39 = arith.constant 16 : index
    %c0_40 = arith.constant 0 : index
    %33 = vector.load %arg12[%c1_38, %c16_39, %c0_40] : memref<18x48x32xbf16, #tpu.memory_space<vmem>>, vector<16x16x32xbf16>
    %34 = vector.shape_cast %33 : vector<16x16x32xbf16> to vector<256x32xbf16>
    %c0_41 = arith.constant 0 : index
    %c128 = arith.constant 128 : index
    %35 = vector.load %arg13[%c0_41, %c128] : memref<256x288xbf16, #tpu.memory_space<vmem>>, vector<256x32xbf16>
    tpu.vector_store %arg13[%c0_41, %c128], %34 {strides = array<i32>} : memref<256x288xbf16, #tpu.memory_space<vmem>>, vector<256x32xbf16>,
    %c1_42 = arith.constant 1 : index
    %c17_43 = arith.constant 17 : index
    %c0_44 = arith.constant 0 : index
    %36 = vector.load %arg12[%c1_42, %c17_43, %c0_44] : memref<18x48x32xbf16, #tpu.memory_space<vmem>>, vector<16x16x32xbf16>
    %37 = vector.shape_cast %36 : vector<16x16x32xbf16> to vector<256x32xbf16>
    %c0_45 = arith.constant 0 : index
    %c160 = arith.constant 160 : index
    %38 = vector.load %arg13[%c0_45, %c160] : memref<256x288xbf16, #tpu.memory_space<vmem>>, vector<256x32xbf16>
    tpu.vector_store %arg13[%c0_45, %c160], %37 {strides = array<i32>} : memref<256x288xbf16, #tpu.memory_space<vmem>>, vector<256x32xbf16>,
    %c2 = arith.constant 2 : index
    %c15_46 = arith.constant 15 : index
    %c0_47 = arith.constant 0 : index
    %39 = vector.load %arg12[%c2, %c15_46, %c0_47] : memref<18x48x32xbf16, #tpu.memory_space<vmem>>, vector<16x16x32xbf16>
    %40 = vector.shape_cast %39 : vector<16x16x32xbf16> to vector<256x32xbf16>
    %c0_48 = arith.constant 0 : index
    %c192 = arith.constant 192 : index
    %41 = vector.load %arg13[%c0_48, %c192] : memref<256x288xbf16, #tpu.memory_space<vmem>>, vector<256x32xbf16>
    tpu.vector_store %arg13[%c0_48, %c192], %40 {strides = array<i32>} : memref<256x288xbf16, #tpu.memory_space<vmem>>, vector<256x32xbf16>,
    %c2_49 = arith.constant 2 : index
    %c16_50 = arith.constant 16 : index
    %c0_51 = arith.constant 0 : index
    %42 = vector.load %arg12[%c2_49, %c16_50, %c0_51] : memref<18x48x32xbf16, #tpu.memory_space<vmem>>, vector<16x16x32xbf16>
    %43 = vector.shape_cast %42 : vector<16x16x32xbf16> to vector<256x32xbf16>
    %c0_52 = arith.constant 0 : index
    %c224 = arith.constant 224 : index
    %44 = vector.load %arg13[%c0_52, %c224] : memref<256x288xbf16, #tpu.memory_space<vmem>>, vector<256x32xbf16>
    tpu.vector_store %arg13[%c0_52, %c224], %43 {strides = array<i32>} : memref<256x288xbf16, #tpu.memory_space<vmem>>, vector<256x32xbf16>,
    %c2_53 = arith.constant 2 : index
    %c17_54 = arith.constant 17 : index
    %c0_55 = arith.constant 0 : index
    %45 = vector.load %arg12[%c2_53, %c17_54, %c0_55] : memref<18x48x32xbf16, #tpu.memory_space<vmem>>, vector<16x16x32xbf16>
    %46 = vector.shape_cast %45 : vector<16x16x32xbf16> to vector<256x32xbf16>
    %c0_56 = arith.constant 0 : index
    %c256 = arith.constant 256 : index
    %47 = vector.load %arg13[%c0_56, %c256] : memref<256x288xbf16, #tpu.memory_space<vmem>>, vector<256x32xbf16>
    tpu.vector_store %arg13[%c0_56, %c256], %46 {strides = array<i32>} : memref<256x288xbf16, #tpu.memory_space<vmem>>, vector<256x32xbf16>,
    %c0_57 = arith.constant 0 : index
    %c0_58 = arith.constant 0 : index
    %48 = vector.load %arg13[%c0_57, %c0_58] : memref<256x288xbf16, #tpu.memory_space<vmem>>, vector<256x288xbf16>
    %c0_59 = arith.constant 0 : index
    %c0_60 = arith.constant 0 : index
    %49 = vector.load %arg5[%c0_59, %c0_60] : memref<288x32xbf16, #tpu.memory_space<vmem>>, vector<288x32xbf16>
    %cst_61 = arith.constant dense<0.000000e+00> : vector<256x32xf32>
    %50 = tpu.matmul %48, %49, %cst_61 {dimension_numbers = #tpu.dot_dimension_numbers<[1], [0], [0], [1], [0, 0, 1, 1], [], []>} : vector<256x288xbf16>, vector<288x32xbf16>, vector<256x32xf32> -> vector<256x32xf32>
    %c0_62 = arith.constant 0 : index
    %c0_63 = arith.constant 0 : index
    %51 = vector.load %arg6[%c0_62, %c0_63] : memref<1x32xf32, #tpu.memory_space<vmem>>, vector<1x32xf32>
    %52 = vector.broadcast %51 : vector<1x32xf32> to vector<256x32xf32>
    %53 = arith.mulf %50, %52 : vector<256x32xf32>
    %c0_64 = arith.constant 0 : index
    %c0_65 = arith.constant 0 : index
    %54 = vector.load %arg7[%c0_64, %c0_65] : memref<1x32xf32, #tpu.memory_space<vmem>>, vector<1x32xf32>
    %55 = vector.broadcast %54 : vector<1x32xf32> to vector<256x32xf32>
    %56 = arith.addf %53, %55 : vector<256x32xf32>
    %cst_66 = arith.constant 0.000000e+00 : f32
    %57 = vector.broadcast %cst_66 : f32 to vector<256x32xf32>
    %58 = arith.maximumf %56, %57 : vector<256x32xf32>
    %59 = arith.truncf %58 : vector<256x32xf32> to vector<256x32xbf16>
    %c0_67 = arith.constant 0 : index
    %c0_68 = arith.constant 0 : index
    %60 = vector.load %arg8[%c0_67, %c0_68] : memref<32x128xbf16, #tpu.memory_space<vmem>>, vector<32x128xbf16>
    %cst_69 = arith.constant dense<0.000000e+00> : vector<256x128xf32>
    %61 = tpu.matmul %59, %60, %cst_69 {dimension_numbers = #tpu.dot_dimension_numbers<[1], [0], [0], [1], [0, 0, 1, 1], [], []>} : vector<256x32xbf16>, vector<32x128xbf16>, vector<256x128xf32> -> vector<256x128xf32>
    %c0_70 = arith.constant 0 : index
    %c0_71 = arith.constant 0 : index
    %62 = vector.load %arg9[%c0_70, %c0_71] : memref<1x128xf32, #tpu.memory_space<vmem>>, vector<1x128xf32>
    %63 = vector.broadcast %62 : vector<1x128xf32> to vector<256x128xf32>
    %64 = arith.mulf %61, %63 : vector<256x128xf32>
    %c0_72 = arith.constant 0 : index
    %c0_73 = arith.constant 0 : index
    %65 = vector.load %arg10[%c0_72, %c0_73] : memref<1x128xf32, #tpu.memory_space<vmem>>, vector<1x128xf32>
    %66 = vector.broadcast %65 : vector<1x128xf32> to vector<256x128xf32>
    %67 = arith.addf %64, %66 : vector<256x128xf32>
    %c0_74 = arith.constant 0 : index
    %c0_75 = arith.constant 0 : index
    %68 = vector.load %arg1[%c0_74, %c0_75] : memref<256x128xf32, #tpu.memory_space<vmem>>, vector<256x128xf32>
    %69 = arith.addf %67, %68 : vector<256x128xf32>
    %cst_76 = arith.constant 0.000000e+00 : f32
    %70 = vector.broadcast %cst_76 : f32 to vector<256x128xf32>
    %71 = arith.maximumf %69, %70 : vector<256x128xf32>
    %c0_77 = arith.constant 0 : index
    %c0_78 = arith.constant 0 : index
    %72 = vector.load %arg11[%c0_77, %c0_78] : memref<256x128xf32, #tpu.memory_space<vmem>>, vector<256x128xf32>
    tpu.vector_store %arg11[%c0_77, %c0_78], %71 {strides = array<i32>} : memref<256x128xf32, #tpu.memory_space<vmem>>, vector<256x128xf32>,
    return
  }
  func.func @transform_0(%arg0: i32) -> (i32, i32) {
    %c0_i32 = arith.constant 0 : i32
    %c0_i32_0 = arith.constant 0 : i32
    return %arg0, %c0_i32 : i32, i32
  }
  func.func @transform_1(%arg0: i32) -> (i32, i32) {
    %c0_i32 = arith.constant 0 : i32
    %c0_i32_0 = arith.constant 0 : i32
    %c0_i32_1 = arith.constant 0 : i32
    return %c0_i32, %c0_i32_0 : i32, i32
  }
  func.func @transform_2(%arg0: i32) -> (i32, i32) {
    %c0_i32 = arith.constant 0 : i32
    %c0_i32_0 = arith.constant 0 : i32
    %c0_i32_1 = arith.constant 0 : i32
    return %c0_i32, %c0_i32_0 : i32, i32
  }
  func.func @transform_3(%arg0: i32) -> (i32, i32) {
    %c0_i32 = arith.constant 0 : i32
    %c0_i32_0 = arith.constant 0 : i32
    %c0_i32_1 = arith.constant 0 : i32
    return %c0_i32, %c0_i32_0 : i32, i32
  }
  func.func @transform_4(%arg0: i32) -> (i32, i32) {
    %c0_i32 = arith.constant 0 : i32
    %c0_i32_0 = arith.constant 0 : i32
    %c0_i32_1 = arith.constant 0 : i32
    return %c0_i32, %c0_i32_0 : i32, i32
  }
  func.func @transform_5(%arg0: i32) -> (i32, i32) {
    %c0_i32 = arith.constant 0 : i32
    %c0_i32_0 = arith.constant 0 : i32
    %c0_i32_1 = arith.constant 0 : i32
    return %c0_i32, %c0_i32_0 : i32, i32
  }
  func.func @transform_6(%arg0: i32) -> (i32, i32) {
    %c0_i32 = arith.constant 0 : i32
    %c0_i32_0 = arith.constant 0 : i32
    %c0_i32_1 = arith.constant 0 : i32
    return %c0_i32, %c0_i32_0 : i32, i32
  }
  func.func @transform_7(%arg0: i32) -> (i32, i32) {
    %c0_i32 = arith.constant 0 : i32
    %c0_i32_0 = arith.constant 0 : i32
    %c0_i32_1 = arith.constant 0 : i32
    return %c0_i32, %c0_i32_0 : i32, i32
  }
  func.func @transform_8(%arg0: i32) -> (i32, i32) {
    %c0_i32 = arith.constant 0 : i32
    %c0_i32_0 = arith.constant 0 : i32
    %c0_i32_1 = arith.constant 0 : i32
    return %c0_i32, %c0_i32_0 : i32, i32
  }
  func.func @transform_9(%arg0: i32) -> (i32, i32) {
    %c0_i32 = arith.constant 0 : i32
    %c0_i32_0 = arith.constant 0 : i32
    %c0_i32_1 = arith.constant 0 : i32
    return %c0_i32, %c0_i32_0 : i32, i32
  }
  func.func @transform_10(%arg0: i32) -> (i32, i32) {
    %c0_i32 = arith.constant 0 : i32
    %c0_i32_0 = arith.constant 0 : i32
    return %arg0, %c0_i32 : i32, i32
  }
}

</mosaic_0001>

<llo_original>
// kernel: _lambda_.1
$region0: #{_lambda_.1}
  #allocation0 [shape = 'u32[]', space=smem, size = 0x4, offset = 0x4, fixed_abs, tag = 'smem constant byte address 0x4 - core index']
  #allocation1 [shape = 'u32[144,128]{1,0:T(1,128)}', space=vmem, size = 0x12000, scoped, tag = 'internal scratch']
  #allocation2 [shape = 'bf16[18,48,32]{2,1,0:T(8,128)(2,1)}', space=vmem, size = 0x36000, scoped, tag = 'scratch operand']
  #allocation3 [shape = 'bf16[256,288]{1,0:T(8,128)(2,1)}', space=vmem, size = 0x30000, scoped, tag = 'scratch operand']
  %s0 = inlined_call_operand.hbm [shape: f32[512,128], index: 0, kind: input, shape index: {}]
  %s1 = inlined_call_operand.hbm [shape: bf16[128,32], index: 1, kind: input, shape index: {}]
  %s2 = inlined_call_operand.hbm [shape: f32[1,32], index: 2, kind: input, shape index: {}]
  %s3 = inlined_call_operand.vmem [shape: f32[1,32], index: 3, kind: input, shape index: {}]
  %s4 = inlined_call_operand.hbm [shape: bf16[288,32], index: 4, kind: input, shape index: {}]
  %s5 = inlined_call_operand.vmem [shape: f32[1,32], index: 5, kind: input, shape index: {}]
  %s6 = inlined_call_operand.vmem [shape: f32[1,32], index: 6, kind: input, shape index: {}]
  %s7 = inlined_call_operand.hbm [shape: bf16[32,128], index: 7, kind: input, shape index: {}]
  %s8 = inlined_call_operand.vmem [shape: f32[1,128], index: 8, kind: input, shape index: {}]
  %s9 = inlined_call_operand.vmem [shape: f32[1,128], index: 9, kind: input, shape index: {}]
  %s10 = inlined_call_operand.hbm [shape: f32[512,128], index: 10, kind: output, shape index: {}]
  %s11 = sld [smem:[#allocation0]]
  $region93: #{_lambda_.1} parent=0
    _
  %s13 = ssub.s32 1, %s11
  %s14 = scalar_select 0, %s13, %s11
  $region1: #{_lambda_.1} parent=0
    #allocation4 [shape = 'u8[262144]{0}', space=vmem, size = 0x40000, scoped, tag = 'input window, operand 0']
    #allocation5 [shape = 's32[2]{0}', space=sflag, size = 0x8, scoped, tag = 'scoped memory for _lambda_.1']
    #allocation6 [shape = 's32[2]{0}', space=sflag, size = 0x8, scoped, tag = 'scoped memory for _lambda_.1']
    #allocation7 [shape = 'u8[32768]{0}', space=vmem, size = 0x8000, scoped, tag = 'input window, operand 1, single buffered']
    #allocation8 [shape = 's32[1]{0}', space=sflag, size = 0x4, scoped, tag = 'scoped memory for _lambda_.1']
    #allocation9 [shape = 'u8[512]{0}', space=vmem, size = 0x400, scoped, tag = 'input window, operand 2, single buffered']
    #allocation10 [shape = 'u8[73728]{0}', space=vmem, size = 0x12000, scoped, tag = 'input window, operand 4, single buffered']
    #allocation11 [shape = 's32[1]{0}', space=sflag, size = 0x4, scoped, tag = 'scoped memory for _lambda_.1']
    #allocation12 [shape = 'u8[8192]{0}', space=vmem, size = 0x2000, scoped, tag = 'input window, operand 7, single buffered']
    #allocation13 [shape = 'u8[262144]{0}', space=vmem, size = 0x40000, scoped, tag = 'output window, operand 0']
    %15 = vsyncpa [#allocation5], 0
    %s16 = scalar_lea.sflag [#allocation5], 1
    %17 = vsyncpa %s16, 0
    %18 = vsyncpa [#allocation8], 0
    %19 = vsyncpa [#allocation11], 0
    %20 = vsyncpa [#allocation6], 0
    %s21 = scalar_lea.sflag [#allocation6], 1
    %22 = vsyncpa %s21, 0
    loop: start=0, step=1, limit=4
    $region2: #{_lambda_.1} parent=1 // loop_pre_header
      _
    $region3: #{_lambda_.1} parent=1 // loop_header
      %s24 = sphi 0, %s28
      %p25 = scmp.ge.s32.totalorder %s24, 4
      %s34 = sphi 0, %s36
      %s37 = sphi 0, %s34
      %s38 = sphi 0, %s37
      %s54 = sphi 0, %s38
      %s58 = sphi 0, %s58
      %s60 = sphi 0, %s58
      %s61 = sphi 0, %s60
      %s75 = sphi 0, %s61
      %s79 = sphi 0, %s79
      %s81 = sphi 0, %s79
      %s82 = sphi 0, %s81
      %s96 = sphi 0, %s82
      %s100 = sphi 0, %s100
      %s102 = sphi 0, %s100
      %s103 = sphi 0, %s102
      %s117 = sphi 0, %s103
      %s121 = sphi 0, %s121
      %s123 = sphi 0, %s121
      %s124 = sphi 0, %s123
      %s138 = sphi 0, %s124
      %s142 = sphi 0, %s142
      %s144 = sphi 0, %s142
      %s145 = sphi 0, %s144
      %s159 = sphi 0, %s145
      %s163 = sphi 0, %s163
      %s165 = sphi 0, %s163
      %s166 = sphi 0, %s165
      %s180 = sphi 0, %s166
      %s184 = sphi 0, %s184
      %s186 = sphi 0, %s184
      %s187 = sphi 0, %s186
      %s201 = sphi 0, %s187
      %s205 = sphi 0, %s205
      %s207 = sphi 0, %s205
      %s208 = sphi 0, %s207
      %s222 = sphi 0, %s208
      %s226 = sphi 0, %s226
      %s228 = sphi 0, %s226
      %s229 = sphi 0, %s228
      %s243 = sphi 0, %s229
      %s249 = sphi 0, %s251
      %s252 = sphi 0, %s249
      %s253 = sphi 0, %s252
      %s269 = sphi 0, %s253
    $region4: #{_lambda_.1} parent=1 // loop_header_branch
      %27 = sbr.rel (%p25) target = $region8
    $region5: #{_lambda_.1} parent=1 // loop_body
      %s29 = ssub.s32 %s24, 1
      %s30 = ssub.s32 %s24, 2
      %s31 = sadd.s32 %s24, 1
      %s32 = ssub.s32 %s24, %s31
      %p33 = scmp.eq.s32.totalorder %s32, 0
      %s35 = sadd.s32 %s34, 1
      %s36 = scalar_select %p33, %s34, %s35
      %p39 = pneg %p33
      %p40 = scmp.eq.s32.totalorder %s24, 1
      %p41 = por %p39, %p40
      %p42 = scmp.ne.s32.totalorder %s34, %s37
      %p43 = scmp.eq.s32.totalorder %s24, 0
      %p44 = por %p42, %p43
      %p45 = scmp.ne.s32.totalorder %s34, %s37
      %p46 = scmp.eq.s32.totalorder %s29, 1
      %p47 = por %p45, %p46
      %p48 = scmp.ne.s32.totalorder %s37, %s38
      %p49 = scmp.eq.s32.totalorder %s29, 0
      %p50 = por %p48, %p49
      %p51 = scmp.ne.s32.totalorder %s37, %s38
      %p52 = scmp.eq.s32.totalorder %s30, 1
      %p53 = por %p51, %p52
      %p55 = scmp.ne.s32.totalorder %s38, %s54
      %p56 = scmp.eq.s32.totalorder %s30, 0
      %p57 = por %p55, %p56
      %s59 = sadd.s32 %s58, 1
      %p62 = scmp.eq.s32.totalorder %s24, 1
      %p63 = scmp.ne.s32.totalorder %s58, %s60
      %p64 = scmp.eq.s32.totalorder %s24, 0
      %p65 = por %p63, %p64
      %p66 = scmp.ne.s32.totalorder %s58, %s60
      %p67 = scmp.eq.s32.totalorder %s29, 1
      %p68 = por %p66, %p67
      %p69 = scmp.ne.s32.totalorder %s60, %s61
      %p70 = scmp.eq.s32.totalorder %s29, 0
      %p71 = por %p69, %p70
      %p72 = scmp.ne.s32.totalorder %s60, %s61
      %p73 = scmp.eq.s32.totalorder %s30, 1
      %p74 = por %p72, %p73
      %p76 = scmp.ne.s32.totalorder %s61, %s75
      %p77 = scmp.eq.s32.totalorder %s30, 0
      %p78 = por %p76, %p77
      %s80 = sadd.s32 %s79, 1
      %p83 = scmp.eq.s32.totalorder %s24, 1
      %p84 = scmp.ne.s32.totalorder %s79, %s81
      %p85 = scmp.eq.s32.totalorder %s24, 0
      %p86 = por %p84, %p85
      %p87 = scmp.ne.s32.totalorder %s79, %s81
      %p88 = scmp.eq.s32.totalorder %s29, 1
      %p89 = por %p87, %p88
      %p90 = scmp.ne.s32.totalorder %s81, %s82
      %p91 = scmp.eq.s32.totalorder %s29, 0
      %p92 = por %p90, %p91
      %p93 = scmp.ne.s32.totalorder %s81, %s82
      %p94 = scmp.eq.s32.totalorder %s30, 1
      %p95 = por %p93, %p94
      %p97 = scmp.ne.s32.totalorder %s82, %s96
      %p98 = scmp.eq.s32.totalorder %s30, 0
      %p99 = por %p97, %p98
      %s101 = sadd.s32 %s100, 1
      %p104 = scmp.eq.s32.totalorder %s24, 1
      %p105 = scmp.ne.s32.totalorder %s100, %s102
      %p106 = scmp.eq.s32.totalorder %s24, 0
      %p107 = por %p105, %p106
      %p108 = scmp.ne.s32.totalorder %s100, %s102
      %p109 = scmp.eq.s32.totalorder %s29, 1
      %p110 = por %p108, %p109
      %p111 = scmp.ne.s32.totalorder %s102, %s103
      %p112 = scmp.eq.s32.totalorder %s29, 0
      %p113 = por %p111, %p112
      %p114 = scmp.ne.s32.totalorder %s102, %s103
      %p115 = scmp.eq.s32.totalorder %s30, 1
      %p116 = por %p114, %p115
      %p118 = scmp.ne.s32.totalorder %s103, %s117
      %p119 = scmp.eq.s32.totalorder %s30, 0
      %p120 = por %p118, %p119
      %s122 = sadd.s32 %s121, 1
      %p125 = scmp.eq.s32.totalorder %s24, 1
      %p126 = scmp.ne.s32.totalorder %s121, %s123
      %p127 = scmp.eq.s32.totalorder %s24, 0
      %p128 = por %p126, %p127
      %p129 = scmp.ne.s32.totalorder %s121, %s123
      %p130 = scmp.eq.s32.totalorder %s29, 1
      %p131 = por %p129, %p130
      %p132 = scmp.ne.s32.totalorder %s123, %s124
      %p133 = scmp.eq.s32.totalorder %s29, 0
      %p134 = por %p132, %p133
      %p135 = scmp.ne.s32.totalorder %s123, %s124
      %p136 = scmp.eq.s32.totalorder %s30, 1
      %p137 = por %p135, %p136
      %p139 = scmp.ne.s32.totalorder %s124, %s138
      %p140 = scmp.eq.s32.totalorder %s30, 0
      %p141 = por %p139, %p140
      %s143 = sadd.s32 %s142, 1
      %p146 = scmp.eq.s32.totalorder %s24, 1
      %p147 = scmp.ne.s32.totalorder %s142, %s144
      %p148 = scmp.eq.s32.totalorder %s24, 0
      %p149 = por %p147, %p148
      %p150 = scmp.ne.s32.totalorder %s142, %s144
      %p151 = scmp.eq.s32.totalorder %s29, 1
      %p152 = por %p150, %p151
      %p153 = scmp.ne.s32.totalorder %s144, %s145
      %p154 = scmp.eq.s32.totalorder %s29, 0
      %p155 = por %p153, %p154
      %p156 = scmp.ne.s32.totalorder %s144, %s145
      %p157 = scmp.eq.s32.totalorder %s30, 1
      %p158 = por %p156, %p157
      %p160 = scmp.ne.s32.totalorder %s145, %s159
      %p161 = scmp.eq.s32.totalorder %s30, 0
      %p162 = por %p160, %p161
      %s164 = sadd.s32 %s163, 1
      %p167 = scmp.eq.s32.totalorder %s24, 1
      %p168 = scmp.ne.s32.totalorder %s163, %s165
      %p169 = scmp.eq.s32.totalorder %s24, 0
      %p170 = por %p168, %p169
      %p171 = scmp.ne.s32.totalorder %s163, %s165
      %p172 = scmp.eq.s32.totalorder %s29, 1
      %p173 = por %p171, %p172
      %p174 = scmp.ne.s32.totalorder %s165, %s166
      %p175 = scmp.eq.s32.totalorder %s29, 0
      %p176 = por %p174, %p175
      %p177 = scmp.ne.s32.totalorder %s165, %s166
      %p178 = scmp.eq.s32.totalorder %s30, 1
      %p179 = por %p177, %p178
      %p181 = scmp.ne.s32.totalorder %s166, %s180
      %p182 = scmp.eq.s32.totalorder %s30, 0
      %p183 = por %p181, %p182
      %s185 = sadd.s32 %s184, 1
      %p188 = scmp.eq.s32.totalorder %s24, 1
      %p189 = scmp.ne.s32.totalorder %s184, %s186
      %p190 = scmp.eq.s32.totalorder %s24, 0
      %p191 = por %p189, %p190
      %p192 = scmp.ne.s32.totalorder %s184, %s186
      %p193 = scmp.eq.s32.totalorder %s29, 1
      %p194 = por %p192, %p193
      %p195 = scmp.ne.s32.totalorder %s186, %s187
      %p196 = scmp.eq.s32.totalorder %s29, 0
      %p197 = por %p195, %p196
      %p198 = scmp.ne.s32.totalorder %s186, %s187
      %p199 = scmp.eq.s32.totalorder %s30, 1
      %p200 = por %p198, %p199
      %p202 = scmp.ne.s32.totalorder %s187, %s201
      %p203 = scmp.eq.s32.totalorder %s30, 0
      %p204 = por %p202, %p203
      %s206 = sadd.s32 %s205, 1
      %p209 = scmp.eq.s32.totalorder %s24, 1
      %p210 = scmp.ne.s32.totalorder %s205, %s207
      %p211 = scmp.eq.s32.totalorder %s24, 0
      %p212 = por %p210, %p211
      %p213 = scmp.ne.s32.totalorder %s205, %s207
      %p214 = scmp.eq.s32.totalorder %s29, 1
      %p215 = por %p213, %p214
      %p216 = scmp.ne.s32.totalorder %s207, %s208
      %p217 = scmp.eq.s32.totalorder %s29, 0
      %p218 = por %p216, %p217
      %p219 = scmp.ne.s32.totalorder %s207, %s208
      %p220 = scmp.eq.s32.totalorder %s30, 1
      %p221 = por %p219, %p220
      %p223 = scmp.ne.s32.totalorder %s208, %s222
      %p224 = scmp.eq.s32.totalorder %s30, 0
      %p225 = por %p223, %p224
      %s227 = sadd.s32 %s226, 1
      %p230 = scmp.eq.s32.totalorder %s24, 1
      %p231 = scmp.ne.s32.totalorder %s226, %s228
      %p232 = scmp.eq.s32.totalorder %s24, 0
      %p233 = por %p231, %p232
      %p234 = scmp.ne.s32.totalorder %s226, %s228
      %p235 = scmp.eq.s32.totalorder %s29, 1
      %p236 = por %p234, %p235
      %p237 = scmp.ne.s32.totalorder %s228, %s229
      %p238 = scmp.eq.s32.totalorder %s29, 0
      %p239 = por %p237, %p238
      %p240 = scmp.ne.s32.totalorder %s228, %s229
      %p241 = scmp.eq.s32.totalorder %s30, 1
      %p242 = por %p240, %p241
      %p244 = scmp.ne.s32.totalorder %s229, %s243
      %p245 = scmp.eq.s32.totalorder %s30, 0
      %p246 = por %p244, %p245
      %s247 = ssub.s32 %s24, %s31
      %p248 = scmp.eq.s32.totalorder %s247, 0
      %s250 = sadd.s32 %s249, 1
      %s251 = scalar_select %p248, %s249, %s250
      %p254 = pneg %p248
      %p255 = scmp.eq.s32.totalorder %s24, 1
      %p256 = por %p254, %p255
      %p257 = scmp.ne.s32.totalorder %s249, %s252
      %p258 = scmp.eq.s32.totalorder %s24, 0
      %p259 = por %p257, %p258
      %p260 = scmp.ne.s32.totalorder %s249, %s252
      %p261 = scmp.eq.s32.totalorder %s29, 1
      %p262 = por %p260, %p261
      %p263 = scmp.ne.s32.totalorder %s252, %s253
      %p264 = scmp.eq.s32.totalorder %s29, 0
      %p265 = por %p263, %p264
      %p266 = scmp.ne.s32.totalorder %s252, %s253
      %p267 = scmp.eq.s32.totalorder %s30, 1
      %p268 = por %p266, %p267
      %p270 = scmp.ne.s32.totalorder %s253, %s269
      %p271 = scmp.eq.s32.totalorder %s30, 0
      %p272 = por %p270, %p271
      %p273 = scmp.le.s32.totalorder 1, %s24
      %p274 = scmp.lt.s32.totalorder %s24, 3
      %p275 = pnand %p273, %p274
      %p276 = pneg %p275
      // Predicated region
      $region9: #{_lambda_.1} parent=5 // pred_check
        _
      $region10: #{_lambda_.1} parent=5 // pred_check_branch
        %278 = sbr.rel (%p275) target = $region12
      $region11: #{_lambda_.1} parent=5 // pred_region
        %s279 = ssub.s32 %s24, 1
        // Predicated region
        $region13: #{_lambda_.1} parent=11 // pred_check
          %p280 = pneg %p71
        $region14: #{_lambda_.1} parent=11 // pred_check_branch
          %282 = sbr.rel (%p280) target = $region16
        $region15: #{_lambda_.1} parent=11 // pred_region
          %s284 = ssub.s32 1024, 1024
          %285 = vsyncadd [#allocation8], %s284
          %s286 = sshll.u32 [#allocation7], 4
          %s287 = int_to_ptr.vmem [resolvable:$true] %s286
          %292 = dma.hbm_to_vmem [thread:$0]  %s1, 1024, %s287, [#allocation8], 64, 64, 4
        $region16: #{_lambda_.1} parent=11 // pred_fallthru
          _
        // Predicated region
        $region17: #{_lambda_.1} parent=11 // pred_check
          %p293 = pneg %p92
        $region18: #{_lambda_.1} parent=11 // pred_check_branch
          %295 = sbr.rel (%p293) target = $region20
        $region19: #{_lambda_.1} parent=11 // pred_region
          %s297 = ssub.s32 16, 16
          %298 = vsyncadd [#allocation8], %s297
          %s300 = sshll.u32 [#allocation9], 4
          %s301 = int_to_ptr.vmem [resolvable:$true] %s300
          %303 = dma.hbm_to_vmem [thread:$0]  %s2, 16, %s301, [#allocation8]
        $region20: #{_lambda_.1} parent=11 // pred_fallthru
          _
        // Predicated region
        $region21: #{_lambda_.1} parent=11 // pred_check
          %p304 = pneg %p113
        $region22: #{_lambda_.1} parent=11 // pred_check_branch
          %306 = sbr.rel (%p304) target = $region24
        $region23: #{_lambda_.1} parent=11 // pred_region
          _
        $region24: #{_lambda_.1} parent=11 // pred_fallthru
          _
        // Predicated region
        $region25: #{_lambda_.1} parent=11 // pred_check
          %p307 = pneg %p134
        $region26: #{_lambda_.1} parent=11 // pred_check_branch
          %309 = sbr.rel (%p307) target = $region28
        $region27: #{_lambda_.1} parent=11 // pred_region
          %s311 = ssub.s32 2304, 2304
          %312 = vsyncadd [#allocation11], %s311
          %s313 = sshll.u32 [#allocation10], 4
          %s314 = int_to_ptr.vmem [resolvable:$true] %s313
          %319 = dma.hbm_to_vmem [thread:$0]  %s4, 2304, %s314, [#allocation11], 64, 64, 4
        $region28: #{_lambda_.1} parent=11 // pred_fallthru
          _
        // Predicated region
        $region29: #{_lambda_.1} parent=11 // pred_check
          %p320 = pneg %p155
        $region30: #{_lambda_.1} parent=11 // pred_check_branch
          %322 = sbr.rel (%p320) target = $region32
        $region31: #{_lambda_.1} parent=11 // pred_region
          _
        $region32: #{_lambda_.1} parent=11 // pred_fallthru
          _
        // Predicated region
        $region33: #{_lambda_.1} parent=11 // pred_check
          %p323 = pneg %p176
        $region34: #{_lambda_.1} parent=11 // pred_check_branch
          %325 = sbr.rel (%p323) target = $region36
        $region35: #{_lambda_.1} parent=11 // pred_region
          _
        $region36: #{_lambda_.1} parent=11 // pred_fallthru
          _
        // Predicated region
        $region37: #{_lambda_.1} parent=11 // pred_check
          %p326 = pneg %p197
        $region38: #{_lambda_.1} parent=11 // pred_check_branch
          %328 = sbr.rel (%p326) target = $region40
        $region39: #{_lambda_.1} parent=11 // pred_region
          %s330 = ssub.s32 256, 256
          %331 = vsyncadd [#allocation11], %s330
          %s332 = sshll.u32 [#allocation12], 4
          %s333 = int_to_ptr.vmem [resolvable:$true] %s332
          %338 = dma.hbm_to_vmem [thread:$0]  %s7, 256, %s333, [#allocation11], 64, 64, 4
        $region40: #{_lambda_.1} parent=11 // pred_fallthru
          _
        // Predicated region
        $region41: #{_lambda_.1} parent=11 // pred_check
          %p339 = pneg %p218
        $region42: #{_lambda_.1} parent=11 // pred_check_branch
          %341 = sbr.rel (%p339) target = $region44
        $region43: #{_lambda_.1} parent=11 // pred_region
          _
        $region44: #{_lambda_.1} parent=11 // pred_fallthru
          _
        // Predicated region
        $region45: #{_lambda_.1} parent=11 // pred_check
          %p342 = pneg %p239
        $region46: #{_lambda_.1} parent=11 // pred_check_branch
          %344 = sbr.rel (%p342) target = $region48
        $region47: #{_lambda_.1} parent=11 // pred_region
          _
        $region48: #{_lambda_.1} parent=11 // pred_fallthru
          _
      $region12: #{_lambda_.1} parent=5 // pred_fallthru
        _
      %p345 = scmp.lt.s32.totalorder %s24, 2
      // Predicated region
      $region49: #{_lambda_.1} parent=5 // pred_check
        %p346 = pneg %p345
      $region50: #{_lambda_.1} parent=5 // pred_check_branch
        %348 = sbr.rel (%p346) target = $region52
      $region51: #{_lambda_.1} parent=5 // pred_region
        // Predicated region
        $region53: #{_lambda_.1} parent=51 // pred_check
          %p349 = pneg %p44
        $region54: #{_lambda_.1} parent=51 // pred_check_branch
          %351 = sbr.rel (%p349) target = $region56
        $region55: #{_lambda_.1} parent=51 // pred_region
          %s352 = sand.u32 %s34, 1
          %s353 = scalar_lea.sflag [#allocation5], %s352
          %s354 = sand.u32 %s34, 1
          %s355 = smul.addr %s354, 256
          %s356 = scalar_lea.vmem [#allocation4], %s355
          %s357 = smul.u32 32, %s24
          %s359 = ssub.s32 4096, 4096
          %360 = vsyncadd %s353, %s359
          %s361 = smul.addr %s357, 128
          %s362 = scalar_lea.hbm %s0, %s361
          %s363 = sshll.u32 %s356, 4
          %s364 = int_to_ptr.vmem [resolvable:$true] %s363
          %369 = dma.hbm_to_vmem [thread:$0]  %s362, 4096, %s364, %s353, 128, 128, 8
        $region56: #{_lambda_.1} parent=51 // pred_fallthru
          _
      $region52: #{_lambda_.1} parent=5 // pred_fallthru
        _
      %p370 = scmp.le.s32.totalorder 1, %s24
      %p371 = scmp.lt.s32.totalorder %s24, 3
      %p372 = pnand %p370, %p371
      %p373 = pneg %p372
      // Predicated region
      $region57: #{_lambda_.1} parent=5 // pred_check
        _
      $region58: #{_lambda_.1} parent=5 // pred_check_branch
        %375 = sbr.rel (%p372) target = $region60
      $region59: #{_lambda_.1} parent=5 // pred_region
        %s376 = ssub.s32 %s24, 1
        %s377 = sand.u32 %s37, 1
        %s378 = scalar_lea.sflag [#allocation5], %s377
        %s379 = sand.u32 %s37, 1
        %s380 = smul.addr %s379, 256
        %s381 = scalar_lea.vmem [#allocation4], %s380
        // Predicated region
        $region61: #{_lambda_.1} parent=59 // pred_check
          %p382 = pneg %p50
        $region62: #{_lambda_.1} parent=59 // pred_check_branch
          %384 = sbr.rel (%p382) target = $region64
        $region63: #{_lambda_.1} parent=59 // pred_region
          %385 = dma.done %s378, 4096
        $region64: #{_lambda_.1} parent=59 // pred_fallthru
          _
        // Predicated region
        $region65: #{_lambda_.1} parent=59 // pred_check
          %p386 = pneg %p71
        $region66: #{_lambda_.1} parent=59 // pred_check_branch
          %388 = sbr.rel (%p386) target = $region68
        $region67: #{_lambda_.1} parent=59 // pred_region
          %389 = dma.done [#allocation8], 1024
        $region68: #{_lambda_.1} parent=59 // pred_fallthru
          _
        // Predicated region
        $region69: #{_lambda_.1} parent=59 // pred_check
          %p390 = pneg %p92
        $region70: #{_lambda_.1} parent=59 // pred_check_branch
          %392 = sbr.rel (%p390) target = $region72
        $region71: #{_lambda_.1} parent=59 // pred_region
          %393 = dma.done [#allocation8], 16
        $region72: #{_lambda_.1} parent=59 // pred_fallthru
          _
        // Predicated region
        $region73: #{_lambda_.1} parent=59 // pred_check
          %p394 = pneg %p134
        $region74: #{_lambda_.1} parent=59 // pred_check_branch
          %396 = sbr.rel (%p394) target = $region76
        $region75: #{_lambda_.1} parent=59 // pred_region
          %397 = dma.done [#allocation11], 2304
        $region76: #{_lambda_.1} parent=59 // pred_fallthru
          _
        // Predicated region
        $region77: #{_lambda_.1} parent=59 // pred_check
          %p398 = pneg %p197
        $region78: #{_lambda_.1} parent=59 // pred_check_branch
          %400 = sbr.rel (%p398) target = $region80
        $region79: #{_lambda_.1} parent=59 // pred_region
          %401 = dma.done [#allocation11], 256
        $region80: #{_lambda_.1} parent=59 // pred_fallthru
          _
        %s402 = sand.u32 %s37, 1
        %s403 = scalar_lea.sflag [#allocation5], %s402
        %s404 = sand.u32 %s37, 1
        %s405 = smul.addr %s404, 256
        %s406 = scalar_lea.vmem [#allocation4], %s405
        %p407 = pneg %p50
        %p408 = pneg %p47
        %p409 = pneg %p71
        %p410 = pneg %p68
        %p411 = pneg %p92
        %p412 = pneg %p89
        %p413 = pneg %p113
        %p414 = pneg %p110
        %p415 = pneg %p134
        %p416 = pneg %p131
        %p417 = pneg %p155
        %p418 = pneg %p152
        %p419 = pneg %p176
        %p420 = pneg %p173
        %p421 = pneg %p197
        %p422 = pneg %p194
        %p423 = pneg %p218
        %p424 = pneg %p215
        %p425 = pneg %p239
        %p426 = pneg %p236
        %p427 = pneg %p265
        %p428 = pneg %p262
        %s429 = sand.u32 %s252, 1
        %s430 = scalar_lea.sflag [#allocation6], %s429
        %s431 = sand.u32 %s252, 1
        %s432 = smul.addr %s431, 256
        %s433 = scalar_lea.vmem [#allocation13], %s432
        %s434 = smul.u32 32, %s29
        %s435 = smul.u32 32, %s29
        %v437 = vld [vmem:[%s381] sm:$0xff]
        %v438 = vld [vmem:[%s381 + $0x8] sm:$0xff]
        %v439 = vld [vmem:[%s381 + $0x10] sm:$0xff]
        %v440 = vld [vmem:[%s381 + $0x18] sm:$0xff]
        %v441 = vld [vmem:[%s381 + $0x20] sm:$0xff]
        %v442 = vld [vmem:[%s381 + $0x28] sm:$0xff]
        %v443 = vld [vmem:[%s381 + $0x30] sm:$0xff]
        %v444 = vld [vmem:[%s381 + $0x38] sm:$0xff]
        %v445 = vld [vmem:[%s381 + $0x40] sm:$0xff]
        %v446 = vld [vmem:[%s381 + $0x48] sm:$0xff]
        %v447 = vld [vmem:[%s381 + $0x50] sm:$0xff]
        %v448 = vld [vmem:[%s381 + $0x58] sm:$0xff]
        %v449 = vld [vmem:[%s381 + $0x60] sm:$0xff]
        %v450 = vld [vmem:[%s381 + $0x68] sm:$0xff]
        %v451 = vld [vmem:[%s381 + $0x70] sm:$0xff]
        %v452 = vld [vmem:[%s381 + $0x78] sm:$0xff]
        %v453 = vld [vmem:[%s381 + $0x80] sm:$0xff]
        %v454 = vld [vmem:[%s381 + $0x88] sm:$0xff]
        %v455 = vld [vmem:[%s381 + $0x90] sm:$0xff]
        %v456 = vld [vmem:[%s381 + $0x98] sm:$0xff]
        %v457 = vld [vmem:[%s381 + $0xa0] sm:$0xff]
        %v458 = vld [vmem:[%s381 + $0xa8] sm:$0xff]
        %v459 = vld [vmem:[%s381 + $0xb0] sm:$0xff]
        %v460 = vld [vmem:[%s381 + $0xb8] sm:$0xff]
        %v461 = vld [vmem:[%s381 + $0xc0] sm:$0xff]
        %v462 = vld [vmem:[%s381 + $0xc8] sm:$0xff]
        %v463 = vld [vmem:[%s381 + $0xd0] sm:$0xff]
        %v464 = vld [vmem:[%s381 + $0xd8] sm:$0xff]
        %v465 = vld [vmem:[%s381 + $0xe0] sm:$0xff]
        %v466 = vld [vmem:[%s381 + $0xe8] sm:$0xff]
        %v467 = vld [vmem:[%s381 + $0xf0] sm:$0xff]
        %v468 = vld [vmem:[%s381 + $0xf8] sm:$0xff]
        %v469 = vpack.c.bf16 %v438, %v437
        %v470 = vpack.c.bf16 %v440, %v439
        %v471 = vpack.c.bf16 %v442, %v441
        %v472 = vpack.c.bf16 %v444, %v443
        %v473 = vpack.c.bf16 %v446, %v445
        %v474 = vpack.c.bf16 %v448, %v447
        %v475 = vpack.c.bf16 %v450, %v449
        %v476 = vpack.c.bf16 %v452, %v451
        %v477 = vpack.c.bf16 %v454, %v453
        %v478 = vpack.c.bf16 %v456, %v455
        %v479 = vpack.c.bf16 %v458, %v457
        %v480 = vpack.c.bf16 %v460, %v459
        %v481 = vpack.c.bf16 %v462, %v461
        %v482 = vpack.c.bf16 %v464, %v463
        %v483 = vpack.c.bf16 %v466, %v465
        %v484 = vpack.c.bf16 %v468, %v467
        %v485 = vld [vmem:[#allocation7] sm:$0xf]
        %v486 = vld [vmem:[#allocation7 + $0x4] sm:$0xf]
        %v487 = vld [vmem:[#allocation7 + $0x8] sm:$0xf]
        %v488 = vld [vmem:[#allocation7 + $0xc] sm:$0xf]
        %v489 = vld [vmem:[#allocation7 + $0x10] sm:$0xf]
        %v490 = vld [vmem:[#allocation7 + $0x14] sm:$0xf]
        %v491 = vld [vmem:[#allocation7 + $0x18] sm:$0xf]
        %v492 = vld [vmem:[#allocation7 + $0x1c] sm:$0xf]
        %v493 = vld [vmem:[#allocation7 + $0x20] sm:$0xf]
        %v494 = vld [vmem:[#allocation7 + $0x24] sm:$0xf]
        %v495 = vld [vmem:[#allocation7 + $0x28] sm:$0xf]
        %v496 = vld [vmem:[#allocation7 + $0x2c] sm:$0xf]
        %v497 = vld [vmem:[#allocation7 + $0x30] sm:$0xf]
        %v498 = vld [vmem:[#allocation7 + $0x34] sm:$0xf]
        %v499 = vld [vmem:[#allocation7 + $0x38] sm:$0xf]
        %v500 = vld [vmem:[#allocation7 + $0x3c] sm:$0xf]
        %v517 = vunpack.c.l.b16 %v485
        %v518 = vunpack.c.l.b16 %v486
        %v519 = vunpack.c.l.b16 %v487
        %v520 = vunpack.c.l.b16 %v488
        %v521 = vunpack.c.l.b16 %v489
        %v522 = vunpack.c.l.b16 %v490
        %v523 = vunpack.c.l.b16 %v491
        %v524 = vunpack.c.l.b16 %v492
        %v525 = vunpack.c.l.b16 %v493
        %v526 = vunpack.c.l.b16 %v494
        %v527 = vunpack.c.l.b16 %v495
        %v528 = vunpack.c.l.b16 %v496
        %v529 = vunpack.c.l.b16 %v497
        %v530 = vunpack.c.l.b16 %v498
        %v531 = vunpack.c.l.b16 %v499
        %v532 = vunpack.c.l.b16 %v500
        %v533 = vpack.c.b16 %v518, %v517
        %v534 = vpack.c.b16 %v520, %v519
        %v535 = vpack.c.b16 %v522, %v521
        %v536 = vpack.c.b16 %v524, %v523
        %v537 = vpack.c.b16 %v526, %v525
        %v538 = vpack.c.b16 %v528, %v527
        %v539 = vpack.c.b16 %v530, %v529
        %v540 = vpack.c.b16 %v532, %v531
        %549 = vmatprep.subr.bf16.mxu0 0
        %550 = vmatpush1.bf16.msra.mxu0 %v540
        %551 = vmatprep.subr.bf16.mxu0 0
        %552 = vmatpush1.bf16.msra.mxu0 %v539
        %553 = vmatprep.subr.bf16.mxu0 0
        %554 = vmatpush1.bf16.msra.mxu0 %v538
        %555 = vmatprep.subr.bf16.mxu0 0
        %556 = vmatpush1.bf16.msra.mxu0 %v537
        %557 = vmatprep.subr.bf16.mxu0 0
        %558 = vmatpush1.bf16.msra.mxu0 %v536
        %559 = vmatprep.subr.bf16.mxu0 0
        %560 = vmatpush1.bf16.msra.mxu0 %v535
        %561 = vmatprep.subr.bf16.mxu0 0
        %562 = vmatpush1.bf16.msra.mxu0 %v534
        %563 = vmatprep.subr.bf16.mxu0 0
        %564 = vmatpush1.bf16.msra.mxu0 %v533
        %565 = vmatprep.subr.bf16.mxu0 0
        %566 = vmatpush2.bf16.msra.mxu0 0
        %567 = vmatprep.subr.bf16.mxu0 0
        %568 = vmatpush2.bf16.msra.mxu0 0
        %569 = vmatprep.subr.bf16.mxu0 0
        %570 = vmatpush2.bf16.msra.mxu0 0
        %571 = vmatprep.subr.bf16.mxu0 0
        %572 = vmatpush2.bf16.msra.mxu0 0
        %573 = vmatprep.subr.bf16.mxu0 0
        %574 = vmatpush2.bf16.msra.mxu0 0
        %575 = vmatprep.subr.bf16.mxu0 0
        %576 = vmatpush2.bf16.msra.mxu0 0
        %577 = vmatprep.subr.bf16.mxu0 0
        %578 = vmatpush2.bf16.msra.mxu0 0
        %579 = vmatprep.subr.bf16.mxu0 0
        %580 = vmatpush2.bf16.msra.mxu0 0
        %581 = vmatprep.mubr.bf16.mxu0 0
        %582 = vmatmul.mubr.bf16.gmra.mxu0 %v469
        %v583 = vpop.f32.mrf.mxu0
        %v584 = vadd.f32 0.0, %v583
        %v585 = vpop.f32.mrf.mxu0
        %v586 = vpop.f32.mrf.mxu0
        %v587 = vadd.f32 0.0, %v586
        %v588 = vpop.f32.mrf.mxu0
        %589 = vmatprep.mubr.bf16.mxu0 0
        %590 = vmatmul.mubr.bf16.gmra.mxu0 %v470
        %v591 = vpop.f32.mrf.mxu0
        %v592 = vadd.f32 0.0, %v591
        %v593 = vpop.f32.mrf.mxu0
        %v594 = vpop.f32.mrf.mxu0
        %v595 = vadd.f32 0.0, %v594
        %v596 = vpop.f32.mrf.mxu0
        %597 = vmatprep.mubr.bf16.mxu0 0
        %598 = vmatmul.mubr.bf16.gmra.mxu0 %v471
        %v599 = vpop.f32.mrf.mxu0
        %v600 = vadd.f32 0.0, %v599
        %v601 = vpop.f32.mrf.mxu0
        %v602 = vpop.f32.mrf.mxu0
        %v603 = vadd.f32 0.0, %v602
        %v604 = vpop.f32.mrf.mxu0
        %605 = vmatprep.mubr.bf16.mxu0 0
        %606 = vmatmul.mubr.bf16.gmra.mxu0 %v472
        %v607 = vpop.f32.mrf.mxu0
        %v608 = vadd.f32 0.0, %v607
        %v609 = vpop.f32.mrf.mxu0
        %v610 = vpop.f32.mrf.mxu0
        %v611 = vadd.f32 0.0, %v610
        %v612 = vpop.f32.mrf.mxu0
        %613 = vmatprep.mubr.bf16.mxu0 0
        %614 = vmatmul.mubr.bf16.gmra.mxu0 %v473
        %v615 = vpop.f32.mrf.mxu0
        %v616 = vadd.f32 0.0, %v615
        %v617 = vpop.f32.mrf.mxu0
        %v618 = vpop.f32.mrf.mxu0
        %v619 = vadd.f32 0.0, %v618
        %v620 = vpop.f32.mrf.mxu0
        %621 = vmatprep.mubr.bf16.mxu0 0
        %622 = vmatmul.mubr.bf16.gmra.mxu0 %v474
        %v623 = vpop.f32.mrf.mxu0
        %v624 = vadd.f32 0.0, %v623
        %v625 = vpop.f32.mrf.mxu0
        %v626 = vpop.f32.mrf.mxu0
        %v627 = vadd.f32 0.0, %v626
        %v628 = vpop.f32.mrf.mxu0
        %629 = vmatprep.mubr.bf16.mxu0 0
        %630 = vmatmul.mubr.bf16.gmra.mxu0 %v475
        %v631 = vpop.f32.mrf.mxu0
        %v632 = vadd.f32 0.0, %v631
        %v633 = vpop.f32.mrf.mxu0
        %v634 = vpop.f32.mrf.mxu0
        %v635 = vadd.f32 0.0, %v634
        %v636 = vpop.f32.mrf.mxu0
        %637 = vmatprep.mubr.bf16.mxu0 0
        %638 = vmatmul.mubr.bf16.gmra.mxu0 %v476
        %v639 = vpop.f32.mrf.mxu0
        %v640 = vadd.f32 0.0, %v639
        %v641 = vpop.f32.mrf.mxu0
        %v642 = vpop.f32.mrf.mxu0
        %v643 = vadd.f32 0.0, %v642
        %v644 = vpop.f32.mrf.mxu0
        %645 = vmatprep.mubr.bf16.mxu0 0
        %646 = vmatmul.mubr.bf16.gmra.mxu0 %v477
        %v647 = vpop.f32.mrf.mxu0
        %v648 = vadd.f32 0.0, %v647
        %v649 = vpop.f32.mrf.mxu0
        %v650 = vpop.f32.mrf.mxu0
        %v651 = vadd.f32 0.0, %v650
        %v652 = vpop.f32.mrf.mxu0
        %653 = vmatprep.mubr.bf16.mxu0 0
        %654 = vmatmul.mubr.bf16.gmra.mxu0 %v478
        %v655 = vpop.f32.mrf.mxu0
        %v656 = vadd.f32 0.0, %v655
        %v657 = vpop.f32.mrf.mxu0
        %v658 = vpop.f32.mrf.mxu0
        %v659 = vadd.f32 0.0, %v658
        %v660 = vpop.f32.mrf.mxu0
        %661 = vmatprep.mubr.bf16.mxu0 0
        %662 = vmatmul.mubr.bf16.gmra.mxu0 %v479
        %v663 = vpop.f32.mrf.mxu0
        %v664 = vadd.f32 0.0, %v663
        %v665 = vpop.f32.mrf.mxu0
        %v666 = vpop.f32.mrf.mxu0
        %v667 = vadd.f32 0.0, %v666
        %v668 = vpop.f32.mrf.mxu0
        %669 = vmatprep.mubr.bf16.mxu0 0
        %670 = vmatmul.mubr.bf16.gmra.mxu0 %v480
        %v671 = vpop.f32.mrf.mxu0
        %v672 = vadd.f32 0.0, %v671
        %v673 = vpop.f32.mrf.mxu0
        %v674 = vpop.f32.mrf.mxu0
        %v675 = vadd.f32 0.0, %v674
        %v676 = vpop.f32.mrf.mxu0
        %677 = vmatprep.mubr.bf16.mxu0 0
        %678 = vmatmul.mubr.bf16.gmra.mxu0 %v481
        %v679 = vpop.f32.mrf.mxu0
        %v680 = vadd.f32 0.0, %v679
        %v681 = vpop.f32.mrf.mxu0
        %v682 = vpop.f32.mrf.mxu0
        %v683 = vadd.f32 0.0, %v682
        %v684 = vpop.f32.mrf.mxu0
        %685 = vmatprep.mubr.bf16.mxu0 0
        %686 = vmatmul.mubr.bf16.gmra.mxu0 %v482
        %v687 = vpop.f32.mrf.mxu0
        %v688 = vadd.f32 0.0, %v687
        %v689 = vpop.f32.mrf.mxu0
        %v690 = vpop.f32.mrf.mxu0
        %v691 = vadd.f32 0.0, %v690
        %v692 = vpop.f32.mrf.mxu0
        %693 = vmatprep.mubr.bf16.mxu0 0
        %694 = vmatmul.mubr.bf16.gmra.mxu0 %v483
        %v695 = vpop.f32.mrf.mxu0
        %v696 = vadd.f32 0.0, %v695
        %v697 = vpop.f32.mrf.mxu0
        %v698 = vpop.f32.mrf.mxu0
        %v699 = vadd.f32 0.0, %v698
        %v700 = vpop.f32.mrf.mxu0
        %701 = vmatprep.mubr.bf16.mxu0 0
        %702 = vmatmul.mubr.bf16.gmra.mxu0 %v484
        %v703 = vpop.f32.mrf.mxu0
        %v704 = vadd.f32 0.0, %v703
        %v705 = vpop.f32.mrf.mxu0
        %v706 = vpop.f32.mrf.mxu0
        %v707 = vadd.f32 0.0, %v706
        %v708 = vpop.f32.mrf.mxu0
        %709 = vdwg.mxu0
        %v710 = vld [vmem:[#allocation9] sm:$0x1]
        %v712 = vlaneseq
        %v713 = vshrl.u32 %v712, 7
        %v714 = vsub.s32 0, %v713
        %v715 = vrot.slane %v710, %v714
        %v717 = vmul.f32 %v584, %v715
        %v718 = vmul.f32 %v587, %v715
        %v719 = vmul.f32 %v592, %v715
        %v720 = vmul.f32 %v595, %v715
        %v721 = vmul.f32 %v600, %v715
        %v722 = vmul.f32 %v603, %v715
        %v723 = vmul.f32 %v608, %v715
        %v724 = vmul.f32 %v611, %v715
        %v725 = vmul.f32 %v616, %v715
        %v726 = vmul.f32 %v619, %v715
        %v727 = vmul.f32 %v624, %v715
        %v728 = vmul.f32 %v627, %v715
        %v729 = vmul.f32 %v632, %v715
        %v730 = vmul.f32 %v635, %v715
        %v731 = vmul.f32 %v640, %v715
        %v732 = vmul.f32 %v643, %v715
        %v733 = vmul.f32 %v648, %v715
        %v734 = vmul.f32 %v651, %v715
        %v735 = vmul.f32 %v656, %v715
        %v736 = vmul.f32 %v659, %v715
        %v737 = vmul.f32 %v664, %v715
        %v738 = vmul.f32 %v667, %v715
        %v739 = vmul.f32 %v672, %v715
        %v740 = vmul.f32 %v675, %v715
        %v741 = vmul.f32 %v680, %v715
        %v742 = vmul.f32 %v683, %v715
        %v743 = vmul.f32 %v688, %v715
        %v744 = vmul.f32 %v691, %v715
        %v745 = vmul.f32 %v696, %v715
        %v746 = vmul.f32 %v699, %v715
        %v747 = vmul.f32 %v704, %v715
        %v748 = vmul.f32 %v707, %v715
        %v749 = vld [vmem:[%s3] sm:$0x1]
        %v751 = vlaneseq
        %v752 = vshrl.u32 %v751, 7
        %v753 = vsub.s32 0, %v752
        %v754 = vrot.slane %v749, %v753
        %v756 = vadd.f32 %v717, %v754
        %v757 = vadd.f32 %v718, %v754
        %v758 = vadd.f32 %v719, %v754
        %v759 = vadd.f32 %v720, %v754
        %v760 = vadd.f32 %v721, %v754
        %v761 = vadd.f32 %v722, %v754
        %v762 = vadd.f32 %v723, %v754
        %v763 = vadd.f32 %v724, %v754
        %v764 = vadd.f32 %v725, %v754
        %v765 = vadd.f32 %v726, %v754
        %v766 = vadd.f32 %v727, %v754
        %v767 = vadd.f32 %v728, %v754
        %v768 = vadd.f32 %v729, %v754
        %v769 = vadd.f32 %v730, %v754
        %v770 = vadd.f32 %v731, %v754
        %v771 = vadd.f32 %v732, %v754
        %v772 = vadd.f32 %v733, %v754
        %v773 = vadd.f32 %v734, %v754
        %v774 = vadd.f32 %v735, %v754
        %v775 = vadd.f32 %v736, %v754
        %v776 = vadd.f32 %v737, %v754
        %v777 = vadd.f32 %v738, %v754
        %v778 = vadd.f32 %v739, %v754
        %v779 = vadd.f32 %v740, %v754
        %v780 = vadd.f32 %v741, %v754
        %v781 = vadd.f32 %v742, %v754
        %v782 = vadd.f32 %v743, %v754
        %v783 = vadd.f32 %v744, %v754
        %v784 = vadd.f32 %v745, %v754
        %v785 = vadd.f32 %v746, %v754
        %v786 = vadd.f32 %v747, %v754
        %v787 = vadd.f32 %v748, %v754
        %v788 = vmax.f32 %v756, 0.0
        %v789 = vmax.f32 %v757, 0.0
        %v790 = vmax.f32 %v758, 0.0
        %v791 = vmax.f32 %v759, 0.0
        %v792 = vmax.f32 %v760, 0.0
        %v793 = vmax.f32 %v761, 0.0
        %v794 = vmax.f32 %v762, 0.0
        %v795 = vmax.f32 %v763, 0.0
        %v796 = vmax.f32 %v764, 0.0
        %v797 = vmax.f32 %v765, 0.0
        %v798 = vmax.f32 %v766, 0.0
        %v799 = vmax.f32 %v767, 0.0
        %v800 = vmax.f32 %v768, 0.0
        %v801 = vmax.f32 %v769, 0.0
        %v802 = vmax.f32 %v770, 0.0
        %v803 = vmax.f32 %v771, 0.0
        %v804 = vmax.f32 %v772, 0.0
        %v805 = vmax.f32 %v773, 0.0
        %v806 = vmax.f32 %v774, 0.0
        %v807 = vmax.f32 %v775, 0.0
        %v808 = vmax.f32 %v776, 0.0
        %v809 = vmax.f32 %v777, 0.0
        %v810 = vmax.f32 %v778, 0.0
        %v811 = vmax.f32 %v779, 0.0
        %v812 = vmax.f32 %v780, 0.0
        %v813 = vmax.f32 %v781, 0.0
        %v814 = vmax.f32 %v782, 0.0
        %v815 = vmax.f32 %v783, 0.0
        %v816 = vmax.f32 %v784, 0.0
        %v817 = vmax.f32 %v785, 0.0
        %v818 = vmax.f32 %v786, 0.0
        %v819 = vmax.f32 %v787, 0.0
        %vm820 = vcmask 257024
        %821 = vst.msk [vmem:[#allocation2] sm:$0xf] %vm820, 0
        %822 = vst.msk [vmem:[#allocation2 + $0x4] sm:$0xf] %vm820, 0
        %823 = vst.msk [vmem:[#allocation2 + $0x8] sm:$0xf] %vm820, 0
        %824 = vst.msk [vmem:[#allocation2 + $0xc] sm:$0xf] %vm820, 0
        %825 = vst.msk [vmem:[#allocation2 + $0x10] sm:$0xf] %vm820, 0
        %826 = vst.msk [vmem:[#allocation2 + $0x14] sm:$0xf] %vm820, 0
        %s827 = scalar_lea.vmem [#allocation2], 408
        %828 = vst.msk [vmem:[%s827] sm:$0xf] %vm820, 0
        %829 = vst.msk [vmem:[%s827 + $0x4] sm:$0xf] %vm820, 0
        %830 = vst.msk [vmem:[%s827 + $0x8] sm:$0xf] %vm820, 0
        %831 = vst.msk [vmem:[%s827 + $0xc] sm:$0xf] %vm820, 0
        %832 = vst.msk [vmem:[%s827 + $0x10] sm:$0xf] %vm820, 0
        %833 = vst.msk [vmem:[%s827 + $0x14] sm:$0xf] %vm820, 0
        %834 = vst.msk [vmem:[#allocation2] sm:$0xf] %vm820, 0
        %835 = vst.msk [vmem:[#allocation2 + $0x4] sm:$0xf] %vm820, 0
        %836 = vst.msk [vmem:[#allocation2 + $0x18] sm:$0xf] %vm820, 0
        %837 = vst.msk [vmem:[#allocation2 + $0x1c] sm:$0xf] %vm820, 0
        %838 = vst.msk [vmem:[#allocation2 + $0x30] sm:$0xf] %vm820, 0
        %839 = vst.msk [vmem:[#allocation2 + $0x34] sm:$0xf] %vm820, 0
        %840 = vst.msk [vmem:[#allocation2 + $0x48] sm:$0xf] %vm820, 0
        %841 = vst.msk [vmem:[#allocation2 + $0x4c] sm:$0xf] %vm820, 0
        %842 = vst.msk [vmem:[#allocation2 + $0x60] sm:$0xf] %vm820, 0
        %843 = vst.msk [vmem:[#allocation2 + $0x64] sm:$0xf] %vm820, 0
        %844 = vst.msk [vmem:[#allocation2 + $0x78] sm:$0xf] %vm820, 0
        %845 = vst.msk [vmem:[#allocation2 + $0x7c] sm:$0xf] %vm820, 0
        %846 = vst.msk [vmem:[#allocation2 + $0x90] sm:$0xf] %vm820, 0
        %847 = vst.msk [vmem:[#allocation2 + $0x94] sm:$0xf] %vm820, 0
        %848 = vst.msk [vmem:[#allocation2 + $0xa8] sm:$0xf] %vm820, 0
        %849 = vst.msk [vmem:[#allocation2 + $0xac] sm:$0xf] %vm820, 0
        %850 = vst.msk [vmem:[#allocation2 + $0xc0] sm:$0xf] %vm820, 0
        %851 = vst.msk [vmem:[#allocation2 + $0xc4] sm:$0xf] %vm820, 0
        %852 = vst.msk [vmem:[#allocation2 + $0xd8] sm:$0xf] %vm820, 0
        %853 = vst.msk [vmem:[#allocation2 + $0xdc] sm:$0xf] %vm820, 0
        %854 = vst.msk [vmem:[#allocation2 + $0xf0] sm:$0xf] %vm820, 0
        %855 = vst.msk [vmem:[#allocation2 + $0xf4] sm:$0xf] %vm820, 0
        %856 = vst.msk [vmem:[#allocation2 + $0x108] sm:$0xf] %vm820, 0
        %857 = vst.msk [vmem:[#allocation2 + $0x10c] sm:$0xf] %vm820, 0
        %858 = vst.msk [vmem:[#allocation2 + $0x120] sm:$0xf] %vm820, 0
        %859 = vst.msk [vmem:[#allocation2 + $0x124] sm:$0xf] %vm820, 0
        %860 = vst.msk [vmem:[#allocation2 + $0x138] sm:$0xf] %vm820, 0
        %861 = vst.msk [vmem:[#allocation2 + $0x13c] sm:$0xf] %vm820, 0
        %862 = vst.msk [vmem:[#allocation2 + $0x150] sm:$0xf] %vm820, 0
        %863 = vst.msk [vmem:[#allocation2 + $0x154] sm:$0xf] %vm820, 0
        %864 = vst.msk [vmem:[#allocation2 + $0x168] sm:$0xf] %vm820, 0
        %865 = vst.msk [vmem:[#allocation2 + $0x16c] sm:$0xf] %vm820, 0
        %866 = vst.msk [vmem:[#allocation2 + $0x180] sm:$0xf] %vm820, 0
        %867 = vst.msk [vmem:[#allocation2 + $0x184] sm:$0xf] %vm820, 0
        %868 = vst.msk [vmem:[#allocation2 + $0x198] sm:$0xf] %vm820, 0
        %869 = vst.msk [vmem:[#allocation2 + $0x19c] sm:$0xf] %vm820, 0
        %870 = vst.msk [vmem:[#allocation2 + $0x10] sm:$0xf] %vm820, 0
        %871 = vst.msk [vmem:[#allocation2 + $0x14] sm:$0xf] %vm820, 0
        %872 = vst.msk [vmem:[#allocation2 + $0x28] sm:$0xf] %vm820, 0
        %873 = vst.msk [vmem:[#allocation2 + $0x2c] sm:$0xf] %vm820, 0
        %874 = vst.msk [vmem:[#allocation2 + $0x40] sm:$0xf] %vm820, 0
        %875 = vst.msk [vmem:[#allocation2 + $0x44] sm:$0xf] %vm820, 0
        %876 = vst.msk [vmem:[#allocation2 + $0x58] sm:$0xf] %vm820, 0
        %877 = vst.msk [vmem:[#allocation2 + $0x5c] sm:$0xf] %vm820, 0
        %878 = vst.msk [vmem:[#allocation2 + $0x70] sm:$0xf] %vm820, 0
        %879 = vst.msk [vmem:[#allocation2 + $0x74] sm:$0xf] %vm820, 0
        %880 = vst.msk [vmem:[#allocation2 + $0x88] sm:$0xf] %vm820, 0
        %881 = vst.msk [vmem:[#allocation2 + $0x8c] sm:$0xf] %vm820, 0
        %882 = vst.msk [vmem:[#allocation2 + $0xa0] sm:$0xf] %vm820, 0
        %883 = vst.msk [vmem:[#allocation2 + $0xa4] sm:$0xf] %vm820, 0
        %884 = vst.msk [vmem:[#allocation2 + $0xb8] sm:$0xf] %vm820, 0
        %885 = vst.msk [vmem:[#allocation2 + $0xbc] sm:$0xf] %vm820, 0
        %886 = vst.msk [vmem:[#allocation2 + $0xd0] sm:$0xf] %vm820, 0
        %887 = vst.msk [vmem:[#allocation2 + $0xd4] sm:$0xf] %vm820, 0
        %888 = vst.msk [vmem:[#allocation2 + $0xe8] sm:$0xf] %vm820, 0
        %889 = vst.msk [vmem:[#allocation2 + $0xec] sm:$0xf] %vm820, 0
        %890 = vst.msk [vmem:[#allocation2 + $0x100] sm:$0xf] %vm820, 0
        %891 = vst.msk [vmem:[#allocation2 + $0x104] sm:$0xf] %vm820, 0
        %892 = vst.msk [vmem:[#allocation2 + $0x118] sm:$0xf] %vm820, 0
        %893 = vst.msk [vmem:[#allocation2 + $0x11c] sm:$0xf] %vm820, 0
        %894 = vst.msk [vmem:[#allocation2 + $0x130] sm:$0xf] %vm820, 0
        %895 = vst.msk [vmem:[#allocation2 + $0x134] sm:$0xf] %vm820, 0
        %896 = vst.msk [vmem:[#allocation2 + $0x148] sm:$0xf] %vm820, 0
        %897 = vst.msk [vmem:[#allocation2 + $0x14c] sm:$0xf] %vm820, 0
        %898 = vst.msk [vmem:[#allocation2 + $0x160] sm:$0xf] %vm820, 0
        %899 = vst.msk [vmem:[#allocation2 + $0x164] sm:$0xf] %vm820, 0
        %900 = vst.msk [vmem:[#allocation2 + $0x178] sm:$0xf] %vm820, 0
        %901 = vst.msk [vmem:[#allocation2 + $0x17c] sm:$0xf] %vm820, 0
        %902 = vst.msk [vmem:[#allocation2 + $0x190] sm:$0xf] %vm820, 0
        %903 = vst.msk [vmem:[#allocation2 + $0x194] sm:$0xf] %vm820, 0
        %904 = vst.msk [vmem:[#allocation2 + $0x1a8] sm:$0xf] %vm820, 0
        %905 = vst.msk [vmem:[#allocation2 + $0x1ac] sm:$0xf] %vm820, 0
        %v906 = vpack.c.bf16 %v789, %v788
        %v907 = vpack.c.bf16 %v791, %v790
        %v908 = vpack.c.bf16 %v793, %v792
        %v909 = vpack.c.bf16 %v795, %v794
        %v910 = vpack.c.bf16 %v797, %v796
        %v911 = vpack.c.bf16 %v799, %v798
        %v912 = vpack.c.bf16 %v801, %v800
        %v913 = vpack.c.bf16 %v803, %v802
        %v914 = vpack.c.bf16 %v805, %v804
        %v915 = vpack.c.bf16 %v807, %v806
        %v916 = vpack.c.bf16 %v809, %v808
        %v917 = vpack.c.bf16 %v811, %v810
        %v918 = vpack.c.bf16 %v813, %v812
        %v919 = vpack.c.bf16 %v815, %v814
        %v920 = vpack.c.bf16 %v817, %v816
        %v921 = vpack.c.bf16 %v819, %v818
        %v938 = vunpack.c.l.b16 %v906
        %v939 = vunpack.c.h.b16 %v906
        %v940 = vunpack.c.l.b16 %v907
        %v941 = vunpack.c.h.b16 %v907
        %v942 = vunpack.c.l.b16 %v908
        %v943 = vunpack.c.h.b16 %v908
        %v944 = vunpack.c.l.b16 %v909
        %v945 = vunpack.c.h.b16 %v909
        %v946 = vunpack.c.l.b16 %v910
        %v947 = vunpack.c.h.b16 %v910
        %v948 = vunpack.c.l.b16 %v911
        %v949 = vunpack.c.h.b16 %v911
        %v950 = vunpack.c.l.b16 %v912
        %v951 = vunpack.c.h.b16 %v912
        %v952 = vunpack.c.l.b16 %v913
        %v953 = vunpack.c.h.b16 %v913
        %v954 = vunpack.c.l.b16 %v914
        %v955 = vunpack.c.h.b16 %v914
        %v956 = vunpack.c.l.b16 %v915
        %v957 = vunpack.c.h.b16 %v915
        %v958 = vunpack.c.l.b16 %v916
        %v959 = vunpack.c.h.b16 %v916
        %v960 = vunpack.c.l.b16 %v917
        %v961 = vunpack.c.h.b16 %v917
        %v962 = vunpack.c.l.b16 %v918
        %v963 = vunpack.c.h.b16 %v918
        %v964 = vunpack.c.l.b16 %v919
        %v965 = vunpack.c.h.b16 %v919
        %v966 = vunpack.c.l.b16 %v920
        %v967 = vunpack.c.h.b16 %v920
        %v968 = vunpack.c.l.b16 %v921
        %v969 = vunpack.c.h.b16 %v921
        %v970 = vpack.c.b16 %v938, %v938
        %v971 = vpack.c.b16 %v939, %v939
        %v972 = vpack.c.b16 %v940, %v940
        %v973 = vpack.c.b16 %v941, %v941
        %v974 = vpack.c.b16 %v942, %v942
        %v975 = vpack.c.b16 %v943, %v943
        %v976 = vpack.c.b16 %v944, %v944
        %v977 = vpack.c.b16 %v945, %v945
        %v978 = vpack.c.b16 %v946, %v946
        %v979 = vpack.c.b16 %v947, %v947
        %v980 = vpack.c.b16 %v948, %v948
        %v981 = vpack.c.b16 %v949, %v949
        %v982 = vpack.c.b16 %v950, %v950
        %v983 = vpack.c.b16 %v951, %v951
        %v984 = vpack.c.b16 %v952, %v952
        %v985 = vpack.c.b16 %v953, %v953
        %v986 = vpack.c.b16 %v954, %v954
        %v987 = vpack.c.b16 %v955, %v955
        %v988 = vpack.c.b16 %v956, %v956
        %v989 = vpack.c.b16 %v957, %v957
        %v990 = vpack.c.b16 %v958, %v958
        %v991 = vpack.c.b16 %v959, %v959
        %v992 = vpack.c.b16 %v960, %v960
        %v993 = vpack.c.b16 %v961, %v961
        %v994 = vpack.c.b16 %v962, %v962
        %v995 = vpack.c.b16 %v963, %v963
        %v996 = vpack.c.b16 %v964, %v964
        %v997 = vpack.c.b16 %v965, %v965
        %v998 = vpack.c.b16 %v966, %v966
        %v999 = vpack.c.b16 %v967, %v967
        %v1000 = vpack.c.b16 %v968, %v968
        %v1001 = vpack.c.b16 %v969, %v969
        %s1034 = scalar_lea.vmem [#allocation2], 24
        %1035 = vst.msk [vmem:[%s1034 + $0x8] sm:$0xf] %vm820, %v970
        %1036 = vst.msk [vmem:[%s1034 + $0xc] sm:$0xf] %vm820, %v971
        %1037 = vst.msk [vmem:[%s1034 + $0x20] sm:$0xf] %vm820, %v972
        %1038 = vst.msk [vmem:[%s1034 + $0x24] sm:$0xf] %vm820, %v973
        %1039 = vst.msk [vmem:[%s1034 + $0x38] sm:$0xf] %vm820, %v974
        %1040 = vst.msk [vmem:[%s1034 + $0x3c] sm:$0xf] %vm820, %v975
        %1041 = vst.msk [vmem:[%s1034 + $0x50] sm:$0xf] %vm820, %v976
        %1042 = vst.msk [vmem:[%s1034 + $0x54] sm:$0xf] %vm820, %v977
        %1043 = vst.msk [vmem:[%s1034 + $0x68] sm:$0xf] %vm820, %v978
        %1044 = vst.msk [vmem:[%s1034 + $0x6c] sm:$0xf] %vm820, %v979
        %1045 = vst.msk [vmem:[%s1034 + $0x80] sm:$0xf] %vm820, %v980
        %1046 = vst.msk [vmem:[%s1034 + $0x84] sm:$0xf] %vm820, %v981
        %1047 = vst.msk [vmem:[%s1034 + $0x98] sm:$0xf] %vm820, %v982
        %1048 = vst.msk [vmem:[%s1034 + $0x9c] sm:$0xf] %vm820, %v983
        %1049 = vst.msk [vmem:[%s1034 + $0xb0] sm:$0xf] %vm820, %v984
        %1050 = vst.msk [vmem:[%s1034 + $0xb4] sm:$0xf] %vm820, %v985
        %1051 = vst.msk [vmem:[%s1034 + $0xc8] sm:$0xf] %vm820, %v986
        %1052 = vst.msk [vmem:[%s1034 + $0xcc] sm:$0xf] %vm820, %v987
        %1053 = vst.msk [vmem:[%s1034 + $0xe0] sm:$0xf] %vm820, %v988
        %1054 = vst.msk [vmem:[%s1034 + $0xe4] sm:$0xf] %vm820, %v989
        %1055 = vst.msk [vmem:[%s1034 + $0xf8] sm:$0xf] %vm820, %v990
        %1056 = vst.msk [vmem:[%s1034 + $0xfc] sm:$0xf] %vm820, %v991
        %1057 = vst.msk [vmem:[%s1034 + $0x110] sm:$0xf] %vm820, %v992
        %1058 = vst.msk [vmem:[%s1034 + $0x114] sm:$0xf] %vm820, %v993
        %1059 = vst.msk [vmem:[%s1034 + $0x128] sm:$0xf] %vm820, %v994
        %1060 = vst.msk [vmem:[%s1034 + $0x12c] sm:$0xf] %vm820, %v995
        %1061 = vst.msk [vmem:[%s1034 + $0x140] sm:$0xf] %vm820, %v996
        %1062 = vst.msk [vmem:[%s1034 + $0x144] sm:$0xf] %vm820, %v997
        %1063 = vst.msk [vmem:[%s1034 + $0x158] sm:$0xf] %vm820, %v998
        %1064 = vst.msk [vmem:[%s1034 + $0x15c] sm:$0xf] %vm820, %v999
        %1065 = vst.msk [vmem:[%s1034 + $0x170] sm:$0xf] %vm820, %v1000
        %1066 = vst.msk [vmem:[%s1034 + $0x174] sm:$0xf] %vm820, %v1001
        %v1067 = vld [vmem:[#allocation2 + $0x4] sm:$0x8]
        %v1068 = vld [vmem:[#allocation2 + $0x8] sm:$0xf]
        %v1069 = vld [vmem:[#allocation2 + $0xc] sm:$0xf]
        %v1070 = vld [vmem:[#allocation2 + $0x1c] sm:$0x8]
        %v1071 = vld [vmem:[#allocation2 + $0x20] sm:$0xf]
        %v1072 = vld [vmem:[#allocation2 + $0x24] sm:$0xf]
        %v1073 = vld [vmem:[#allocation2 + $0x34] sm:$0x8]
        %v1074 = vld [vmem:[#allocation2 + $0x38] sm:$0xf]
        %v1075 = vld [vmem:[#allocation2 + $0x3c] sm:$0xf]
        %v1076 = vld [vmem:[#allocation2 + $0x4c] sm:$0x8]
        %v1077 = vld [vmem:[#allocation2 + $0x50] sm:$0xf]
        %v1078 = vld [vmem:[#allocation2 + $0x54] sm:$0xf]
        %v1079 = vld [vmem:[#allocation2 + $0x64] sm:$0x8]
        %v1080 = vld [vmem:[#allocation2 + $0x68] sm:$0xf]
        %v1081 = vld [vmem:[#allocation2 + $0x6c] sm:$0xf]
        %v1082 = vld [vmem:[#allocation2 + $0x7c] sm:$0x8]
        %v1083 = vld [vmem:[#allocation2 + $0x80] sm:$0xf]
        %v1084 = vld [vmem:[#allocation2 + $0x84] sm:$0xf]
        %v1085 = vld [vmem:[#allocation2 + $0x94] sm:$0x8]
        %v1086 = vld [vmem:[#allocation2 + $0x98] sm:$0xf]
        %v1087 = vld [vmem:[#allocation2 + $0x9c] sm:$0xf]
        %v1088 = vld [vmem:[#allocation2 + $0xac] sm:$0x8]
        %v1089 = vld [vmem:[#allocation2 + $0xb0] sm:$0xf]
        %v1090 = vld [vmem:[#allocation2 + $0xb4] sm:$0xf]
        %v1091 = vld [vmem:[#allocation2 + $0xc4] sm:$0x8]
        %v1092 = vld [vmem:[#allocation2 + $0xc8] sm:$0xf]
        %v1093 = vld [vmem:[#allocation2 + $0xcc] sm:$0xf]
        %v1094 = vld [vmem:[#allocation2 + $0xdc] sm:$0x8]
        %v1095 = vld [vmem:[#allocation2 + $0xe0] sm:$0xf]
        %v1096 = vld [vmem:[#allocation2 + $0xe4] sm:$0xf]
        %v1097 = vld [vmem:[#allocation2 + $0xf4] sm:$0x8]
        %v1098 = vld [vmem:[#allocation2 + $0xf8] sm:$0xf]
        %v1099 = vld [vmem:[#allocation2 + $0xfc] sm:$0xf]
        %v1100 = vld [vmem:[#allocation2 + $0x10c] sm:$0x8]
        %v1101 = vld [vmem:[#allocation2 + $0x110] sm:$0xf]
        %v1102 = vld [vmem:[#allocation2 + $0x114] sm:$0xf]
        %v1103 = vld [vmem:[#allocation2 + $0x124] sm:$0x8]
        %v1104 = vld [vmem:[#allocation2 + $0x128] sm:$0xf]
        %v1105 = vld [vmem:[#allocation2 + $0x12c] sm:$0xf]
        %v1106 = vld [vmem:[#allocation2 + $0x13c] sm:$0x8]
        %v1107 = vld [vmem:[#allocation2 + $0x140] sm:$0xf]
        %v1108 = vld [vmem:[#allocation2 + $0x144] sm:$0xf]
        %v1109 = vld [vmem:[#allocation2 + $0x154] sm:$0x8]
        %v1110 = vld [vmem:[#allocation2 + $0x158] sm:$0xf]
        %v1111 = vld [vmem:[#allocation2 + $0x15c] sm:$0xf]
        %v1112 = vld [vmem:[#allocation2 + $0x16c] sm:$0x8]
        %v1113 = vld [vmem:[#allocation2 + $0x170] sm:$0xf]
        %v1114 = vld [vmem:[#allocation2 + $0x174] sm:$0xf]
        %vm1115 = vsmask.f32 256
        %vm1116 = vsmask.f32 4368
        %vm1117 = vmor %vm1115, %vm1116
        %v1119 = vshrl.u32 %v1067, 16
        %v1121 = vrot.slane %v1119, 7
        %v1122 = vrot.slane %v1121, 4
        %v1124 = vshrl.u32 %v1068, 16
        %v1126 = vrot.slane %v1124, 7
        %v1127 = vshll.u32 %v1068, 16
        %v1129 = vor.u32 %v1126, %v1127
        %v1130 = vsel %vm1117, %v1122, %v1129
        %v1131 = vrot.slane %v1126, 4
        %v1133 = vshrl.u32 %v1069, 16
        %v1135 = vrot.slane %v1133, 7
        %v1136 = vshll.u32 %v1069, 16
        %v1138 = vor.u32 %v1135, %v1136
        %v1139 = vsel %vm1117, %v1131, %v1138
        %v1141 = vshrl.u32 %v1070, 16
        %v1143 = vrot.slane %v1141, 7
        %v1144 = vrot.slane %v1143, 4
        %v1146 = vshrl.u32 %v1071, 16
        %v1148 = vrot.slane %v1146, 7
        %v1149 = vshll.u32 %v1071, 16
        %v1151 = vor.u32 %v1148, %v1149
        %v1152 = vsel %vm1117, %v1144, %v1151
        %v1153 = vrot.slane %v1148, 4
        %v1155 = vshrl.u32 %v1072, 16
        %v1157 = vrot.slane %v1155, 7
        %v1158 = vshll.u32 %v1072, 16
        %v1160 = vor.u32 %v1157, %v1158
        %v1161 = vsel %vm1117, %v1153, %v1160
        %v1163 = vshrl.u32 %v1073, 16
        %v1165 = vrot.slane %v1163, 7
        %v1166 = vrot.slane %v1165, 4
        %v1168 = vshrl.u32 %v1074, 16
        %v1170 = vrot.slane %v1168, 7
        %v1171 = vshll.u32 %v1074, 16
        %v1173 = vor.u32 %v1170, %v1171
        %v1174 = vsel %vm1117, %v1166, %v1173
        %v1175 = vrot.slane %v1170, 4
        %v1177 = vshrl.u32 %v1075, 16
        %v1179 = vrot.slane %v1177, 7
        %v1180 = vshll.u32 %v1075, 16
        %v1182 = vor.u32 %v1179, %v1180
        %v1183 = vsel %vm1117, %v1175, %v1182
        %v1185 = vshrl.u32 %v1076, 16
        %v1187 = vrot.slane %v1185, 7
        %v1188 = vrot.slane %v1187, 4
        %v1190 = vshrl.u32 %v1077, 16
        %v1192 = vrot.slane %v1190, 7
        %v1193 = vshll.u32 %v1077, 16
        %v1195 = vor.u32 %v1192, %v1193
        %v1196 = vsel %vm1117, %v1188, %v1195
        %v1197 = vrot.slane %v1192, 4
        %v1199 = vshrl.u32 %v1078, 16
        %v1201 = vrot.slane %v1199, 7
        %v1202 = vshll.u32 %v1078, 16
        %v1204 = vor.u32 %v1201, %v1202
        %v1205 = vsel %vm1117, %v1197, %v1204
        %v1207 = vshrl.u32 %v1079, 16
        %v1209 = vrot.slane %v1207, 7
        %v1210 = vrot.slane %v1209, 4
        %v1212 = vshrl.u32 %v1080, 16
        %v1214 = vrot.slane %v1212, 7
        %v1215 = vshll.u32 %v1080, 16
        %v1217 = vor.u32 %v1214, %v1215
        %v1218 = vsel %vm1117, %v1210, %v1217
        %v1219 = vrot.slane %v1214, 4
        %v1221 = vshrl.u32 %v1081, 16
        %v1223 = vrot.slane %v1221, 7
        %v1224 = vshll.u32 %v1081, 16
        %v1226 = vor.u32 %v1223, %v1224
        %v1227 = vsel %vm1117, %v1219, %v1226
        %v1229 = vshrl.u32 %v1082, 16
        %v1231 = vrot.slane %v1229, 7
        %v1232 = vrot.slane %v1231, 4
        %v1234 = vshrl.u32 %v1083, 16
        %v1236 = vrot.slane %v1234, 7
        %v1237 = vshll.u32 %v1083, 16
        %v1239 = vor.u32 %v1236, %v1237
        %v1240 = vsel %vm1117, %v1232, %v1239
        %v1241 = vrot.slane %v1236, 4
        %v1243 = vshrl.u32 %v1084, 16
        %v1245 = vrot.slane %v1243, 7
        %v1246 = vshll.u32 %v1084, 16
        %v1248 = vor.u32 %v1245, %v1246
        %v1249 = vsel %vm1117, %v1241, %v1248
        %v1251 = vshrl.u32 %v1085, 16
        %v1253 = vrot.slane %v1251, 7
        %v1254 = vrot.slane %v1253, 4
        %v1256 = vshrl.u32 %v1086, 16
        %v1258 = vrot.slane %v1256, 7
        %v1259 = vshll.u32 %v1086, 16
        %v1261 = vor.u32 %v1258, %v1259
        %v1262 = vsel %vm1117, %v1254, %v1261
        %v1263 = vrot.slane %v1258, 4
        %v1265 = vshrl.u32 %v1087, 16
        %v1267 = vrot.slane %v1265, 7
        %v1268 = vshll.u32 %v1087, 16
        %v1270 = vor.u32 %v1267, %v1268
        %v1271 = vsel %vm1117, %v1263, %v1270
        %v1273 = vshrl.u32 %v1088, 16
        %v1275 = vrot.slane %v1273, 7
        %v1276 = vrot.slane %v1275, 4
        %v1278 = vshrl.u32 %v1089, 16
        %v1280 = vrot.slane %v1278, 7
        %v1281 = vshll.u32 %v1089, 16
        %v1283 = vor.u32 %v1280, %v1281
        %v1284 = vsel %vm1117, %v1276, %v1283
        %v1285 = vrot.slane %v1280, 4
        %v1287 = vshrl.u32 %v1090, 16
        %v1289 = vrot.slane %v1287, 7
        %v1290 = vshll.u32 %v1090, 16
        %v1292 = vor.u32 %v1289, %v1290
        %v1293 = vsel %vm1117, %v1285, %v1292
        %v1295 = vshrl.u32 %v1091, 16
        %v1297 = vrot.slane %v1295, 7
        %v1298 = vrot.slane %v1297, 4
        %v1300 = vshrl.u32 %v1092, 16
        %v1302 = vrot.slane %v1300, 7
        %v1303 = vshll.u32 %v1092, 16
        %v1305 = vor.u32 %v1302, %v1303
        %v1306 = vsel %vm1117, %v1298, %v1305
        %v1307 = vrot.slane %v1302, 4
        %v1309 = vshrl.u32 %v1093, 16
        %v1311 = vrot.slane %v1309, 7
        %v1312 = vshll.u32 %v1093, 16
        %v1314 = vor.u32 %v1311, %v1312
        %v1315 = vsel %vm1117, %v1307, %v1314
        %v1317 = vshrl.u32 %v1094, 16
        %v1319 = vrot.slane %v1317, 7
        %v1320 = vrot.slane %v1319, 4
        %v1322 = vshrl.u32 %v1095, 16
        %v1324 = vrot.slane %v1322, 7
        %v1325 = vshll.u32 %v1095, 16
        %v1327 = vor.u32 %v1324, %v1325
        %v1328 = vsel %vm1117, %v1320, %v1327
        %v1329 = vrot.slane %v1324, 4
        %v1331 = vshrl.u32 %v1096, 16
        %v1333 = vrot.slane %v1331, 7
        %v1334 = vshll.u32 %v1096, 16
        %v1336 = vor.u32 %v1333, %v1334
        %v1337 = vsel %vm1117, %v1329, %v1336
        %v1339 = vshrl.u32 %v1097, 16
        %v1341 = vrot.slane %v1339, 7
        %v1342 = vrot.slane %v1341, 4
        %v1344 = vshrl.u32 %v1098, 16
        %v1346 = vrot.slane %v1344, 7
        %v1347 = vshll.u32 %v1098, 16
        %v1349 = vor.u32 %v1346, %v1347
        %v1350 = vsel %vm1117, %v1342, %v1349
        %v1351 = vrot.slane %v1346, 4
        %v1353 = vshrl.u32 %v1099, 16
        %v1355 = vrot.slane %v1353, 7
        %v1356 = vshll.u32 %v1099, 16
        %v1358 = vor.u32 %v1355, %v1356
        %v1359 = vsel %vm1117, %v1351, %v1358
        %v1361 = vshrl.u32 %v1100, 16
        %v1363 = vrot.slane %v1361, 7
        %v1364 = vrot.slane %v1363, 4
        %v1366 = vshrl.u32 %v1101, 16
        %v1368 = vrot.slane %v1366, 7
        %v1369 = vshll.u32 %v1101, 16
        %v1371 = vor.u32 %v1368, %v1369
        %v1372 = vsel %vm1117, %v1364, %v1371
        %v1373 = vrot.slane %v1368, 4
        %v1375 = vshrl.u32 %v1102, 16
        %v1377 = vrot.slane %v1375, 7
        %v1378 = vshll.u32 %v1102, 16
        %v1380 = vor.u32 %v1377, %v1378
        %v1381 = vsel %vm1117, %v1373, %v1380
        %v1383 = vshrl.u32 %v1103, 16
        %v1385 = vrot.slane %v1383, 7
        %v1386 = vrot.slane %v1385, 4
        %v1388 = vshrl.u32 %v1104, 16
        %v1390 = vrot.slane %v1388, 7
        %v1391 = vshll.u32 %v1104, 16
        %v1393 = vor.u32 %v1390, %v1391
        %v1394 = vsel %vm1117, %v1386, %v1393
        %v1395 = vrot.slane %v1390, 4
        %v1397 = vshrl.u32 %v1105, 16
        %v1399 = vrot.slane %v1397, 7
        %v1400 = vshll.u32 %v1105, 16
        %v1402 = vor.u32 %v1399, %v1400
        %v1403 = vsel %vm1117, %v1395, %v1402
        %v1405 = vshrl.u32 %v1106, 16
        %v1407 = vrot.slane %v1405, 7
        %v1408 = vrot.slane %v1407, 4
        %v1410 = vshrl.u32 %v1107, 16
        %v1412 = vrot.slane %v1410, 7
        %v1413 = vshll.u32 %v1107, 16
        %v1415 = vor.u32 %v1412, %v1413
        %v1416 = vsel %vm1117, %v1408, %v1415
        %v1417 = vrot.slane %v1412, 4
        %v1419 = vshrl.u32 %v1108, 16
        %v1421 = vrot.slane %v1419, 7
        %v1422 = vshll.u32 %v1108, 16
        %v1424 = vor.u32 %v1421, %v1422
        %v1425 = vsel %vm1117, %v1417, %v1424
        %v1427 = vshrl.u32 %v1109, 16
        %v1429 = vrot.slane %v1427, 7
        %v1430 = vrot.slane %v1429, 4
        %v1432 = vshrl.u32 %v1110, 16
        %v1434 = vrot.slane %v1432, 7
        %v1435 = vshll.u32 %v1110, 16
        %v1437 = vor.u32 %v1434, %v1435
        %v1438 = vsel %vm1117, %v1430, %v1437
        %v1439 = vrot.slane %v1434, 4
        %v1441 = vshrl.u32 %v1111, 16
        %v1443 = vrot.slane %v1441, 7
        %v1444 = vshll.u32 %v1111, 16
        %v1446 = vor.u32 %v1443, %v1444
        %v1447 = vsel %vm1117, %v1439, %v1446
        %v1449 = vshrl.u32 %v1112, 16
        %v1451 = vrot.slane %v1449, 7
        %v1452 = vrot.slane %v1451, 4
        %v1454 = vshrl.u32 %v1113, 16
        %v1456 = vrot.slane %v1454, 7
        %v1457 = vshll.u32 %v1113, 16
        %v1459 = vor.u32 %v1456, %v1457
        %v1460 = vsel %vm1117, %v1452, %v1459
        %v1461 = vrot.slane %v1456, 4
        %v1463 = vshrl.u32 %v1114, 16
        %v1465 = vrot.slane %v1463, 7
        %v1466 = vshll.u32 %v1114, 16
        %v1468 = vor.u32 %v1465, %v1466
        %v1469 = vsel %vm1117, %v1461, %v1468
        %1502 = vst.msk [vmem:[#allocation3] sm:$0xf] %vm820, %v1130
        %1503 = vst.msk [vmem:[#allocation3 + $0xc] sm:$0xf] %vm820, %v1139
        %1504 = vst.msk [vmem:[#allocation3 + $0x18] sm:$0xf] %vm820, %v1152
        %1505 = vst.msk [vmem:[#allocation3 + $0x24] sm:$0xf] %vm820, %v1161
        %1506 = vst.msk [vmem:[#allocation3 + $0x30] sm:$0xf] %vm820, %v1174
        %1507 = vst.msk [vmem:[#allocation3 + $0x3c] sm:$0xf] %vm820, %v1183
        %1508 = vst.msk [vmem:[#allocation3 + $0x48] sm:$0xf] %vm820, %v1196
        %1509 = vst.msk [vmem:[#allocation3 + $0x54] sm:$0xf] %vm820, %v1205
        %1510 = vst.msk [vmem:[#allocation3 + $0x60] sm:$0xf] %vm820, %v1218
        %1511 = vst.msk [vmem:[#allocation3 + $0x6c] sm:$0xf] %vm820, %v1227
        %1512 = vst.msk [vmem:[#allocation3 + $0x78] sm:$0xf] %vm820, %v1240
        %1513 = vst.msk [vmem:[#allocation3 + $0x84] sm:$0xf] %vm820, %v1249
        %1514 = vst.msk [vmem:[#allocation3 + $0x90] sm:$0xf] %vm820, %v1262
        %1515 = vst.msk [vmem:[#allocation3 + $0x9c] sm:$0xf] %vm820, %v1271
        %1516 = vst.msk [vmem:[#allocation3 + $0xa8] sm:$0xf] %vm820, %v1284
        %1517 = vst.msk [vmem:[#allocation3 + $0xb4] sm:$0xf] %vm820, %v1293
        %1518 = vst.msk [vmem:[#allocation3 + $0xc0] sm:$0xf] %vm820, %v1306
        %1519 = vst.msk [vmem:[#allocation3 + $0xcc] sm:$0xf] %vm820, %v1315
        %1520 = vst.msk [vmem:[#allocation3 + $0xd8] sm:$0xf] %vm820, %v1328
        %1521 = vst.msk [vmem:[#allocation3 + $0xe4] sm:$0xf] %vm820, %v1337
        %1522 = vst.msk [vmem:[#allocation3 + $0xf0] sm:$0xf] %vm820, %v1350
        %1523 = vst.msk [vmem:[#allocation3 + $0xfc] sm:$0xf] %vm820, %v1359
        %1524 = vst.msk [vmem:[#allocation3 + $0x108] sm:$0xf] %vm820, %v1372
        %1525 = vst.msk [vmem:[#allocation3 + $0x114] sm:$0xf] %vm820, %v1381
        %1526 = vst.msk [vmem:[#allocation3 + $0x120] sm:$0xf] %vm820, %v1394
        %1527 = vst.msk [vmem:[#allocation3 + $0x12c] sm:$0xf] %vm820, %v1403
        %1528 = vst.msk [vmem:[#allocation3 + $0x138] sm:$0xf] %vm820, %v1416
        %1529 = vst.msk [vmem:[#allocation3 + $0x144] sm:$0xf] %vm820, %v1425
        %1530 = vst.msk [vmem:[#allocation3 + $0x150] sm:$0xf] %vm820, %v1438
        %1531 = vst.msk [vmem:[#allocation3 + $0x15c] sm:$0xf] %vm820, %v1447
        %1532 = vst.msk [vmem:[#allocation3 + $0x168] sm:$0xf] %vm820, %v1460
        %1533 = vst.msk [vmem:[#allocation3 + $0x174] sm:$0xf] %vm820, %v1469
        %v1534 = vld [vmem:[#allocation2 + $0x8] sm:$0xf]
        %v1535 = vld [vmem:[#allocation2 + $0xc] sm:$0xf]
        %v1536 = vld [vmem:[#allocation2 + $0x20] sm:$0xf]
        %v1537 = vld [vmem:[#allocation2 + $0x24] sm:$0xf]
        %v1538 = vld [vmem:[#allocation2 + $0x38] sm:$0xf]
        %v1539 = vld [vmem:[#allocation2 + $0x3c] sm:$0xf]
        %v1540 = vld [vmem:[#allocation2 + $0x50] sm:$0xf]
        %v1541 = vld [vmem:[#allocation2 + $0x54] sm:$0xf]
        %v1542 = vld [vmem:[#allocation2 + $0x68] sm:$0xf]
        %v1543 = vld [vmem:[#allocation2 + $0x6c] sm:$0xf]
        %v1544 = vld [vmem:[#allocation2 + $0x80] sm:$0xf]
        %v1545 = vld [vmem:[#allocation2 + $0x84] sm:$0xf]
        %v1546 = vld [vmem:[#allocation2 + $0x98] sm:$0xf]
        %v1547 = vld [vmem:[#allocation2 + $0x9c] sm:$0xf]
        %v1548 = vld [vmem:[#allocation2 + $0xb0] sm:$0xf]
        %v1549 = vld [vmem:[#allocation2 + $0xb4] sm:$0xf]
        %v1550 = vld [vmem:[#allocation2 + $0xc8] sm:$0xf]
        %v1551 = vld [vmem:[#allocation2 + $0xcc] sm:$0xf]
        %v1552 = vld [vmem:[#allocation2 + $0xe0] sm:$0xf]
        %v1553 = vld [vmem:[#allocation2 + $0xe4] sm:$0xf]
        %v1554 = vld [vmem:[#allocation2 + $0xf8] sm:$0xf]
        %v1555 = vld [vmem:[#allocation2 + $0xfc] sm:$0xf]
        %v1556 = vld [vmem:[#allocation2 + $0x110] sm:$0xf]
        %v1557 = vld [vmem:[#allocation2 + $0x114] sm:$0xf]
        %v1558 = vld [vmem:[#allocation2 + $0x128] sm:$0xf]
        %v1559 = vld [vmem:[#allocation2 + $0x12c] sm:$0xf]
        %v1560 = vld [vmem:[#allocation2 + $0x140] sm:$0xf]
        %v1561 = vld [vmem:[#allocation2 + $0x144] sm:$0xf]
        %v1562 = vld [vmem:[#allocation2 + $0x158] sm:$0xf]
        %v1563 = vld [vmem:[#allocation2 + $0x15c] sm:$0xf]
        %v1564 = vld [vmem:[#allocation2 + $0x170] sm:$0xf]
        %v1565 = vld [vmem:[#allocation2 + $0x174] sm:$0xf]
        %1598 = vrot.lane.b32.xlu0 %v1534, 32
        %v1599 = vpop.permute.xlu0 %1598
        %1600 = vrot.lane.b32.xlu0 %v1535, 32
        %v1601 = vpop.permute.xlu0 %1600
        %1602 = vrot.lane.b32.xlu0 %v1536, 32
        %v1603 = vpop.permute.xlu0 %1602
        %1604 = vrot.lane.b32.xlu0 %v1537, 32
        %v1605 = vpop.permute.xlu0 %1604
        %1606 = vrot.lane.b32.xlu0 %v1538, 32
        %v1607 = vpop.permute.xlu0 %1606
        %1608 = vrot.lane.b32.xlu0 %v1539, 32
        %v1609 = vpop.permute.xlu0 %1608
        %1610 = vrot.lane.b32.xlu0 %v1540, 32
        %v1611 = vpop.permute.xlu0 %1610
        %1612 = vrot.lane.b32.xlu0 %v1541, 32
        %v1613 = vpop.permute.xlu0 %1612
        %1614 = vrot.lane.b32.xlu0 %v1542, 32
        %v1615 = vpop.permute.xlu0 %1614
        %1616 = vrot.lane.b32.xlu0 %v1543, 32
        %v1617 = vpop.permute.xlu0 %1616
        %1618 = vrot.lane.b32.xlu0 %v1544, 32
        %v1619 = vpop.permute.xlu0 %1618
        %1620 = vrot.lane.b32.xlu0 %v1545, 32
        %v1621 = vpop.permute.xlu0 %1620
        %1622 = vrot.lane.b32.xlu0 %v1546, 32
        %v1623 = vpop.permute.xlu0 %1622
        %1624 = vrot.lane.b32.xlu0 %v1547, 32
        %v1625 = vpop.permute.xlu0 %1624
        %1626 = vrot.lane.b32.xlu0 %v1548, 32
        %v1627 = vpop.permute.xlu0 %1626
        %1628 = vrot.lane.b32.xlu0 %v1549, 32
        %v1629 = vpop.permute.xlu0 %1628
        %1630 = vrot.lane.b32.xlu0 %v1550, 32
        %v1631 = vpop.permute.xlu0 %1630
        %1632 = vrot.lane.b32.xlu0 %v1551, 32
        %v1633 = vpop.permute.xlu0 %1632
        %1634 = vrot.lane.b32.xlu0 %v1552, 32
        %v1635 = vpop.permute.xlu0 %1634
        %1636 = vrot.lane.b32.xlu0 %v1553, 32
        %v1637 = vpop.permute.xlu0 %1636
        %1638 = vrot.lane.b32.xlu0 %v1554, 32
        %v1639 = vpop.permute.xlu0 %1638
        %1640 = vrot.lane.b32.xlu0 %v1555, 32
        %v1641 = vpop.permute.xlu0 %1640
        %1642 = vrot.lane.b32.xlu0 %v1556, 32
        %v1643 = vpop.permute.xlu0 %1642
        %1644 = vrot.lane.b32.xlu0 %v1557, 32
        %v1645 = vpop.permute.xlu0 %1644
        %1646 = vrot.lane.b32.xlu0 %v1558, 32
        %v1647 = vpop.permute.xlu0 %1646
        %1648 = vrot.lane.b32.xlu0 %v1559, 32
        %v1649 = vpop.permute.xlu0 %1648
        %1650 = vrot.lane.b32.xlu0 %v1560, 32
        %v1651 = vpop.permute.xlu0 %1650
        %1652 = vrot.lane.b32.xlu0 %v1561, 32
        %v1653 = vpop.permute.xlu0 %1652
        %1654 = vrot.lane.b32.xlu0 %v1562, 32
        %v1655 = vpop.permute.xlu0 %1654
        %1656 = vrot.lane.b32.xlu0 %v1563, 32
        %v1657 = vpop.permute.xlu0 %1656
        %1658 = vrot.lane.b32.xlu0 %v1564, 32
        %v1659 = vpop.permute.xlu0 %1658
        %1660 = vrot.lane.b32.xlu0 %v1565, 32
        %v1661 = vpop.permute.xlu0 %1660
        %vm1694 = vcmask 519424
        %1695 = vst.msk [vmem:[#allocation3] sm:$0xf] %vm1694, %v1599
        %1696 = vst.msk [vmem:[#allocation3 + $0xc] sm:$0xf] %vm1694, %v1601
        %1697 = vst.msk [vmem:[#allocation3 + $0x18] sm:$0xf] %vm1694, %v1603
        %1698 = vst.msk [vmem:[#allocation3 + $0x24] sm:$0xf] %vm1694, %v1605
        %1699 = vst.msk [vmem:[#allocation3 + $0x30] sm:$0xf] %vm1694, %v1607
        %1700 = vst.msk [vmem:[#allocation3 + $0x3c] sm:$0xf] %vm1694, %v1609
        %1701 = vst.msk [vmem:[#allocation3 + $0x48] sm:$0xf] %vm1694, %v1611
        %1702 = vst.msk [vmem:[#allocation3 + $0x54] sm:$0xf] %vm1694, %v1613
        %1703 = vst.msk [vmem:[#allocation3 + $0x60] sm:$0xf] %vm1694, %v1615
        %1704 = vst.msk [vmem:[#allocation3 + $0x6c] sm:$0xf] %vm1694, %v1617
        %1705 = vst.msk [vmem:[#allocation3 + $0x78] sm:$0xf] %vm1694, %v1619
        %1706 = vst.msk [vmem:[#allocation3 + $0x84] sm:$0xf] %vm1694, %v1621
        %1707 = vst.msk [vmem:[#allocation3 + $0x90] sm:$0xf] %vm1694, %v1623
        %1708 = vst.msk [vmem:[#allocation3 + $0x9c] sm:$0xf] %vm1694, %v1625
        %1709 = vst.msk [vmem:[#allocation3 + $0xa8] sm:$0xf] %vm1694, %v1627
        %1710 = vst.msk [vmem:[#allocation3 + $0xb4] sm:$0xf] %vm1694, %v1629
        %1711 = vst.msk [vmem:[#allocation3 + $0xc0] sm:$0xf] %vm1694, %v1631
        %1712 = vst.msk [vmem:[#allocation3 + $0xcc] sm:$0xf] %vm1694, %v1633
        %1713 = vst.msk [vmem:[#allocation3 + $0xd8] sm:$0xf] %vm1694, %v1635
        %1714 = vst.msk [vmem:[#allocation3 + $0xe4] sm:$0xf] %vm1694, %v1637
        %1715 = vst.msk [vmem:[#allocation3 + $0xf0] sm:$0xf] %vm1694, %v1639
        %1716 = vst.msk [vmem:[#allocation3 + $0xfc] sm:$0xf] %vm1694, %v1641
        %1717 = vst.msk [vmem:[#allocation3 + $0x108] sm:$0xf] %vm1694, %v1643
        %1718 = vst.msk [vmem:[#allocation3 + $0x114] sm:$0xf] %vm1694, %v1645
        %1719 = vst.msk [vmem:[#allocation3 + $0x120] sm:$0xf] %vm1694, %v1647
        %1720 = vst.msk [vmem:[#allocation3 + $0x12c] sm:$0xf] %vm1694, %v1649
        %1721 = vst.msk [vmem:[#allocation3 + $0x138] sm:$0xf] %vm1694, %v1651
        %1722 = vst.msk [vmem:[#allocation3 + $0x144] sm:$0xf] %vm1694, %v1653
        %1723 = vst.msk [vmem:[#allocation3 + $0x150] sm:$0xf] %vm1694, %v1655
        %1724 = vst.msk [vmem:[#allocation3 + $0x15c] sm:$0xf] %vm1694, %v1657
        %1725 = vst.msk [vmem:[#allocation3 + $0x168] sm:$0xf] %vm1694, %v1659
        %1726 = vst.msk [vmem:[#allocation3 + $0x174] sm:$0xf] %vm1694, %v1661
        %v1727 = vld [vmem:[#allocation2 + $0x8] sm:$0xf]
        %v1728 = vld [vmem:[#allocation2 + $0xc] sm:$0xf]
        %v1729 = vld [vmem:[#allocation2 + $0x10] sm:$0x1]
        %v1730 = vld [vmem:[#allocation2 + $0x20] sm:$0xf]
        %v1731 = vld [vmem:[#allocation2 + $0x24] sm:$0xf]
        %v1732 = vld [vmem:[#allocation2 + $0x28] sm:$0x1]
        %v1733 = vld [vmem:[#allocation2 + $0x38] sm:$0xf]
        %v1734 = vld [vmem:[#allocation2 + $0x3c] sm:$0xf]
        %v1735 = vld [vmem:[#allocation2 + $0x40] sm:$0x1]
        %v1736 = vld [vmem:[#allocation2 + $0x50] sm:$0xf]
        %v1737 = vld [vmem:[#allocation2 + $0x54] sm:$0xf]
        %v1738 = vld [vmem:[#allocation2 + $0x58] sm:$0x1]
        %v1739 = vld [vmem:[#allocation2 + $0x68] sm:$0xf]
        %v1740 = vld [vmem:[#allocation2 + $0x6c] sm:$0xf]
        %v1741 = vld [vmem:[#allocation2 + $0x70] sm:$0x1]
        %v1742 = vld [vmem:[#allocation2 + $0x80] sm:$0xf]
        %v1743 = vld [vmem:[#allocation2 + $0x84] sm:$0xf]
        %v1744 = vld [vmem:[#allocation2 + $0x88] sm:$0x1]
        %v1745 = vld [vmem:[#allocation2 + $0x98] sm:$0xf]
        %v1746 = vld [vmem:[#allocation2 + $0x9c] sm:$0xf]
        %v1747 = vld [vmem:[#allocation2 + $0xa0] sm:$0x1]
        %v1748 = vld [vmem:[#allocation2 + $0xb0] sm:$0xf]
        %v1749 = vld [vmem:[#allocation2 + $0xb4] sm:$0xf]
        %v1750 = vld [vmem:[#allocation2 + $0xb8] sm:$0x1]
        %v1751 = vld [vmem:[#allocation2 + $0xc8] sm:$0xf]
        %v1752 = vld [vmem:[#allocation2 + $0xcc] sm:$0xf]
        %v1753 = vld [vmem:[#allocation2 + $0xd0] sm:$0x1]
        %v1754 = vld [vmem:[#allocation2 + $0xe0] sm:$0xf]
        %v1755 = vld [vmem:[#allocation2 + $0xe4] sm:$0xf]
        %v1756 = vld [vmem:[#allocation2 + $0xe8] sm:$0x1]
        %v1757 = vld [vmem:[#allocation2 + $0xf8] sm:$0xf]
        %v1758 = vld [vmem:[#allocation2 + $0xfc] sm:$0xf]
        %v1759 = vld [vmem:[#allocation2 + $0x100] sm:$0x1]
        %v1760 = vld [vmem:[#allocation2 + $0x110] sm:$0xf]
        %v1761 = vld [vmem:[#allocation2 + $0x114] sm:$0xf]
        %v1762 = vld [vmem:[#allocation2 + $0x118] sm:$0x1]
        %v1763 = vld [vmem:[#allocation2 + $0x128] sm:$0xf]
        %v1764 = vld [vmem:[#allocation2 + $0x12c] sm:$0xf]
        %v1765 = vld [vmem:[#allocation2 + $0x130] sm:$0x1]
        %v1766 = vld [vmem:[#allocation2 + $0x140] sm:$0xf]
        %v1767 = vld [vmem:[#allocation2 + $0x144] sm:$0xf]
        %v1768 = vld [vmem:[#allocation2 + $0x148] sm:$0x1]
        %v1769 = vld [vmem:[#allocation2 + $0x158] sm:$0xf]
        %v1770 = vld [vmem:[#allocation2 + $0x15c] sm:$0xf]
        %v1771 = vld [vmem:[#allocation2 + $0x160] sm:$0x1]
        %v1772 = vld [vmem:[#allocation2 + $0x170] sm:$0xf]
        %v1773 = vld [vmem:[#allocation2 + $0x174] sm:$0xf]
        %v1774 = vld [vmem:[#allocation2 + $0x178] sm:$0x1]
        %vm1775 = vsmask.f32 3328
        %vm1776 = vsmask.f32 7440
        %vm1777 = vmor %vm1775, %vm1776
        %v1779 = vshrl.u32 %v1727, 16
        %v1781 = vrot.slane %v1779, 4
        %v1782 = vshll.u32 %v1727, 16
        %v1784 = vrot.slane %v1782, 5
        %v1785 = vor.u32 %v1781, %v1784
        %v1786 = vrot.slane %v1785, 4
        %v1788 = vshll.u32 %v1728, 16
        %v1790 = vrot.slane %v1788, 5
        %v1791 = vsel %vm1777, %v1786, %v1790
        %v1792 = vshrl.u32 %v1728, 16
        %v1794 = vrot.slane %v1792, 4
        %v1795 = vor.u32 %v1794, %v1790
        %v1796 = vrot.slane %v1795, 4
        %v1798 = vshll.u32 %v1729, 16
        %v1800 = vrot.slane %v1798, 5
        %v1801 = vsel %vm1777, %v1796, %v1800
        %v1803 = vshrl.u32 %v1730, 16
        %v1805 = vrot.slane %v1803, 4
        %v1806 = vshll.u32 %v1730, 16
        %v1808 = vrot.slane %v1806, 5
        %v1809 = vor.u32 %v1805, %v1808
        %v1810 = vrot.slane %v1809, 4
        %v1812 = vshll.u32 %v1731, 16
        %v1814 = vrot.slane %v1812, 5
        %v1815 = vsel %vm1777, %v1810, %v1814
        %v1816 = vshrl.u32 %v1731, 16
        %v1818 = vrot.slane %v1816, 4
        %v1819 = vor.u32 %v1818, %v1814
        %v1820 = vrot.slane %v1819, 4
        %v1822 = vshll.u32 %v1732, 16
        %v1824 = vrot.slane %v1822, 5
        %v1825 = vsel %vm1777, %v1820, %v1824
        %v1827 = vshrl.u32 %v1733, 16
        %v1829 = vrot.slane %v1827, 4
        %v1830 = vshll.u32 %v1733, 16
        %v1832 = vrot.slane %v1830, 5
        %v1833 = vor.u32 %v1829, %v1832
        %v1834 = vrot.slane %v1833, 4
        %v1836 = vshll.u32 %v1734, 16
        %v1838 = vrot.slane %v1836, 5
        %v1839 = vsel %vm1777, %v1834, %v1838
        %v1840 = vshrl.u32 %v1734, 16
        %v1842 = vrot.slane %v1840, 4
        %v1843 = vor.u32 %v1842, %v1838
        %v1844 = vrot.slane %v1843, 4
        %v1846 = vshll.u32 %v1735, 16
        %v1848 = vrot.slane %v1846, 5
        %v1849 = vsel %vm1777, %v1844, %v1848
        %v1851 = vshrl.u32 %v1736, 16
        %v1853 = vrot.slane %v1851, 4
        %v1854 = vshll.u32 %v1736, 16
        %v1856 = vrot.slane %v1854, 5
        %v1857 = vor.u32 %v1853, %v1856
        %v1858 = vrot.slane %v1857, 4
        %v1860 = vshll.u32 %v1737, 16
        %v1862 = vrot.slane %v1860, 5
        %v1863 = vsel %vm1777, %v1858, %v1862
        %v1864 = vshrl.u32 %v1737, 16
        %v1866 = vrot.slane %v1864, 4
        %v1867 = vor.u32 %v1866, %v1862
        %v1868 = vrot.slane %v1867, 4
        %v1870 = vshll.u32 %v1738, 16
        %v1872 = vrot.slane %v1870, 5
        %v1873 = vsel %vm1777, %v1868, %v1872
        %v1875 = vshrl.u32 %v1739, 16
        %v1877 = vrot.slane %v1875, 4
        %v1878 = vshll.u32 %v1739, 16
        %v1880 = vrot.slane %v1878, 5
        %v1881 = vor.u32 %v1877, %v1880
        %v1882 = vrot.slane %v1881, 4
        %v1884 = vshll.u32 %v1740, 16
        %v1886 = vrot.slane %v1884, 5
        %v1887 = vsel %vm1777, %v1882, %v1886
        %v1888 = vshrl.u32 %v1740, 16
        %v1890 = vrot.slane %v1888, 4
        %v1891 = vor.u32 %v1890, %v1886
        %v1892 = vrot.slane %v1891, 4
        %v1894 = vshll.u32 %v1741, 16
        %v1896 = vrot.slane %v1894, 5
        %v1897 = vsel %vm1777, %v1892, %v1896
        %v1899 = vshrl.u32 %v1742, 16
        %v1901 = vrot.slane %v1899, 4
        %v1902 = vshll.u32 %v1742, 16
        %v1904 = vrot.slane %v1902, 5
        %v1905 = vor.u32 %v1901, %v1904
        %v1906 = vrot.slane %v1905, 4
        %v1908 = vshll.u32 %v1743, 16
        %v1910 = vrot.slane %v1908, 5
        %v1911 = vsel %vm1777, %v1906, %v1910
        %v1912 = vshrl.u32 %v1743, 16
        %v1914 = vrot.slane %v1912, 4
        %v1915 = vor.u32 %v1914, %v1910
        %v1916 = vrot.slane %v1915, 4
        %v1918 = vshll.u32 %v1744, 16
        %v1920 = vrot.slane %v1918, 5
        %v1921 = vsel %vm1777, %v1916, %v1920
        %v1923 = vshrl.u32 %v1745, 16
        %v1925 = vrot.slane %v1923, 4
        %v1926 = vshll.u32 %v1745, 16
        %v1928 = vrot.slane %v1926, 5
        %v1929 = vor.u32 %v1925, %v1928
        %v1930 = vrot.slane %v1929, 4
        %v1932 = vshll.u32 %v1746, 16
        %v1934 = vrot.slane %v1932, 5
        %v1935 = vsel %vm1777, %v1930, %v1934
        %v1936 = vshrl.u32 %v1746, 16
        %v1938 = vrot.slane %v1936, 4
        %v1939 = vor.u32 %v1938, %v1934
        %v1940 = vrot.slane %v1939, 4
        %v1942 = vshll.u32 %v1747, 16
        %v1944 = vrot.slane %v1942, 5
        %v1945 = vsel %vm1777, %v1940, %v1944
        %v1947 = vshrl.u32 %v1748, 16
        %v1949 = vrot.slane %v1947, 4
        %v1950 = vshll.u32 %v1748, 16
        %v1952 = vrot.slane %v1950, 5
        %v1953 = vor.u32 %v1949, %v1952
        %v1954 = vrot.slane %v1953, 4
        %v1956 = vshll.u32 %v1749, 16
        %v1958 = vrot.slane %v1956, 5
        %v1959 = vsel %vm1777, %v1954, %v1958
        %v1960 = vshrl.u32 %v1749, 16
        %v1962 = vrot.slane %v1960, 4
        %v1963 = vor.u32 %v1962, %v1958
        %v1964 = vrot.slane %v1963, 4
        %v1966 = vshll.u32 %v1750, 16
        %v1968 = vrot.slane %v1966, 5
        %v1969 = vsel %vm1777, %v1964, %v1968
        %v1971 = vshrl.u32 %v1751, 16
        %v1973 = vrot.slane %v1971, 4
        %v1974 = vshll.u32 %v1751, 16
        %v1976 = vrot.slane %v1974, 5
        %v1977 = vor.u32 %v1973, %v1976
        %v1978 = vrot.slane %v1977, 4
        %v1980 = vshll.u32 %v1752, 16
        %v1982 = vrot.slane %v1980, 5
        %v1983 = vsel %vm1777, %v1978, %v1982
        %v1984 = vshrl.u32 %v1752, 16
        %v1986 = vrot.slane %v1984, 4
        %v1987 = vor.u32 %v1986, %v1982
        %v1988 = vrot.slane %v1987, 4
        %v1990 = vshll.u32 %v1753, 16
        %v1992 = vrot.slane %v1990, 5
        %v1993 = vsel %vm1777, %v1988, %v1992
        %v1995 = vshrl.u32 %v1754, 16
        %v1997 = vrot.slane %v1995, 4
        %v1998 = vshll.u32 %v1754, 16
        %v2000 = vrot.slane %v1998, 5
        %v2001 = vor.u32 %v1997, %v2000
        %v2002 = vrot.slane %v2001, 4
        %v2004 = vshll.u32 %v1755, 16
        %v2006 = vrot.slane %v2004, 5
        %v2007 = vsel %vm1777, %v2002, %v2006
        %v2008 = vshrl.u32 %v1755, 16
        %v2010 = vrot.slane %v2008, 4
        %v2011 = vor.u32 %v2010, %v2006
        %v2012 = vrot.slane %v2011, 4
        %v2014 = vshll.u32 %v1756, 16
        %v2016 = vrot.slane %v2014, 5
        %v2017 = vsel %vm1777, %v2012, %v2016
        %v2019 = vshrl.u32 %v1757, 16
        %v2021 = vrot.slane %v2019, 4
        %v2022 = vshll.u32 %v1757, 16
        %v2024 = vrot.slane %v2022, 5
        %v2025 = vor.u32 %v2021, %v2024
        %v2026 = vrot.slane %v2025, 4
        %v2028 = vshll.u32 %v1758, 16
        %v2030 = vrot.slane %v2028, 5
        %v2031 = vsel %vm1777, %v2026, %v2030
        %v2032 = vshrl.u32 %v1758, 16
        %v2034 = vrot.slane %v2032, 4
        %v2035 = vor.u32 %v2034, %v2030
        %v2036 = vrot.slane %v2035, 4
        %v2038 = vshll.u32 %v1759, 16
        %v2040 = vrot.slane %v2038, 5
        %v2041 = vsel %vm1777, %v2036, %v2040
        %v2043 = vshrl.u32 %v1760, 16
        %v2045 = vrot.slane %v2043, 4
        %v2046 = vshll.u32 %v1760, 16
        %v2048 = vrot.slane %v2046, 5
        %v2049 = vor.u32 %v2045, %v2048
        %v2050 = vrot.slane %v2049, 4
        %v2052 = vshll.u32 %v1761, 16
        %v2054 = vrot.slane %v2052, 5
        %v2055 = vsel %vm1777, %v2050, %v2054
        %v2056 = vshrl.u32 %v1761, 16
        %v2058 = vrot.slane %v2056, 4
        %v2059 = vor.u32 %v2058, %v2054
        %v2060 = vrot.slane %v2059, 4
        %v2062 = vshll.u32 %v1762, 16
        %v2064 = vrot.slane %v2062, 5
        %v2065 = vsel %vm1777, %v2060, %v2064
        %v2067 = vshrl.u32 %v1763, 16
        %v2069 = vrot.slane %v2067, 4
        %v2070 = vshll.u32 %v1763, 16
        %v2072 = vrot.slane %v2070, 5
        %v2073 = vor.u32 %v2069, %v2072
        %v2074 = vrot.slane %v2073, 4
        %v2076 = vshll.u32 %v1764, 16
        %v2078 = vrot.slane %v2076, 5
        %v2079 = vsel %vm1777, %v2074, %v2078
        %v2080 = vshrl.u32 %v1764, 16
        %v2082 = vrot.slane %v2080, 4
        %v2083 = vor.u32 %v2082, %v2078
        %v2084 = vrot.slane %v2083, 4
        %v2086 = vshll.u32 %v1765, 16
        %v2088 = vrot.slane %v2086, 5
        %v2089 = vsel %vm1777, %v2084, %v2088
        %v2091 = vshrl.u32 %v1766, 16
        %v2093 = vrot.slane %v2091, 4
        %v2094 = vshll.u32 %v1766, 16
        %v2096 = vrot.slane %v2094, 5
        %v2097 = vor.u32 %v2093, %v2096
        %v2098 = vrot.slane %v2097, 4
        %v2100 = vshll.u32 %v1767, 16
        %v2102 = vrot.slane %v2100, 5
        %v2103 = vsel %vm1777, %v2098, %v2102
        %v2104 = vshrl.u32 %v1767, 16
        %v2106 = vrot.slane %v2104, 4
        %v2107 = vor.u32 %v2106, %v2102
        %v2108 = vrot.slane %v2107, 4
        %v2110 = vshll.u32 %v1768, 16
        %v2112 = vrot.slane %v2110, 5
        %v2113 = vsel %vm1777, %v2108, %v2112
        %v2115 = vshrl.u32 %v1769, 16
        %v2117 = vrot.slane %v2115, 4
        %v2118 = vshll.u32 %v1769, 16
        %v2120 = vrot.slane %v2118, 5
        %v2121 = vor.u32 %v2117, %v2120
        %v2122 = vrot.slane %v2121, 4
        %v2124 = vshll.u32 %v1770, 16
        %v2126 = vrot.slane %v2124, 5
        %v2127 = vsel %vm1777, %v2122, %v2126
        %v2128 = vshrl.u32 %v1770, 16
        %v2130 = vrot.slane %v2128, 4
        %v2131 = vor.u32 %v2130, %v2126
        %v2132 = vrot.slane %v2131, 4
        %v2134 = vshll.u32 %v1771, 16
        %v2136 = vrot.slane %v2134, 5
        %v2137 = vsel %vm1777, %v2132, %v2136
        %v2139 = vshrl.u32 %v1772, 16
        %v2141 = vrot.slane %v2139, 4
        %v2142 = vshll.u32 %v1772, 16
        %v2144 = vrot.slane %v2142, 5
        %v2145 = vor.u32 %v2141, %v2144
        %v2146 = vrot.slane %v2145, 4
        %v2148 = vshll.u32 %v1773, 16
        %v2150 = vrot.slane %v2148, 5
        %v2151 = vsel %vm1777, %v2146, %v2150
        %v2152 = vshrl.u32 %v1773, 16
        %v2154 = vrot.slane %v2152, 4
        %v2155 = vor.u32 %v2154, %v2150
        %v2156 = vrot.slane %v2155, 4
        %v2158 = vshll.u32 %v1774, 16
        %v2160 = vrot.slane %v2158, 5
        %v2161 = vsel %vm1777, %v2156, %v2160
        %2162 = vrot.lane.b32.xlu0 %v1791, 64
        %v2163 = vpop.permute.xlu0 %2162
        %2164 = vrot.lane.b32.xlu0 %v1801, 64
        %v2165 = vpop.permute.xlu0 %2164
        %2166 = vrot.lane.b32.xlu0 %v1815, 64
        %v2167 = vpop.permute.xlu0 %2166
        %2168 = vrot.lane.b32.xlu0 %v1825, 64
        %v2169 = vpop.permute.xlu0 %2168
        %2170 = vrot.lane.b32.xlu0 %v1839, 64
        %v2171 = vpop.permute.xlu0 %2170
        %2172 = vrot.lane.b32.xlu0 %v1849, 64
        %v2173 = vpop.permute.xlu0 %2172
        %2174 = vrot.lane.b32.xlu0 %v1863, 64
        %v2175 = vpop.permute.xlu0 %2174
        %2176 = vrot.lane.b32.xlu0 %v1873, 64
        %v2177 = vpop.permute.xlu0 %2176
        %2178 = vrot.lane.b32.xlu0 %v1887, 64
        %v2179 = vpop.permute.xlu0 %2178
        %2180 = vrot.lane.b32.xlu0 %v1897, 64
        %v2181 = vpop.permute.xlu0 %2180
        %2182 = vrot.lane.b32.xlu0 %v1911, 64
        %v2183 = vpop.permute.xlu0 %2182
        %2184 = vrot.lane.b32.xlu0 %v1921, 64
        %v2185 = vpop.permute.xlu0 %2184
        %2186 = vrot.lane.b32.xlu0 %v1935, 64
        %v2187 = vpop.permute.xlu0 %2186
        %2188 = vrot.lane.b32.xlu0 %v1945, 64
        %v2189 = vpop.permute.xlu0 %2188
        %2190 = vrot.lane.b32.xlu0 %v1959, 64
        %v2191 = vpop.permute.xlu0 %2190
        %2192 = vrot.lane.b32.xlu0 %v1969, 64
        %v2193 = vpop.permute.xlu0 %2192
        %2194 = vrot.lane.b32.xlu0 %v1983, 64
        %v2195 = vpop.permute.xlu0 %2194
        %2196 = vrot.lane.b32.xlu0 %v1993, 64
        %v2197 = vpop.permute.xlu0 %2196
        %2198 = vrot.lane.b32.xlu0 %v2007, 64
        %v2199 = vpop.permute.xlu0 %2198
        %2200 = vrot.lane.b32.xlu0 %v2017, 64
        %v2201 = vpop.permute.xlu0 %2200
        %2202 = vrot.lane.b32.xlu0 %v2031, 64
        %v2203 = vpop.permute.xlu0 %2202
        %2204 = vrot.lane.b32.xlu0 %v2041, 64
        %v2205 = vpop.permute.xlu0 %2204
        %2206 = vrot.lane.b32.xlu0 %v2055, 64
        %v2207 = vpop.permute.xlu0 %2206
        %2208 = vrot.lane.b32.xlu0 %v2065, 64
        %v2209 = vpop.permute.xlu0 %2208
        %2210 = vrot.lane.b32.xlu0 %v2079, 64
        %v2211 = vpop.permute.xlu0 %2210
        %2212 = vrot.lane.b32.xlu0 %v2089, 64
        %v2213 = vpop.permute.xlu0 %2212
        %2214 = vrot.lane.b32.xlu0 %v2103, 64
        %v2215 = vpop.permute.xlu0 %2214
        %2216 = vrot.lane.b32.xlu0 %v2113, 64
        %v2217 = vpop.permute.xlu0 %2216
        %2218 = vrot.lane.b32.xlu0 %v2127, 64
        %v2219 = vpop.permute.xlu0 %2218
        %2220 = vrot.lane.b32.xlu0 %v2137, 64
        %v2221 = vpop.permute.xlu0 %2220
        %2222 = vrot.lane.b32.xlu0 %v2151, 64
        %v2223 = vpop.permute.xlu0 %2222
        %2224 = vrot.lane.b32.xlu0 %v2161, 64
        %v2225 = vpop.permute.xlu0 %2224
        %vm2258 = vcmask 781824
        %2259 = vst.msk [vmem:[#allocation3] sm:$0xf] %vm2258, %v2163
        %2260 = vst.msk [vmem:[#allocation3 + $0xc] sm:$0xf] %vm2258, %v2165
        %2261 = vst.msk [vmem:[#allocation3 + $0x18] sm:$0xf] %vm2258, %v2167
        %2262 = vst.msk [vmem:[#allocation3 + $0x24] sm:$0xf] %vm2258, %v2169
        %2263 = vst.msk [vmem:[#allocation3 + $0x30] sm:$0xf] %vm2258, %v2171
        %2264 = vst.msk [vmem:[#allocation3 + $0x3c] sm:$0xf] %vm2258, %v2173
        %2265 = vst.msk [vmem:[#allocation3 + $0x48] sm:$0xf] %vm2258, %v2175
        %2266 = vst.msk [vmem:[#allocation3 + $0x54] sm:$0xf] %vm2258, %v2177
        %2267 = vst.msk [vmem:[#allocation3 + $0x60] sm:$0xf] %vm2258, %v2179
        %2268 = vst.msk [vmem:[#allocation3 + $0x6c] sm:$0xf] %vm2258, %v2181
        %2269 = vst.msk [vmem:[#allocation3 + $0x78] sm:$0xf] %vm2258, %v2183
        %2270 = vst.msk [vmem:[#allocation3 + $0x84] sm:$0xf] %vm2258, %v2185
        %2271 = vst.msk [vmem:[#allocation3 + $0x90] sm:$0xf] %vm2258, %v2187
        %2272 = vst.msk [vmem:[#allocation3 + $0x9c] sm:$0xf] %vm2258, %v2189
        %2273 = vst.msk [vmem:[#allocation3 + $0xa8] sm:$0xf] %vm2258, %v2191
        %2274 = vst.msk [vmem:[#allocation3 + $0xb4] sm:$0xf] %vm2258, %v2193
        %2275 = vst.msk [vmem:[#allocation3 + $0xc0] sm:$0xf] %vm2258, %v2195
        %2276 = vst.msk [vmem:[#allocation3 + $0xcc] sm:$0xf] %vm2258, %v2197
        %2277 = vst.msk [vmem:[#allocation3 + $0xd8] sm:$0xf] %vm2258, %v2199
        %2278 = vst.msk [vmem:[#allocation3 + $0xe4] sm:$0xf] %vm2258, %v2201
        %2279 = vst.msk [vmem:[#allocation3 + $0xf0] sm:$0xf] %vm2258, %v2203
        %2280 = vst.msk [vmem:[#allocation3 + $0xfc] sm:$0xf] %vm2258, %v2205
        %2281 = vst.msk [vmem:[#allocation3 + $0x108] sm:$0xf] %vm2258, %v2207
        %2282 = vst.msk [vmem:[#allocation3 + $0x114] sm:$0xf] %vm2258, %v2209
        %2283 = vst.msk [vmem:[#allocation3 + $0x120] sm:$0xf] %vm2258, %v2211
        %2284 = vst.msk [vmem:[#allocation3 + $0x12c] sm:$0xf] %vm2258, %v2213
        %2285 = vst.msk [vmem:[#allocation3 + $0x138] sm:$0xf] %vm2258, %v2215
        %2286 = vst.msk [vmem:[#allocation3 + $0x144] sm:$0xf] %vm2258, %v2217
        %2287 = vst.msk [vmem:[#allocation3 + $0x150] sm:$0xf] %vm2258, %v2219
        %2288 = vst.msk [vmem:[#allocation3 + $0x15c] sm:$0xf] %vm2258, %v2221
        %2289 = vst.msk [vmem:[#allocation3 + $0x168] sm:$0xf] %vm2258, %v2223
        %2290 = vst.msk [vmem:[#allocation3 + $0x174] sm:$0xf] %vm2258, %v2225
        %v2291 = vld [vmem:[%s1034 + $0x4] sm:$0x8]
        %v2292 = vld [vmem:[%s1034 + $0x8] sm:$0xf]
        %v2293 = vld [vmem:[%s1034 + $0xc] sm:$0xf]
        %v2294 = vld [vmem:[%s1034 + $0x1c] sm:$0x8]
        %v2295 = vld [vmem:[%s1034 + $0x20] sm:$0xf]
        %v2296 = vld [vmem:[%s1034 + $0x24] sm:$0xf]
        %v2297 = vld [vmem:[%s1034 + $0x34] sm:$0x8]
        %v2298 = vld [vmem:[%s1034 + $0x38] sm:$0xf]
        %v2299 = vld [vmem:[%s1034 + $0x3c] sm:$0xf]
        %v2300 = vld [vmem:[%s1034 + $0x4c] sm:$0x8]
        %v2301 = vld [vmem:[%s1034 + $0x50] sm:$0xf]
        %v2302 = vld [vmem:[%s1034 + $0x54] sm:$0xf]
        %v2303 = vld [vmem:[%s1034 + $0x64] sm:$0x8]
        %v2304 = vld [vmem:[%s1034 + $0x68] sm:$0xf]
        %v2305 = vld [vmem:[%s1034 + $0x6c] sm:$0xf]
        %v2306 = vld [vmem:[%s1034 + $0x7c] sm:$0x8]
        %v2307 = vld [vmem:[%s1034 + $0x80] sm:$0xf]
        %v2308 = vld [vmem:[%s1034 + $0x84] sm:$0xf]
        %v2309 = vld [vmem:[%s1034 + $0x94] sm:$0x8]
        %v2310 = vld [vmem:[%s1034 + $0x98] sm:$0xf]
        %v2311 = vld [vmem:[%s1034 + $0x9c] sm:$0xf]
        %v2312 = vld [vmem:[%s1034 + $0xac] sm:$0x8]
        %v2313 = vld [vmem:[%s1034 + $0xb0] sm:$0xf]
        %v2314 = vld [vmem:[%s1034 + $0xb4] sm:$0xf]
        %v2315 = vld [vmem:[%s1034 + $0xc4] sm:$0x8]
        %v2316 = vld [vmem:[%s1034 + $0xc8] sm:$0xf]
        %v2317 = vld [vmem:[%s1034 + $0xcc] sm:$0xf]
        %v2318 = vld [vmem:[%s1034 + $0xdc] sm:$0x8]
        %v2319 = vld [vmem:[%s1034 + $0xe0] sm:$0xf]
        %v2320 = vld [vmem:[%s1034 + $0xe4] sm:$0xf]
        %v2321 = vld [vmem:[%s1034 + $0xf4] sm:$0x8]
        %v2322 = vld [vmem:[%s1034 + $0xf8] sm:$0xf]
        %v2323 = vld [vmem:[%s1034 + $0xfc] sm:$0xf]
        %v2324 = vld [vmem:[%s1034 + $0x10c] sm:$0x8]
        %v2325 = vld [vmem:[%s1034 + $0x110] sm:$0xf]
        %v2326 = vld [vmem:[%s1034 + $0x114] sm:$0xf]
        %v2327 = vld [vmem:[%s1034 + $0x124] sm:$0x8]
        %v2328 = vld [vmem:[%s1034 + $0x128] sm:$0xf]
        %v2329 = vld [vmem:[%s1034 + $0x12c] sm:$0xf]
        %v2330 = vld [vmem:[%s1034 + $0x13c] sm:$0x8]
        %v2331 = vld [vmem:[%s1034 + $0x140] sm:$0xf]
        %v2332 = vld [vmem:[%s1034 + $0x144] sm:$0xf]
        %v2333 = vld [vmem:[%s1034 + $0x154] sm:$0x8]
        %v2334 = vld [vmem:[%s1034 + $0x158] sm:$0xf]
        %v2335 = vld [vmem:[%s1034 + $0x15c] sm:$0xf]
        %v2336 = vld [vmem:[%s1034 + $0x16c] sm:$0x8]
        %v2337 = vld [vmem:[%s1034 + $0x170] sm:$0xf]
        %v2338 = vld [vmem:[%s1034 + $0x174] sm:$0xf]
        %v2340 = vshrl.u32 %v2291, 16
        %v2342 = vrot.slane %v2340, 7
        %v2343 = vrot.slane %v2342, 4
        %v2345 = vshrl.u32 %v2292, 16
        %v2347 = vrot.slane %v2345, 7
        %v2348 = vshll.u32 %v2292, 16
        %v2350 = vor.u32 %v2347, %v2348
        %v2351 = vsel %vm1117, %v2343, %v2350
        %v2352 = vrot.slane %v2347, 4
        %v2354 = vshrl.u32 %v2293, 16
        %v2356 = vrot.slane %v2354, 7
        %v2357 = vshll.u32 %v2293, 16
        %v2359 = vor.u32 %v2356, %v2357
        %v2360 = vsel %vm1117, %v2352, %v2359
        %v2362 = vshrl.u32 %v2294, 16
        %v2364 = vrot.slane %v2362, 7
        %v2365 = vrot.slane %v2364, 4
        %v2367 = vshrl.u32 %v2295, 16
        %v2369 = vrot.slane %v2367, 7
        %v2370 = vshll.u32 %v2295, 16
        %v2372 = vor.u32 %v2369, %v2370
        %v2373 = vsel %vm1117, %v2365, %v2372
        %v2374 = vrot.slane %v2369, 4
        %v2376 = vshrl.u32 %v2296, 16
        %v2378 = vrot.slane %v2376, 7
        %v2379 = vshll.u32 %v2296, 16
        %v2381 = vor.u32 %v2378, %v2379
        %v2382 = vsel %vm1117, %v2374, %v2381
        %v2384 = vshrl.u32 %v2297, 16
        %v2386 = vrot.slane %v2384, 7
        %v2387 = vrot.slane %v2386, 4
        %v2389 = vshrl.u32 %v2298, 16
        %v2391 = vrot.slane %v2389, 7
        %v2392 = vshll.u32 %v2298, 16
        %v2394 = vor.u32 %v2391, %v2392
        %v2395 = vsel %vm1117, %v2387, %v2394
        %v2396 = vrot.slane %v2391, 4
        %v2398 = vshrl.u32 %v2299, 16
        %v2400 = vrot.slane %v2398, 7
        %v2401 = vshll.u32 %v2299, 16
        %v2403 = vor.u32 %v2400, %v2401
        %v2404 = vsel %vm1117, %v2396, %v2403
        %v2406 = vshrl.u32 %v2300, 16
        %v2408 = vrot.slane %v2406, 7
        %v2409 = vrot.slane %v2408, 4
        %v2411 = vshrl.u32 %v2301, 16
        %v2413 = vrot.slane %v2411, 7
        %v2414 = vshll.u32 %v2301, 16
        %v2416 = vor.u32 %v2413, %v2414
        %v2417 = vsel %vm1117, %v2409, %v2416
        %v2418 = vrot.slane %v2413, 4
        %v2420 = vshrl.u32 %v2302, 16
        %v2422 = vrot.slane %v2420, 7
        %v2423 = vshll.u32 %v2302, 16
        %v2425 = vor.u32 %v2422, %v2423
        %v2426 = vsel %vm1117, %v2418, %v2425
        %v2428 = vshrl.u32 %v2303, 16
        %v2430 = vrot.slane %v2428, 7
        %v2431 = vrot.slane %v2430, 4
        %v2433 = vshrl.u32 %v2304, 16
        %v2435 = vrot.slane %v2433, 7
        %v2436 = vshll.u32 %v2304, 16
        %v2438 = vor.u32 %v2435, %v2436
        %v2439 = vsel %vm1117, %v2431, %v2438
        %v2440 = vrot.slane %v2435, 4
        %v2442 = vshrl.u32 %v2305, 16
        %v2444 = vrot.slane %v2442, 7
        %v2445 = vshll.u32 %v2305, 16
        %v2447 = vor.u32 %v2444, %v2445
        %v2448 = vsel %vm1117, %v2440, %v2447
        %v2450 = vshrl.u32 %v2306, 16
        %v2452 = vrot.slane %v2450, 7
        %v2453 = vrot.slane %v2452, 4
        %v2455 = vshrl.u32 %v2307, 16
        %v2457 = vrot.slane %v2455, 7
        %v2458 = vshll.u32 %v2307, 16
        %v2460 = vor.u32 %v2457, %v2458
        %v2461 = vsel %vm1117, %v2453, %v2460
        %v2462 = vrot.slane %v2457, 4
        %v2464 = vshrl.u32 %v2308, 16
        %v2466 = vrot.slane %v2464, 7
        %v2467 = vshll.u32 %v2308, 16
        %v2469 = vor.u32 %v2466, %v2467
        %v2470 = vsel %vm1117, %v2462, %v2469
        %v2472 = vshrl.u32 %v2309, 16
        %v2474 = vrot.slane %v2472, 7
        %v2475 = vrot.slane %v2474, 4
        %v2477 = vshrl.u32 %v2310, 16
        %v2479 = vrot.slane %v2477, 7
        %v2480 = vshll.u32 %v2310, 16
        %v2482 = vor.u32 %v2479, %v2480
        %v2483 = vsel %vm1117, %v2475, %v2482
        %v2484 = vrot.slane %v2479, 4
        %v2486 = vshrl.u32 %v2311, 16
        %v2488 = vrot.slane %v2486, 7
        %v2489 = vshll.u32 %v2311, 16
        %v2491 = vor.u32 %v2488, %v2489
        %v2492 = vsel %vm1117, %v2484, %v2491
        %v2494 = vshrl.u32 %v2312, 16
        %v2496 = vrot.slane %v2494, 7
        %v2497 = vrot.slane %v2496, 4
        %v2499 = vshrl.u32 %v2313, 16
        %v2501 = vrot.slane %v2499, 7
        %v2502 = vshll.u32 %v2313, 16
        %v2504 = vor.u32 %v2501, %v2502
        %v2505 = vsel %vm1117, %v2497, %v2504
        %v2506 = vrot.slane %v2501, 4
        %v2508 = vshrl.u32 %v2314, 16
        %v2510 = vrot.slane %v2508, 7
        %v2511 = vshll.u32 %v2314, 16
        %v2513 = vor.u32 %v2510, %v2511
        %v2514 = vsel %vm1117, %v2506, %v2513
        %v2516 = vshrl.u32 %v2315, 16
        %v2518 = vrot.slane %v2516, 7
        %v2519 = vrot.slane %v2518, 4
        %v2521 = vshrl.u32 %v2316, 16
        %v2523 = vrot.slane %v2521, 7
        %v2524 = vshll.u32 %v2316, 16
        %v2526 = vor.u32 %v2523, %v2524
        %v2527 = vsel %vm1117, %v2519, %v2526
        %v2528 = vrot.slane %v2523, 4
        %v2530 = vshrl.u32 %v2317, 16
        %v2532 = vrot.slane %v2530, 7
        %v2533 = vshll.u32 %v2317, 16
        %v2535 = vor.u32 %v2532, %v2533
        %v2536 = vsel %vm1117, %v2528, %v2535
        %v2538 = vshrl.u32 %v2318, 16
        %v2540 = vrot.slane %v2538, 7
        %v2541 = vrot.slane %v2540, 4
        %v2543 = vshrl.u32 %v2319, 16
        %v2545 = vrot.slane %v2543, 7
        %v2546 = vshll.u32 %v2319, 16
        %v2548 = vor.u32 %v2545, %v2546
        %v2549 = vsel %vm1117, %v2541, %v2548
        %v2550 = vrot.slane %v2545, 4
        %v2552 = vshrl.u32 %v2320, 16
        %v2554 = vrot.slane %v2552, 7
        %v2555 = vshll.u32 %v2320, 16
        %v2557 = vor.u32 %v2554, %v2555
        %v2558 = vsel %vm1117, %v2550, %v2557
        %v2560 = vshrl.u32 %v2321, 16
        %v2562 = vrot.slane %v2560, 7
        %v2563 = vrot.slane %v2562, 4
        %v2565 = vshrl.u32 %v2322, 16
        %v2567 = vrot.slane %v2565, 7
        %v2568 = vshll.u32 %v2322, 16
        %v2570 = vor.u32 %v2567, %v2568
        %v2571 = vsel %vm1117, %v2563, %v2570
        %v2572 = vrot.slane %v2567, 4
        %v2574 = vshrl.u32 %v2323, 16
        %v2576 = vrot.slane %v2574, 7
        %v2577 = vshll.u32 %v2323, 16
        %v2579 = vor.u32 %v2576, %v2577
        %v2580 = vsel %vm1117, %v2572, %v2579
        %v2582 = vshrl.u32 %v2324, 16
        %v2584 = vrot.slane %v2582, 7
        %v2585 = vrot.slane %v2584, 4
        %v2587 = vshrl.u32 %v2325, 16
        %v2589 = vrot.slane %v2587, 7
        %v2590 = vshll.u32 %v2325, 16
        %v2592 = vor.u32 %v2589, %v2590
        %v2593 = vsel %vm1117, %v2585, %v2592
        %v2594 = vrot.slane %v2589, 4
        %v2596 = vshrl.u32 %v2326, 16
        %v2598 = vrot.slane %v2596, 7
        %v2599 = vshll.u32 %v2326, 16
        %v2601 = vor.u32 %v2598, %v2599
        %v2602 = vsel %vm1117, %v2594, %v2601
        %v2604 = vshrl.u32 %v2327, 16
        %v2606 = vrot.slane %v2604, 7
        %v2607 = vrot.slane %v2606, 4
        %v2609 = vshrl.u32 %v2328, 16
        %v2611 = vrot.slane %v2609, 7
        %v2612 = vshll.u32 %v2328, 16
        %v2614 = vor.u32 %v2611, %v2612
        %v2615 = vsel %vm1117, %v2607, %v2614
        %v2616 = vrot.slane %v2611, 4
        %v2618 = vshrl.u32 %v2329, 16
        %v2620 = vrot.slane %v2618, 7
        %v2621 = vshll.u32 %v2329, 16
        %v2623 = vor.u32 %v2620, %v2621
        %v2624 = vsel %vm1117, %v2616, %v2623
        %v2626 = vshrl.u32 %v2330, 16
        %v2628 = vrot.slane %v2626, 7
        %v2629 = vrot.slane %v2628, 4
        %v2631 = vshrl.u32 %v2331, 16
        %v2633 = vrot.slane %v2631, 7
        %v2634 = vshll.u32 %v2331, 16
        %v2636 = vor.u32 %v2633, %v2634
        %v2637 = vsel %vm1117, %v2629, %v2636
        %v2638 = vrot.slane %v2633, 4
        %v2640 = vshrl.u32 %v2332, 16
        %v2642 = vrot.slane %v2640, 7
        %v2643 = vshll.u32 %v2332, 16
        %v2645 = vor.u32 %v2642, %v2643
        %v2646 = vsel %vm1117, %v2638, %v2645
        %v2648 = vshrl.u32 %v2333, 16
        %v2650 = vrot.slane %v2648, 7
        %v2651 = vrot.slane %v2650, 4
        %v2653 = vshrl.u32 %v2334, 16
        %v2655 = vrot.slane %v2653, 7
        %v2656 = vshll.u32 %v2334, 16
        %v2658 = vor.u32 %v2655, %v2656
        %v2659 = vsel %vm1117, %v2651, %v2658
        %v2660 = vrot.slane %v2655, 4
        %v2662 = vshrl.u32 %v2335, 16
        %v2664 = vrot.slane %v2662, 7
        %v2665 = vshll.u32 %v2335, 16
        %v2667 = vor.u32 %v2664, %v2665
        %v2668 = vsel %vm1117, %v2660, %v2667
        %v2670 = vshrl.u32 %v2336, 16
        %v2672 = vrot.slane %v2670, 7
        %v2673 = vrot.slane %v2672, 4
        %v2675 = vshrl.u32 %v2337, 16
        %v2677 = vrot.slane %v2675, 7
        %v2678 = vshll.u32 %v2337, 16
        %v2680 = vor.u32 %v2677, %v2678
        %v2681 = vsel %vm1117, %v2673, %v2680
        %v2682 = vrot.slane %v2677, 4
        %v2684 = vshrl.u32 %v2338, 16
        %v2686 = vrot.slane %v2684, 7
        %v2687 = vshll.u32 %v2338, 16
        %v2689 = vor.u32 %v2686, %v2687
        %v2690 = vsel %vm1117, %v2682, %v2689
        %2691 = vrot.lane.b32.xlu0 %v2351, 96
        %v2692 = vpop.permute.xlu0 %2691
        %2693 = vrot.lane.b32.xlu0 %v2360, 96
        %v2694 = vpop.permute.xlu0 %2693
        %2695 = vrot.lane.b32.xlu0 %v2373, 96
        %v2696 = vpop.permute.xlu0 %2695
        %2697 = vrot.lane.b32.xlu0 %v2382, 96
        %v2698 = vpop.permute.xlu0 %2697
        %2699 = vrot.lane.b32.xlu0 %v2395, 96
        %v2700 = vpop.permute.xlu0 %2699
        %2701 = vrot.lane.b32.xlu0 %v2404, 96
        %v2702 = vpop.permute.xlu0 %2701
        %2703 = vrot.lane.b32.xlu0 %v2417, 96
        %v2704 = vpop.permute.xlu0 %2703
        %2705 = vrot.lane.b32.xlu0 %v2426, 96
        %v2706 = vpop.permute.xlu0 %2705
        %2707 = vrot.lane.b32.xlu0 %v2439, 96
        %v2708 = vpop.permute.xlu0 %2707
        %2709 = vrot.lane.b32.xlu0 %v2448, 96
        %v2710 = vpop.permute.xlu0 %2709
        %2711 = vrot.lane.b32.xlu0 %v2461, 96
        %v2712 = vpop.permute.xlu0 %2711
        %2713 = vrot.lane.b32.xlu0 %v2470, 96
        %v2714 = vpop.permute.xlu0 %2713
        %2715 = vrot.lane.b32.xlu0 %v2483, 96
        %v2716 = vpop.permute.xlu0 %2715
        %2717 = vrot.lane.b32.xlu0 %v2492, 96
        %v2718 = vpop.permute.xlu0 %2717
        %2719 = vrot.lane.b32.xlu0 %v2505, 96
        %v2720 = vpop.permute.xlu0 %2719
        %2721 = vrot.lane.b32.xlu0 %v2514, 96
        %v2722 = vpop.permute.xlu0 %2721
        %2723 = vrot.lane.b32.xlu0 %v2527, 96
        %v2724 = vpop.permute.xlu0 %2723
        %2725 = vrot.lane.b32.xlu0 %v2536, 96
        %v2726 = vpop.permute.xlu0 %2725
        %2727 = vrot.lane.b32.xlu0 %v2549, 96
        %v2728 = vpop.permute.xlu0 %2727
        %2729 = vrot.lane.b32.xlu0 %v2558, 96
        %v2730 = vpop.permute.xlu0 %2729
        %2731 = vrot.lane.b32.xlu0 %v2571, 96
        %v2732 = vpop.permute.xlu0 %2731
        %2733 = vrot.lane.b32.xlu0 %v2580, 96
        %v2734 = vpop.permute.xlu0 %2733
        %2735 = vrot.lane.b32.xlu0 %v2593, 96
        %v2736 = vpop.permute.xlu0 %2735
        %2737 = vrot.lane.b32.xlu0 %v2602, 96
        %v2738 = vpop.permute.xlu0 %2737
        %2739 = vrot.lane.b32.xlu0 %v2615, 96
        %v2740 = vpop.permute.xlu0 %2739
        %2741 = vrot.lane.b32.xlu0 %v2624, 96
        %v2742 = vpop.permute.xlu0 %2741
        %2743 = vrot.lane.b32.xlu0 %v2637, 96
        %v2744 = vpop.permute.xlu0 %2743
        %2745 = vrot.lane.b32.xlu0 %v2646, 96
        %v2746 = vpop.permute.xlu0 %2745
        %2747 = vrot.lane.b32.xlu0 %v2659, 96
        %v2748 = vpop.permute.xlu0 %2747
        %2749 = vrot.lane.b32.xlu0 %v2668, 96
        %v2750 = vpop.permute.xlu0 %2749
        %2751 = vrot.lane.b32.xlu0 %v2681, 96
        %v2752 = vpop.permute.xlu0 %2751
        %2753 = vrot.lane.b32.xlu0 %v2690, 96
        %v2754 = vpop.permute.xlu0 %2753
        %vm2787 = vcmask 1044224
        %2788 = vst.msk [vmem:[#allocation3] sm:$0xf] %vm2787, %v2692
        %2789 = vst.msk [vmem:[#allocation3 + $0xc] sm:$0xf] %vm2787, %v2694
        %2790 = vst.msk [vmem:[#allocation3 + $0x18] sm:$0xf] %vm2787, %v2696
        %2791 = vst.msk [vmem:[#allocation3 + $0x24] sm:$0xf] %vm2787, %v2698
        %2792 = vst.msk [vmem:[#allocation3 + $0x30] sm:$0xf] %vm2787, %v2700
        %2793 = vst.msk [vmem:[#allocation3 + $0x3c] sm:$0xf] %vm2787, %v2702
        %2794 = vst.msk [vmem:[#allocation3 + $0x48] sm:$0xf] %vm2787, %v2704
        %2795 = vst.msk [vmem:[#allocation3 + $0x54] sm:$0xf] %vm2787, %v2706
        %2796 = vst.msk [vmem:[#allocation3 + $0x60] sm:$0xf] %vm2787, %v2708
        %2797 = vst.msk [vmem:[#allocation3 + $0x6c] sm:$0xf] %vm2787, %v2710
        %2798 = vst.msk [vmem:[#allocation3 + $0x78] sm:$0xf] %vm2787, %v2712
        %2799 = vst.msk [vmem:[#allocation3 + $0x84] sm:$0xf] %vm2787, %v2714
        %2800 = vst.msk [vmem:[#allocation3 + $0x90] sm:$0xf] %vm2787, %v2716
        %2801 = vst.msk [vmem:[#allocation3 + $0x9c] sm:$0xf] %vm2787, %v2718
        %2802 = vst.msk [vmem:[#allocation3 + $0xa8] sm:$0xf] %vm2787, %v2720
        %2803 = vst.msk [vmem:[#allocation3 + $0xb4] sm:$0xf] %vm2787, %v2722
        %2804 = vst.msk [vmem:[#allocation3 + $0xc0] sm:$0xf] %vm2787, %v2724
        %2805 = vst.msk [vmem:[#allocation3 + $0xcc] sm:$0xf] %vm2787, %v2726
        %2806 = vst.msk [vmem:[#allocation3 + $0xd8] sm:$0xf] %vm2787, %v2728
        %2807 = vst.msk [vmem:[#allocation3 + $0xe4] sm:$0xf] %vm2787, %v2730
        %2808 = vst.msk [vmem:[#allocation3 + $0xf0] sm:$0xf] %vm2787, %v2732
        %2809 = vst.msk [vmem:[#allocation3 + $0xfc] sm:$0xf] %vm2787, %v2734
        %2810 = vst.msk [vmem:[#allocation3 + $0x108] sm:$0xf] %vm2787, %v2736
        %2811 = vst.msk [vmem:[#allocation3 + $0x114] sm:$0xf] %vm2787, %v2738
        %2812 = vst.msk [vmem:[#allocation3 + $0x120] sm:$0xf] %vm2787, %v2740
        %2813 = vst.msk [vmem:[#allocation3 + $0x12c] sm:$0xf] %vm2787, %v2742
        %2814 = vst.msk [vmem:[#allocation3 + $0x138] sm:$0xf] %vm2787, %v2744
        %2815 = vst.msk [vmem:[#allocation3 + $0x144] sm:$0xf] %vm2787, %v2746
        %2816 = vst.msk [vmem:[#allocation3 + $0x150] sm:$0xf] %vm2787, %v2748
        %2817 = vst.msk [vmem:[#allocation3 + $0x15c] sm:$0xf] %vm2787, %v2750
        %2818 = vst.msk [vmem:[#allocation3 + $0x168] sm:$0xf] %vm2787, %v2752
        %2819 = vst.msk [vmem:[#allocation3 + $0x174] sm:$0xf] %vm2787, %v2754
        %v2820 = vld [vmem:[%s1034 + $0x8] sm:$0xf]
        %v2821 = vld [vmem:[%s1034 + $0xc] sm:$0xf]
        %v2822 = vld [vmem:[%s1034 + $0x20] sm:$0xf]
        %v2823 = vld [vmem:[%s1034 + $0x24] sm:$0xf]
        %v2824 = vld [vmem:[%s1034 + $0x38] sm:$0xf]
        %v2825 = vld [vmem:[%s1034 + $0x3c] sm:$0xf]
        %v2826 = vld [vmem:[%s1034 + $0x50] sm:$0xf]
        %v2827 = vld [vmem:[%s1034 + $0x54] sm:$0xf]
        %v2828 = vld [vmem:[%s1034 + $0x68] sm:$0xf]
        %v2829 = vld [vmem:[%s1034 + $0x6c] sm:$0xf]
        %v2830 = vld [vmem:[%s1034 + $0x80] sm:$0xf]
        %v2831 = vld [vmem:[%s1034 + $0x84] sm:$0xf]
        %v2832 = vld [vmem:[%s1034 + $0x98] sm:$0xf]
        %v2833 = vld [vmem:[%s1034 + $0x9c] sm:$0xf]
        %v2834 = vld [vmem:[%s1034 + $0xb0] sm:$0xf]
        %v2835 = vld [vmem:[%s1034 + $0xb4] sm:$0xf]
        %v2836 = vld [vmem:[%s1034 + $0xc8] sm:$0xf]
        %v2837 = vld [vmem:[%s1034 + $0xcc] sm:$0xf]
        %v2838 = vld [vmem:[%s1034 + $0xe0] sm:$0xf]
        %v2839 = vld [vmem:[%s1034 + $0xe4] sm:$0xf]
        %v2840 = vld [vmem:[%s1034 + $0xf8] sm:$0xf]
        %v2841 = vld [vmem:[%s1034 + $0xfc] sm:$0xf]
        %v2842 = vld [vmem:[%s1034 + $0x110] sm:$0xf]
        %v2843 = vld [vmem:[%s1034 + $0x114] sm:$0xf]
        %v2844 = vld [vmem:[%s1034 + $0x128] sm:$0xf]
        %v2845 = vld [vmem:[%s1034 + $0x12c] sm:$0xf]
        %v2846 = vld [vmem:[%s1034 + $0x140] sm:$0xf]
        %v2847 = vld [vmem:[%s1034 + $0x144] sm:$0xf]
        %v2848 = vld [vmem:[%s1034 + $0x158] sm:$0xf]
        %v2849 = vld [vmem:[%s1034 + $0x15c] sm:$0xf]
        %v2850 = vld [vmem:[%s1034 + $0x170] sm:$0xf]
        %v2851 = vld [vmem:[%s1034 + $0x174] sm:$0xf]
        %2852 = vst.msk [vmem:[#allocation3 + $0x4] sm:$0xf] %vm820, %v2820
        %2853 = vst.msk [vmem:[#allocation3 + $0x10] sm:$0xf] %vm820, %v2821
        %2854 = vst.msk [vmem:[#allocation3 + $0x1c] sm:$0xf] %vm820, %v2822
        %2855 = vst.msk [vmem:[#allocation3 + $0x28] sm:$0xf] %vm820, %v2823
        %2856 = vst.msk [vmem:[#allocation3 + $0x34] sm:$0xf] %vm820, %v2824
        %2857 = vst.msk [vmem:[#allocation3 + $0x40] sm:$0xf] %vm820, %v2825
        %2858 = vst.msk [vmem:[#allocation3 + $0x4c] sm:$0xf] %vm820, %v2826
        %2859 = vst.msk [vmem:[#allocation3 + $0x58] sm:$0xf] %vm820, %v2827
        %2860 = vst.msk [vmem:[#allocation3 + $0x64] sm:$0xf] %vm820, %v2828
        %2861 = vst.msk [vmem:[#allocation3 + $0x70] sm:$0xf] %vm820, %v2829
        %2862 = vst.msk [vmem:[#allocation3 + $0x7c] sm:$0xf] %vm820, %v2830
        %2863 = vst.msk [vmem:[#allocation3 + $0x88] sm:$0xf] %vm820, %v2831
        %2864 = vst.msk [vmem:[#allocation3 + $0x94] sm:$0xf] %vm820, %v2832
        %2865 = vst.msk [vmem:[#allocation3 + $0xa0] sm:$0xf] %vm820, %v2833
        %2866 = vst.msk [vmem:[#allocation3 + $0xac] sm:$0xf] %vm820, %v2834
        %2867 = vst.msk [vmem:[#allocation3 + $0xb8] sm:$0xf] %vm820, %v2835
        %2868 = vst.msk [vmem:[#allocation3 + $0xc4] sm:$0xf] %vm820, %v2836
        %2869 = vst.msk [vmem:[#allocation3 + $0xd0] sm:$0xf] %vm820, %v2837
        %2870 = vst.msk [vmem:[#allocation3 + $0xdc] sm:$0xf] %vm820, %v2838
        %2871 = vst.msk [vmem:[#allocation3 + $0xe8] sm:$0xf] %vm820, %v2839
        %2872 = vst.msk [vmem:[#allocation3 + $0xf4] sm:$0xf] %vm820, %v2840
        %2873 = vst.msk [vmem:[#allocation3 + $0x100] sm:$0xf] %vm820, %v2841
        %2874 = vst.msk [vmem:[#allocation3 + $0x10c] sm:$0xf] %vm820, %v2842
        %2875 = vst.msk [vmem:[#allocation3 + $0x118] sm:$0xf] %vm820, %v2843
        %2876 = vst.msk [vmem:[#allocation3 + $0x124] sm:$0xf] %vm820, %v2844
        %2877 = vst.msk [vmem:[#allocation3 + $0x130] sm:$0xf] %vm820, %v2845
        %2878 = vst.msk [vmem:[#allocation3 + $0x13c] sm:$0xf] %vm820, %v2846
        %2879 = vst.msk [vmem:[#allocation3 + $0x148] sm:$0xf] %vm820, %v2847
        %2880 = vst.msk [vmem:[#allocation3 + $0x154] sm:$0xf] %vm820, %v2848
        %2881 = vst.msk [vmem:[#allocation3 + $0x160] sm:$0xf] %vm820, %v2849
        %2882 = vst.msk [vmem:[#allocation3 + $0x16c] sm:$0xf] %vm820, %v2850
        %2883 = vst.msk [vmem:[#allocation3 + $0x178] sm:$0xf] %vm820, %v2851
        %v2884 = vld [vmem:[%s1034 + $0x8] sm:$0xf]
        %v2885 = vld [vmem:[%s1034 + $0xc] sm:$0xf]
        %v2886 = vld [vmem:[%s1034 + $0x10] sm:$0x1]
        %v2887 = vld [vmem:[%s1034 + $0x20] sm:$0xf]
        %v2888 = vld [vmem:[%s1034 + $0x24] sm:$0xf]
        %v2889 = vld [vmem:[%s1034 + $0x28] sm:$0x1]
        %v2890 = vld [vmem:[%s1034 + $0x38] sm:$0xf]
        %v2891 = vld [vmem:[%s1034 + $0x3c] sm:$0xf]
        %v2892 = vld [vmem:[%s1034 + $0x40] sm:$0x1]
        %v2893 = vld [vmem:[%s1034 + $0x50] sm:$0xf]
        %v2894 = vld [vmem:[%s1034 + $0x54] sm:$0xf]
        %v2895 = vld [vmem:[%s1034 + $0x58] sm:$0x1]
        %v2896 = vld [vmem:[%s1034 + $0x68] sm:$0xf]
        %v2897 = vld [vmem:[%s1034 + $0x6c] sm:$0xf]
        %v2898 = vld [vmem:[%s1034 + $0x70] sm:$0x1]
        %v2899 = vld [vmem:[%s1034 + $0x80] sm:$0xf]
        %v2900 = vld [vmem:[%s1034 + $0x84] sm:$0xf]
        %v2901 = vld [vmem:[%s1034 + $0x88] sm:$0x1]
        %v2902 = vld [vmem:[%s1034 + $0x98] sm:$0xf]
        %v2903 = vld [vmem:[%s1034 + $0x9c] sm:$0xf]
        %v2904 = vld [vmem:[%s1034 + $0xa0] sm:$0x1]
        %v2905 = vld [vmem:[%s1034 + $0xb0] sm:$0xf]
        %v2906 = vld [vmem:[%s1034 + $0xb4] sm:$0xf]
        %v2907 = vld [vmem:[%s1034 + $0xb8] sm:$0x1]
        %v2908 = vld [vmem:[%s1034 + $0xc8] sm:$0xf]
        %v2909 = vld [vmem:[%s1034 + $0xcc] sm:$0xf]
        %v2910 = vld [vmem:[%s1034 + $0xd0] sm:$0x1]
        %v2911 = vld [vmem:[%s1034 + $0xe0] sm:$0xf]
        %v2912 = vld [vmem:[%s1034 + $0xe4] sm:$0xf]
        %v2913 = vld [vmem:[%s1034 + $0xe8] sm:$0x1]
        %v2914 = vld [vmem:[%s1034 + $0xf8] sm:$0xf]
        %v2915 = vld [vmem:[%s1034 + $0xfc] sm:$0xf]
        %v2916 = vld [vmem:[%s1034 + $0x100] sm:$0x1]
        %v2917 = vld [vmem:[%s1034 + $0x110] sm:$0xf]
        %v2918 = vld [vmem:[%s1034 + $0x114] sm:$0xf]
        %v2919 = vld [vmem:[%s1034 + $0x118] sm:$0x1]
        %v2920 = vld [vmem:[%s1034 + $0x128] sm:$0xf]
        %v2921 = vld [vmem:[%s1034 + $0x12c] sm:$0xf]
        %v2922 = vld [vmem:[%s1034 + $0x130] sm:$0x1]
        %v2923 = vld [vmem:[%s1034 + $0x140] sm:$0xf]
        %v2924 = vld [vmem:[%s1034 + $0x144] sm:$0xf]
        %v2925 = vld [vmem:[%s1034 + $0x148] sm:$0x1]
        %v2926 = vld [vmem:[%s1034 + $0x158] sm:$0xf]
        %v2927 = vld [vmem:[%s1034 + $0x15c] sm:$0xf]
        %v2928 = vld [vmem:[%s1034 + $0x160] sm:$0x1]
        %v2929 = vld [vmem:[%s1034 + $0x170] sm:$0xf]
        %v2930 = vld [vmem:[%s1034 + $0x174] sm:$0xf]
        %v2931 = vld [vmem:[%s1034 + $0x178] sm:$0x1]
        %v2933 = vshrl.u32 %v2884, 16
        %v2935 = vrot.slane %v2933, 4
        %v2936 = vshll.u32 %v2884, 16
        %v2938 = vrot.slane %v2936, 5
        %v2939 = vor.u32 %v2935, %v2938
        %v2940 = vrot.slane %v2939, 4
        %v2942 = vshll.u32 %v2885, 16
        %v2944 = vrot.slane %v2942, 5
        %v2945 = vsel %vm1777, %v2940, %v2944
        %v2946 = vshrl.u32 %v2885, 16
        %v2948 = vrot.slane %v2946, 4
        %v2949 = vor.u32 %v2948, %v2944
        %v2950 = vrot.slane %v2949, 4
        %v2952 = vshll.u32 %v2886, 16
        %v2954 = vrot.slane %v2952, 5
        %v2955 = vsel %vm1777, %v2950, %v2954
        %v2957 = vshrl.u32 %v2887, 16
        %v2959 = vrot.slane %v2957, 4
        %v2960 = vshll.u32 %v2887, 16
        %v2962 = vrot.slane %v2960, 5
        %v2963 = vor.u32 %v2959, %v2962
        %v2964 = vrot.slane %v2963, 4
        %v2966 = vshll.u32 %v2888, 16
        %v2968 = vrot.slane %v2966, 5
        %v2969 = vsel %vm1777, %v2964, %v2968
        %v2970 = vshrl.u32 %v2888, 16
        %v2972 = vrot.slane %v2970, 4
        %v2973 = vor.u32 %v2972, %v2968
        %v2974 = vrot.slane %v2973, 4
        %v2976 = vshll.u32 %v2889, 16
        %v2978 = vrot.slane %v2976, 5
        %v2979 = vsel %vm1777, %v2974, %v2978
        %v2981 = vshrl.u32 %v2890, 16
        %v2983 = vrot.slane %v2981, 4
        %v2984 = vshll.u32 %v2890, 16
        %v2986 = vrot.slane %v2984, 5
        %v2987 = vor.u32 %v2983, %v2986
        %v2988 = vrot.slane %v2987, 4
        %v2990 = vshll.u32 %v2891, 16
        %v2992 = vrot.slane %v2990, 5
        %v2993 = vsel %vm1777, %v2988, %v2992
        %v2994 = vshrl.u32 %v2891, 16
        %v2996 = vrot.slane %v2994, 4
        %v2997 = vor.u32 %v2996, %v2992
        %v2998 = vrot.slane %v2997, 4
        %v3000 = vshll.u32 %v2892, 16
        %v3002 = vrot.slane %v3000, 5
        %v3003 = vsel %vm1777, %v2998, %v3002
        %v3005 = vshrl.u32 %v2893, 16
        %v3007 = vrot.slane %v3005, 4
        %v3008 = vshll.u32 %v2893, 16
        %v3010 = vrot.slane %v3008, 5
        %v3011 = vor.u32 %v3007, %v3010
        %v3012 = vrot.slane %v3011, 4
        %v3014 = vshll.u32 %v2894, 16
        %v3016 = vrot.slane %v3014, 5
        %v3017 = vsel %vm1777, %v3012, %v3016
        %v3018 = vshrl.u32 %v2894, 16
        %v3020 = vrot.slane %v3018, 4
        %v3021 = vor.u32 %v3020, %v3016
        %v3022 = vrot.slane %v3021, 4
        %v3024 = vshll.u32 %v2895, 16
        %v3026 = vrot.slane %v3024, 5
        %v3027 = vsel %vm1777, %v3022, %v3026
        %v3029 = vshrl.u32 %v2896, 16
        %v3031 = vrot.slane %v3029, 4
        %v3032 = vshll.u32 %v2896, 16
        %v3034 = vrot.slane %v3032, 5
        %v3035 = vor.u32 %v3031, %v3034
        %v3036 = vrot.slane %v3035, 4
        %v3038 = vshll.u32 %v2897, 16
        %v3040 = vrot.slane %v3038, 5
        %v3041 = vsel %vm1777, %v3036, %v3040
        %v3042 = vshrl.u32 %v2897, 16
        %v3044 = vrot.slane %v3042, 4
        %v3045 = vor.u32 %v3044, %v3040
        %v3046 = vrot.slane %v3045, 4
        %v3048 = vshll.u32 %v2898, 16
        %v3050 = vrot.slane %v3048, 5
        %v3051 = vsel %vm1777, %v3046, %v3050
        %v3053 = vshrl.u32 %v2899, 16
        %v3055 = vrot.slane %v3053, 4
        %v3056 = vshll.u32 %v2899, 16
        %v3058 = vrot.slane %v3056, 5
        %v3059 = vor.u32 %v3055, %v3058
        %v3060 = vrot.slane %v3059, 4
        %v3062 = vshll.u32 %v2900, 16
        %v3064 = vrot.slane %v3062, 5
        %v3065 = vsel %vm1777, %v3060, %v3064
        %v3066 = vshrl.u32 %v2900, 16
        %v3068 = vrot.slane %v3066, 4
        %v3069 = vor.u32 %v3068, %v3064
        %v3070 = vrot.slane %v3069, 4
        %v3072 = vshll.u32 %v2901, 16
        %v3074 = vrot.slane %v3072, 5
        %v3075 = vsel %vm1777, %v3070, %v3074
        %v3077 = vshrl.u32 %v2902, 16
        %v3079 = vrot.slane %v3077, 4
        %v3080 = vshll.u32 %v2902, 16
        %v3082 = vrot.slane %v3080, 5
        %v3083 = vor.u32 %v3079, %v3082
        %v3084 = vrot.slane %v3083, 4
        %v3086 = vshll.u32 %v2903, 16
        %v3088 = vrot.slane %v3086, 5
        %v3089 = vsel %vm1777, %v3084, %v3088
        %v3090 = vshrl.u32 %v2903, 16
        %v3092 = vrot.slane %v3090, 4
        %v3093 = vor.u32 %v3092, %v3088
        %v3094 = vrot.slane %v3093, 4
        %v3096 = vshll.u32 %v2904, 16
        %v3098 = vrot.slane %v3096, 5
        %v3099 = vsel %vm1777, %v3094, %v3098
        %v3101 = vshrl.u32 %v2905, 16
        %v3103 = vrot.slane %v3101, 4
        %v3104 = vshll.u32 %v2905, 16
        %v3106 = vrot.slane %v3104, 5
        %v3107 = vor.u32 %v3103, %v3106
        %v3108 = vrot.slane %v3107, 4
        %v3110 = vshll.u32 %v2906, 16
        %v3112 = vrot.slane %v3110, 5
        %v3113 = vsel %vm1777, %v3108, %v3112
        %v3114 = vshrl.u32 %v2906, 16
        %v3116 = vrot.slane %v3114, 4
        %v3117 = vor.u32 %v3116, %v3112
        %v3118 = vrot.slane %v3117, 4
        %v3120 = vshll.u32 %v2907, 16
        %v3122 = vrot.slane %v3120, 5
        %v3123 = vsel %vm1777, %v3118, %v3122
        %v3125 = vshrl.u32 %v2908, 16
        %v3127 = vrot.slane %v3125, 4
        %v3128 = vshll.u32 %v2908, 16
        %v3130 = vrot.slane %v3128, 5
        %v3131 = vor.u32 %v3127, %v3130
        %v3132 = vrot.slane %v3131, 4
        %v3134 = vshll.u32 %v2909, 16
        %v3136 = vrot.slane %v3134, 5
        %v3137 = vsel %vm1777, %v3132, %v3136
        %v3138 = vshrl.u32 %v2909, 16
        %v3140 = vrot.slane %v3138, 4
        %v3141 = vor.u32 %v3140, %v3136
        %v3142 = vrot.slane %v3141, 4
        %v3144 = vshll.u32 %v2910, 16
        %v3146 = vrot.slane %v3144, 5
        %v3147 = vsel %vm1777, %v3142, %v3146
        %v3149 = vshrl.u32 %v2911, 16
        %v3151 = vrot.slane %v3149, 4
        %v3152 = vshll.u32 %v2911, 16
        %v3154 = vrot.slane %v3152, 5
        %v3155 = vor.u32 %v3151, %v3154
        %v3156 = vrot.slane %v3155, 4
        %v3158 = vshll.u32 %v2912, 16
        %v3160 = vrot.slane %v3158, 5
        %v3161 = vsel %vm1777, %v3156, %v3160
        %v3162 = vshrl.u32 %v2912, 16
        %v3164 = vrot.slane %v3162, 4
        %v3165 = vor.u32 %v3164, %v3160
        %v3166 = vrot.slane %v3165, 4
        %v3168 = vshll.u32 %v2913, 16
        %v3170 = vrot.slane %v3168, 5
        %v3171 = vsel %vm1777, %v3166, %v3170
        %v3173 = vshrl.u32 %v2914, 16
        %v3175 = vrot.slane %v3173, 4
        %v3176 = vshll.u32 %v2914, 16
        %v3178 = vrot.slane %v3176, 5
        %v3179 = vor.u32 %v3175, %v3178
        %v3180 = vrot.slane %v3179, 4
        %v3182 = vshll.u32 %v2915, 16
        %v3184 = vrot.slane %v3182, 5
        %v3185 = vsel %vm1777, %v3180, %v3184
        %v3186 = vshrl.u32 %v2915, 16
        %v3188 = vrot.slane %v3186, 4
        %v3189 = vor.u32 %v3188, %v3184
        %v3190 = vrot.slane %v3189, 4
        %v3192 = vshll.u32 %v2916, 16
        %v3194 = vrot.slane %v3192, 5
        %v3195 = vsel %vm1777, %v3190, %v3194
        %v3197 = vshrl.u32 %v2917, 16
        %v3199 = vrot.slane %v3197, 4
        %v3200 = vshll.u32 %v2917, 16
        %v3202 = vrot.slane %v3200, 5
        %v3203 = vor.u32 %v3199, %v3202
        %v3204 = vrot.slane %v3203, 4
        %v3206 = vshll.u32 %v2918, 16
        %v3208 = vrot.slane %v3206, 5
        %v3209 = vsel %vm1777, %v3204, %v3208
        %v3210 = vshrl.u32 %v2918, 16
        %v3212 = vrot.slane %v3210, 4
        %v3213 = vor.u32 %v3212, %v3208
        %v3214 = vrot.slane %v3213, 4
        %v3216 = vshll.u32 %v2919, 16
        %v3218 = vrot.slane %v3216, 5
        %v3219 = vsel %vm1777, %v3214, %v3218
        %v3221 = vshrl.u32 %v2920, 16
        %v3223 = vrot.slane %v3221, 4
        %v3224 = vshll.u32 %v2920, 16
        %v3226 = vrot.slane %v3224, 5
        %v3227 = vor.u32 %v3223, %v3226
        %v3228 = vrot.slane %v3227, 4
        %v3230 = vshll.u32 %v2921, 16
        %v3232 = vrot.slane %v3230, 5
        %v3233 = vsel %vm1777, %v3228, %v3232
        %v3234 = vshrl.u32 %v2921, 16
        %v3236 = vrot.slane %v3234, 4
        %v3237 = vor.u32 %v3236, %v3232
        %v3238 = vrot.slane %v3237, 4
        %v3240 = vshll.u32 %v2922, 16
        %v3242 = vrot.slane %v3240, 5
        %v3243 = vsel %vm1777, %v3238, %v3242
        %v3245 = vshrl.u32 %v2923, 16
        %v3247 = vrot.slane %v3245, 4
        %v3248 = vshll.u32 %v2923, 16
        %v3250 = vrot.slane %v3248, 5
        %v3251 = vor.u32 %v3247, %v3250
        %v3252 = vrot.slane %v3251, 4
        %v3254 = vshll.u32 %v2924, 16
        %v3256 = vrot.slane %v3254, 5
        %v3257 = vsel %vm1777, %v3252, %v3256
        %v3258 = vshrl.u32 %v2924, 16
        %v3260 = vrot.slane %v3258, 4
        %v3261 = vor.u32 %v3260, %v3256
        %v3262 = vrot.slane %v3261, 4
        %v3264 = vshll.u32 %v2925, 16
        %v3266 = vrot.slane %v3264, 5
        %v3267 = vsel %vm1777, %v3262, %v3266
        %v3269 = vshrl.u32 %v2926, 16
        %v3271 = vrot.slane %v3269, 4
        %v3272 = vshll.u32 %v2926, 16
        %v3274 = vrot.slane %v3272, 5
        %v3275 = vor.u32 %v3271, %v3274
        %v3276 = vrot.slane %v3275, 4
        %v3278 = vshll.u32 %v2927, 16
        %v3280 = vrot.slane %v3278, 5
        %v3281 = vsel %vm1777, %v3276, %v3280
        %v3282 = vshrl.u32 %v2927, 16
        %v3284 = vrot.slane %v3282, 4
        %v3285 = vor.u32 %v3284, %v3280
        %v3286 = vrot.slane %v3285, 4
        %v3288 = vshll.u32 %v2928, 16
        %v3290 = vrot.slane %v3288, 5
        %v3291 = vsel %vm1777, %v3286, %v3290
        %v3293 = vshrl.u32 %v2929, 16
        %v3295 = vrot.slane %v3293, 4
        %v3296 = vshll.u32 %v2929, 16
        %v3298 = vrot.slane %v3296, 5
        %v3299 = vor.u32 %v3295, %v3298
        %v3300 = vrot.slane %v3299, 4
        %v3302 = vshll.u32 %v2930, 16
        %v3304 = vrot.slane %v3302, 5
        %v3305 = vsel %vm1777, %v3300, %v3304
        %v3306 = vshrl.u32 %v2930, 16
        %v3308 = vrot.slane %v3306, 4
        %v3309 = vor.u32 %v3308, %v3304
        %v3310 = vrot.slane %v3309, 4
        %v3312 = vshll.u32 %v2931, 16
        %v3314 = vrot.slane %v3312, 5
        %v3315 = vsel %vm1777, %v3310, %v3314
        %3316 = vrot.lane.b32.xlu0 %v2945, 32
        %v3317 = vpop.permute.xlu0 %3316
        %3318 = vrot.lane.b32.xlu0 %v2955, 32
        %v3319 = vpop.permute.xlu0 %3318
        %3320 = vrot.lane.b32.xlu0 %v2969, 32
        %v3321 = vpop.permute.xlu0 %3320
        %3322 = vrot.lane.b32.xlu0 %v2979, 32
        %v3323 = vpop.permute.xlu0 %3322
        %3324 = vrot.lane.b32.xlu0 %v2993, 32
        %v3325 = vpop.permute.xlu0 %3324
        %3326 = vrot.lane.b32.xlu0 %v3003, 32
        %v3327 = vpop.permute.xlu0 %3326
        %3328 = vrot.lane.b32.xlu0 %v3017, 32
        %v3329 = vpop.permute.xlu0 %3328
        %3330 = vrot.lane.b32.xlu0 %v3027, 32
        %v3331 = vpop.permute.xlu0 %3330
        %3332 = vrot.lane.b32.xlu0 %v3041, 32
        %v3333 = vpop.permute.xlu0 %3332
        %3334 = vrot.lane.b32.xlu0 %v3051, 32
        %v3335 = vpop.permute.xlu0 %3334
        %3336 = vrot.lane.b32.xlu0 %v3065, 32
        %v3337 = vpop.permute.xlu0 %3336
        %3338 = vrot.lane.b32.xlu0 %v3075, 32
        %v3339 = vpop.permute.xlu0 %3338
        %3340 = vrot.lane.b32.xlu0 %v3089, 32
        %v3341 = vpop.permute.xlu0 %3340
        %3342 = vrot.lane.b32.xlu0 %v3099, 32
        %v3343 = vpop.permute.xlu0 %3342
        %3344 = vrot.lane.b32.xlu0 %v3113, 32
        %v3345 = vpop.permute.xlu0 %3344
        %3346 = vrot.lane.b32.xlu0 %v3123, 32
        %v3347 = vpop.permute.xlu0 %3346
        %3348 = vrot.lane.b32.xlu0 %v3137, 32
        %v3349 = vpop.permute.xlu0 %3348
        %3350 = vrot.lane.b32.xlu0 %v3147, 32
        %v3351 = vpop.permute.xlu0 %3350
        %3352 = vrot.lane.b32.xlu0 %v3161, 32
        %v3353 = vpop.permute.xlu0 %3352
        %3354 = vrot.lane.b32.xlu0 %v3171, 32
        %v3355 = vpop.permute.xlu0 %3354
        %3356 = vrot.lane.b32.xlu0 %v3185, 32
        %v3357 = vpop.permute.xlu0 %3356
        %3358 = vrot.lane.b32.xlu0 %v3195, 32
        %v3359 = vpop.permute.xlu0 %3358
        %3360 = vrot.lane.b32.xlu0 %v3209, 32
        %v3361 = vpop.permute.xlu0 %3360
        %3362 = vrot.lane.b32.xlu0 %v3219, 32
        %v3363 = vpop.permute.xlu0 %3362
        %3364 = vrot.lane.b32.xlu0 %v3233, 32
        %v3365 = vpop.permute.xlu0 %3364
        %3366 = vrot.lane.b32.xlu0 %v3243, 32
        %v3367 = vpop.permute.xlu0 %3366
        %3368 = vrot.lane.b32.xlu0 %v3257, 32
        %v3369 = vpop.permute.xlu0 %3368
        %3370 = vrot.lane.b32.xlu0 %v3267, 32
        %v3371 = vpop.permute.xlu0 %3370
        %3372 = vrot.lane.b32.xlu0 %v3281, 32
        %v3373 = vpop.permute.xlu0 %3372
        %3374 = vrot.lane.b32.xlu0 %v3291, 32
        %v3375 = vpop.permute.xlu0 %3374
        %3376 = vrot.lane.b32.xlu0 %v3305, 32
        %v3377 = vpop.permute.xlu0 %3376
        %3378 = vrot.lane.b32.xlu0 %v3315, 32
        %v3379 = vpop.permute.xlu0 %3378
        %3412 = vst.msk [vmem:[#allocation3 + $0x4] sm:$0xf] %vm1694, %v3317
        %3413 = vst.msk [vmem:[#allocation3 + $0x10] sm:$0xf] %vm1694, %v3319
        %3414 = vst.msk [vmem:[#allocation3 + $0x1c] sm:$0xf] %vm1694, %v3321
        %3415 = vst.msk [vmem:[#allocation3 + $0x28] sm:$0xf] %vm1694, %v3323
        %3416 = vst.msk [vmem:[#allocation3 + $0x34] sm:$0xf] %vm1694, %v3325
        %3417 = vst.msk [vmem:[#allocation3 + $0x40] sm:$0xf] %vm1694, %v3327
        %3418 = vst.msk [vmem:[#allocation3 + $0x4c] sm:$0xf] %vm1694, %v3329
        %3419 = vst.msk [vmem:[#allocation3 + $0x58] sm:$0xf] %vm1694, %v3331
        %3420 = vst.msk [vmem:[#allocation3 + $0x64] sm:$0xf] %vm1694, %v3333
        %3421 = vst.msk [vmem:[#allocation3 + $0x70] sm:$0xf] %vm1694, %v3335
        %3422 = vst.msk [vmem:[#allocation3 + $0x7c] sm:$0xf] %vm1694, %v3337
        %3423 = vst.msk [vmem:[#allocation3 + $0x88] sm:$0xf] %vm1694, %v3339
        %3424 = vst.msk [vmem:[#allocation3 + $0x94] sm:$0xf] %vm1694, %v3341
        %3425 = vst.msk [vmem:[#allocation3 + $0xa0] sm:$0xf] %vm1694, %v3343
        %3426 = vst.msk [vmem:[#allocation3 + $0xac] sm:$0xf] %vm1694, %v3345
        %3427 = vst.msk [vmem:[#allocation3 + $0xb8] sm:$0xf] %vm1694, %v3347
        %3428 = vst.msk [vmem:[#allocation3 + $0xc4] sm:$0xf] %vm1694, %v3349
        %3429 = vst.msk [vmem:[#allocation3 + $0xd0] sm:$0xf] %vm1694, %v3351
        %3430 = vst.msk [vmem:[#allocation3 + $0xdc] sm:$0xf] %vm1694, %v3353
        %3431 = vst.msk [vmem:[#allocation3 + $0xe8] sm:$0xf] %vm1694, %v3355
        %3432 = vst.msk [vmem:[#allocation3 + $0xf4] sm:$0xf] %vm1694, %v3357
        %3433 = vst.msk [vmem:[#allocation3 + $0x100] sm:$0xf] %vm1694, %v3359
        %3434 = vst.msk [vmem:[#allocation3 + $0x10c] sm:$0xf] %vm1694, %v3361
        %3435 = vst.msk [vmem:[#allocation3 + $0x118] sm:$0xf] %vm1694, %v3363
        %3436 = vst.msk [vmem:[#allocation3 + $0x124] sm:$0xf] %vm1694, %v3365
        %3437 = vst.msk [vmem:[#allocation3 + $0x130] sm:$0xf] %vm1694, %v3367
        %3438 = vst.msk [vmem:[#allocation3 + $0x13c] sm:$0xf] %vm1694, %v3369
        %3439 = vst.msk [vmem:[#allocation3 + $0x148] sm:$0xf] %vm1694, %v3371
        %3440 = vst.msk [vmem:[#allocation3 + $0x154] sm:$0xf] %vm1694, %v3373
        %3441 = vst.msk [vmem:[#allocation3 + $0x160] sm:$0xf] %vm1694, %v3375
        %3442 = vst.msk [vmem:[#allocation3 + $0x16c] sm:$0xf] %vm1694, %v3377
        %3443 = vst.msk [vmem:[#allocation3 + $0x178] sm:$0xf] %vm1694, %v3379
        %s3444 = scalar_lea.vmem [#allocation2], 48
        %v3445 = vld [vmem:[%s3444 + $0x4] sm:$0x8]
        %v3446 = vld [vmem:[%s3444 + $0x8] sm:$0xf]
        %v3447 = vld [vmem:[%s3444 + $0xc] sm:$0xf]
        %v3448 = vld [vmem:[%s3444 + $0x1c] sm:$0x8]
        %v3449 = vld [vmem:[%s3444 + $0x20] sm:$0xf]
        %v3450 = vld [vmem:[%s3444 + $0x24] sm:$0xf]
        %v3451 = vld [vmem:[%s3444 + $0x34] sm:$0x8]
        %v3452 = vld [vmem:[%s3444 + $0x38] sm:$0xf]
        %v3453 = vld [vmem:[%s3444 + $0x3c] sm:$0xf]
        %v3454 = vld [vmem:[%s3444 + $0x4c] sm:$0x8]
        %v3455 = vld [vmem:[%s3444 + $0x50] sm:$0xf]
        %v3456 = vld [vmem:[%s3444 + $0x54] sm:$0xf]
        %v3457 = vld [vmem:[%s3444 + $0x64] sm:$0x8]
        %v3458 = vld [vmem:[%s3444 + $0x68] sm:$0xf]
        %v3459 = vld [vmem:[%s3444 + $0x6c] sm:$0xf]
        %v3460 = vld [vmem:[%s3444 + $0x7c] sm:$0x8]
        %v3461 = vld [vmem:[%s3444 + $0x80] sm:$0xf]
        %v3462 = vld [vmem:[%s3444 + $0x84] sm:$0xf]
        %v3463 = vld [vmem:[%s3444 + $0x94] sm:$0x8]
        %v3464 = vld [vmem:[%s3444 + $0x98] sm:$0xf]
        %v3465 = vld [vmem:[%s3444 + $0x9c] sm:$0xf]
        %v3466 = vld [vmem:[%s3444 + $0xac] sm:$0x8]
        %v3467 = vld [vmem:[%s3444 + $0xb0] sm:$0xf]
        %v3468 = vld [vmem:[%s3444 + $0xb4] sm:$0xf]
        %v3469 = vld [vmem:[%s3444 + $0xc4] sm:$0x8]
        %v3470 = vld [vmem:[%s3444 + $0xc8] sm:$0xf]
        %v3471 = vld [vmem:[%s3444 + $0xcc] sm:$0xf]
        %v3472 = vld [vmem:[%s3444 + $0xdc] sm:$0x8]
        %v3473 = vld [vmem:[%s3444 + $0xe0] sm:$0xf]
        %v3474 = vld [vmem:[%s3444 + $0xe4] sm:$0xf]
        %v3475 = vld [vmem:[%s3444 + $0xf4] sm:$0x8]
        %v3476 = vld [vmem:[%s3444 + $0xf8] sm:$0xf]
        %v3477 = vld [vmem:[%s3444 + $0xfc] sm:$0xf]
        %v3478 = vld [vmem:[%s3444 + $0x10c] sm:$0x8]
        %v3479 = vld [vmem:[%s3444 + $0x110] sm:$0xf]
        %v3480 = vld [vmem:[%s3444 + $0x114] sm:$0xf]
        %v3481 = vld [vmem:[%s3444 + $0x124] sm:$0x8]
        %v3482 = vld [vmem:[%s3444 + $0x128] sm:$0xf]
        %v3483 = vld [vmem:[%s3444 + $0x12c] sm:$0xf]
        %v3484 = vld [vmem:[%s3444 + $0x13c] sm:$0x8]
        %v3485 = vld [vmem:[%s3444 + $0x140] sm:$0xf]
        %v3486 = vld [vmem:[%s3444 + $0x144] sm:$0xf]
        %v3487 = vld [vmem:[%s3444 + $0x154] sm:$0x8]
        %v3488 = vld [vmem:[%s3444 + $0x158] sm:$0xf]
        %v3489 = vld [vmem:[%s3444 + $0x15c] sm:$0xf]
        %v3490 = vld [vmem:[%s3444 + $0x16c] sm:$0x8]
        %v3491 = vld [vmem:[%s3444 + $0x170] sm:$0xf]
        %v3492 = vld [vmem:[%s3444 + $0x174] sm:$0xf]
        %v3494 = vshrl.u32 %v3445, 16
        %v3496 = vrot.slane %v3494, 7
        %v3497 = vrot.slane %v3496, 4
        %v3499 = vshrl.u32 %v3446, 16
        %v3501 = vrot.slane %v3499, 7
        %v3502 = vshll.u32 %v3446, 16
        %v3504 = vor.u32 %v3501, %v3502
        %v3505 = vsel %vm1117, %v3497, %v3504
        %v3506 = vrot.slane %v3501, 4
        %v3508 = vshrl.u32 %v3447, 16
        %v3510 = vrot.slane %v3508, 7
        %v3511 = vshll.u32 %v3447, 16
        %v3513 = vor.u32 %v3510, %v3511
        %v3514 = vsel %vm1117, %v3506, %v3513
        %v3516 = vshrl.u32 %v3448, 16
        %v3518 = vrot.slane %v3516, 7
        %v3519 = vrot.slane %v3518, 4
        %v3521 = vshrl.u32 %v3449, 16
        %v3523 = vrot.slane %v3521, 7
        %v3524 = vshll.u32 %v3449, 16
        %v3526 = vor.u32 %v3523, %v3524
        %v3527 = vsel %vm1117, %v3519, %v3526
        %v3528 = vrot.slane %v3523, 4
        %v3530 = vshrl.u32 %v3450, 16
        %v3532 = vrot.slane %v3530, 7
        %v3533 = vshll.u32 %v3450, 16
        %v3535 = vor.u32 %v3532, %v3533
        %v3536 = vsel %vm1117, %v3528, %v3535
        %v3538 = vshrl.u32 %v3451, 16
        %v3540 = vrot.slane %v3538, 7
        %v3541 = vrot.slane %v3540, 4
        %v3543 = vshrl.u32 %v3452, 16
        %v3545 = vrot.slane %v3543, 7
        %v3546 = vshll.u32 %v3452, 16
        %v3548 = vor.u32 %v3545, %v3546
        %v3549 = vsel %vm1117, %v3541, %v3548
        %v3550 = vrot.slane %v3545, 4
        %v3552 = vshrl.u32 %v3453, 16
        %v3554 = vrot.slane %v3552, 7
        %v3555 = vshll.u32 %v3453, 16
        %v3557 = vor.u32 %v3554, %v3555
        %v3558 = vsel %vm1117, %v3550, %v3557
        %v3560 = vshrl.u32 %v3454, 16
        %v3562 = vrot.slane %v3560, 7
        %v3563 = vrot.slane %v3562, 4
        %v3565 = vshrl.u32 %v3455, 16
        %v3567 = vrot.slane %v3565, 7
        %v3568 = vshll.u32 %v3455, 16
        %v3570 = vor.u32 %v3567, %v3568
        %v3571 = vsel %vm1117, %v3563, %v3570
        %v3572 = vrot.slane %v3567, 4
        %v3574 = vshrl.u32 %v3456, 16
        %v3576 = vrot.slane %v3574, 7
        %v3577 = vshll.u32 %v3456, 16
        %v3579 = vor.u32 %v3576, %v3577
        %v3580 = vsel %vm1117, %v3572, %v3579
        %v3582 = vshrl.u32 %v3457, 16
        %v3584 = vrot.slane %v3582, 7
        %v3585 = vrot.slane %v3584, 4
        %v3587 = vshrl.u32 %v3458, 16
        %v3589 = vrot.slane %v3587, 7
        %v3590 = vshll.u32 %v3458, 16
        %v3592 = vor.u32 %v3589, %v3590
        %v3593 = vsel %vm1117, %v3585, %v3592
        %v3594 = vrot.slane %v3589, 4
        %v3596 = vshrl.u32 %v3459, 16
        %v3598 = vrot.slane %v3596, 7
        %v3599 = vshll.u32 %v3459, 16
        %v3601 = vor.u32 %v3598, %v3599
        %v3602 = vsel %vm1117, %v3594, %v3601
        %v3604 = vshrl.u32 %v3460, 16
        %v3606 = vrot.slane %v3604, 7
        %v3607 = vrot.slane %v3606, 4
        %v3609 = vshrl.u32 %v3461, 16
        %v3611 = vrot.slane %v3609, 7
        %v3612 = vshll.u32 %v3461, 16
        %v3614 = vor.u32 %v3611, %v3612
        %v3615 = vsel %vm1117, %v3607, %v3614
        %v3616 = vrot.slane %v3611, 4
        %v3618 = vshrl.u32 %v3462, 16
        %v3620 = vrot.slane %v3618, 7
        %v3621 = vshll.u32 %v3462, 16
        %v3623 = vor.u32 %v3620, %v3621
        %v3624 = vsel %vm1117, %v3616, %v3623
        %v3626 = vshrl.u32 %v3463, 16
        %v3628 = vrot.slane %v3626, 7
        %v3629 = vrot.slane %v3628, 4
        %v3631 = vshrl.u32 %v3464, 16
        %v3633 = vrot.slane %v3631, 7
        %v3634 = vshll.u32 %v3464, 16
        %v3636 = vor.u32 %v3633, %v3634
        %v3637 = vsel %vm1117, %v3629, %v3636
        %v3638 = vrot.slane %v3633, 4
        %v3640 = vshrl.u32 %v3465, 16
        %v3642 = vrot.slane %v3640, 7
        %v3643 = vshll.u32 %v3465, 16
        %v3645 = vor.u32 %v3642, %v3643
        %v3646 = vsel %vm1117, %v3638, %v3645
        %v3648 = vshrl.u32 %v3466, 16
        %v3650 = vrot.slane %v3648, 7
        %v3651 = vrot.slane %v3650, 4
        %v3653 = vshrl.u32 %v3467, 16
        %v3655 = vrot.slane %v3653, 7
        %v3656 = vshll.u32 %v3467, 16
        %v3658 = vor.u32 %v3655, %v3656
        %v3659 = vsel %vm1117, %v3651, %v3658
        %v3660 = vrot.slane %v3655, 4
        %v3662 = vshrl.u32 %v3468, 16
        %v3664 = vrot.slane %v3662, 7
        %v3665 = vshll.u32 %v3468, 16
        %v3667 = vor.u32 %v3664, %v3665
        %v3668 = vsel %vm1117, %v3660, %v3667
        %v3670 = vshrl.u32 %v3469, 16
        %v3672 = vrot.slane %v3670, 7
        %v3673 = vrot.slane %v3672, 4
        %v3675 = vshrl.u32 %v3470, 16
        %v3677 = vrot.slane %v3675, 7
        %v3678 = vshll.u32 %v3470, 16
        %v3680 = vor.u32 %v3677, %v3678
        %v3681 = vsel %vm1117, %v3673, %v3680
        %v3682 = vrot.slane %v3677, 4
        %v3684 = vshrl.u32 %v3471, 16
        %v3686 = vrot.slane %v3684, 7
        %v3687 = vshll.u32 %v3471, 16
        %v3689 = vor.u32 %v3686, %v3687
        %v3690 = vsel %vm1117, %v3682, %v3689
        %v3692 = vshrl.u32 %v3472, 16
        %v3694 = vrot.slane %v3692, 7
        %v3695 = vrot.slane %v3694, 4
        %v3697 = vshrl.u32 %v3473, 16
        %v3699 = vrot.slane %v3697, 7
        %v3700 = vshll.u32 %v3473, 16
        %v3702 = vor.u32 %v3699, %v3700
        %v3703 = vsel %vm1117, %v3695, %v3702
        %v3704 = vrot.slane %v3699, 4
        %v3706 = vshrl.u32 %v3474, 16
        %v3708 = vrot.slane %v3706, 7
        %v3709 = vshll.u32 %v3474, 16
        %v3711 = vor.u32 %v3708, %v3709
        %v3712 = vsel %vm1117, %v3704, %v3711
        %v3714 = vshrl.u32 %v3475, 16
        %v3716 = vrot.slane %v3714, 7
        %v3717 = vrot.slane %v3716, 4
        %v3719 = vshrl.u32 %v3476, 16
        %v3721 = vrot.slane %v3719, 7
        %v3722 = vshll.u32 %v3476, 16
        %v3724 = vor.u32 %v3721, %v3722
        %v3725 = vsel %vm1117, %v3717, %v3724
        %v3726 = vrot.slane %v3721, 4
        %v3728 = vshrl.u32 %v3477, 16
        %v3730 = vrot.slane %v3728, 7
        %v3731 = vshll.u32 %v3477, 16
        %v3733 = vor.u32 %v3730, %v3731
        %v3734 = vsel %vm1117, %v3726, %v3733
        %v3736 = vshrl.u32 %v3478, 16
        %v3738 = vrot.slane %v3736, 7
        %v3739 = vrot.slane %v3738, 4
        %v3741 = vshrl.u32 %v3479, 16
        %v3743 = vrot.slane %v3741, 7
        %v3744 = vshll.u32 %v3479, 16
        %v3746 = vor.u32 %v3743, %v3744
        %v3747 = vsel %vm1117, %v3739, %v3746
        %v3748 = vrot.slane %v3743, 4
        %v3750 = vshrl.u32 %v3480, 16
        %v3752 = vrot.slane %v3750, 7
        %v3753 = vshll.u32 %v3480, 16
        %v3755 = vor.u32 %v3752, %v3753
        %v3756 = vsel %vm1117, %v3748, %v3755
        %v3758 = vshrl.u32 %v3481, 16
        %v3760 = vrot.slane %v3758, 7
        %v3761 = vrot.slane %v3760, 4
        %v3763 = vshrl.u32 %v3482, 16
        %v3765 = vrot.slane %v3763, 7
        %v3766 = vshll.u32 %v3482, 16
        %v3768 = vor.u32 %v3765, %v3766
        %v3769 = vsel %vm1117, %v3761, %v3768
        %v3770 = vrot.slane %v3765, 4
        %v3772 = vshrl.u32 %v3483, 16
        %v3774 = vrot.slane %v3772, 7
        %v3775 = vshll.u32 %v3483, 16
        %v3777 = vor.u32 %v3774, %v3775
        %v3778 = vsel %vm1117, %v3770, %v3777
        %v3780 = vshrl.u32 %v3484, 16
        %v3782 = vrot.slane %v3780, 7
        %v3783 = vrot.slane %v3782, 4
        %v3785 = vshrl.u32 %v3485, 16
        %v3787 = vrot.slane %v3785, 7
        %v3788 = vshll.u32 %v3485, 16
        %v3790 = vor.u32 %v3787, %v3788
        %v3791 = vsel %vm1117, %v3783, %v3790
        %v3792 = vrot.slane %v3787, 4
        %v3794 = vshrl.u32 %v3486, 16
        %v3796 = vrot.slane %v3794, 7
        %v3797 = vshll.u32 %v3486, 16
        %v3799 = vor.u32 %v3796, %v3797
        %v3800 = vsel %vm1117, %v3792, %v3799
        %v3802 = vshrl.u32 %v3487, 16
        %v3804 = vrot.slane %v3802, 7
        %v3805 = vrot.slane %v3804, 4
        %v3807 = vshrl.u32 %v3488, 16
        %v3809 = vrot.slane %v3807, 7
        %v3810 = vshll.u32 %v3488, 16
        %v3812 = vor.u32 %v3809, %v3810
        %v3813 = vsel %vm1117, %v3805, %v3812
        %v3814 = vrot.slane %v3809, 4
        %v3816 = vshrl.u32 %v3489, 16
        %v3818 = vrot.slane %v3816, 7
        %v3819 = vshll.u32 %v3489, 16
        %v3821 = vor.u32 %v3818, %v3819
        %v3822 = vsel %vm1117, %v3814, %v3821
        %v3824 = vshrl.u32 %v3490, 16
        %v3826 = vrot.slane %v3824, 7
        %v3827 = vrot.slane %v3826, 4
        %v3829 = vshrl.u32 %v3491, 16
        %v3831 = vrot.slane %v3829, 7
        %v3832 = vshll.u32 %v3491, 16
        %v3834 = vor.u32 %v3831, %v3832
        %v3835 = vsel %vm1117, %v3827, %v3834
        %v3836 = vrot.slane %v3831, 4
        %v3838 = vshrl.u32 %v3492, 16
        %v3840 = vrot.slane %v3838, 7
        %v3841 = vshll.u32 %v3492, 16
        %v3843 = vor.u32 %v3840, %v3841
        %v3844 = vsel %vm1117, %v3836, %v3843
        %3845 = vrot.lane.b32.xlu0 %v3505, 64
        %v3846 = vpop.permute.xlu0 %3845
        %3847 = vrot.lane.b32.xlu0 %v3514, 64
        %v3848 = vpop.permute.xlu0 %3847
        %3849 = vrot.lane.b32.xlu0 %v3527, 64
        %v3850 = vpop.permute.xlu0 %3849
        %3851 = vrot.lane.b32.xlu0 %v3536, 64
        %v3852 = vpop.permute.xlu0 %3851
        %3853 = vrot.lane.b32.xlu0 %v3549, 64
        %v3854 = vpop.permute.xlu0 %3853
        %3855 = vrot.lane.b32.xlu0 %v3558, 64
        %v3856 = vpop.permute.xlu0 %3855
        %3857 = vrot.lane.b32.xlu0 %v3571, 64
        %v3858 = vpop.permute.xlu0 %3857
        %3859 = vrot.lane.b32.xlu0 %v3580, 64
        %v3860 = vpop.permute.xlu0 %3859
        %3861 = vrot.lane.b32.xlu0 %v3593, 64
        %v3862 = vpop.permute.xlu0 %3861
        %3863 = vrot.lane.b32.xlu0 %v3602, 64
        %v3864 = vpop.permute.xlu0 %3863
        %3865 = vrot.lane.b32.xlu0 %v3615, 64
        %v3866 = vpop.permute.xlu0 %3865
        %3867 = vrot.lane.b32.xlu0 %v3624, 64
        %v3868 = vpop.permute.xlu0 %3867
        %3869 = vrot.lane.b32.xlu0 %v3637, 64
        %v3870 = vpop.permute.xlu0 %3869
        %3871 = vrot.lane.b32.xlu0 %v3646, 64
        %v3872 = vpop.permute.xlu0 %3871
        %3873 = vrot.lane.b32.xlu0 %v3659, 64
        %v3874 = vpop.permute.xlu0 %3873
        %3875 = vrot.lane.b32.xlu0 %v3668, 64
        %v3876 = vpop.permute.xlu0 %3875
        %3877 = vrot.lane.b32.xlu0 %v3681, 64
        %v3878 = vpop.permute.xlu0 %3877
        %3879 = vrot.lane.b32.xlu0 %v3690, 64
        %v3880 = vpop.permute.xlu0 %3879
        %3881 = vrot.lane.b32.xlu0 %v3703, 64
        %v3882 = vpop.permute.xlu0 %3881
        %3883 = vrot.lane.b32.xlu0 %v3712, 64
        %v3884 = vpop.permute.xlu0 %3883
        %3885 = vrot.lane.b32.xlu0 %v3725, 64
        %v3886 = vpop.permute.xlu0 %3885
        %3887 = vrot.lane.b32.xlu0 %v3734, 64
        %v3888 = vpop.permute.xlu0 %3887
        %3889 = vrot.lane.b32.xlu0 %v3747, 64
        %v3890 = vpop.permute.xlu0 %3889
        %3891 = vrot.lane.b32.xlu0 %v3756, 64
        %v3892 = vpop.permute.xlu0 %3891
        %3893 = vrot.lane.b32.xlu0 %v3769, 64
        %v3894 = vpop.permute.xlu0 %3893
        %3895 = vrot.lane.b32.xlu0 %v3778, 64
        %v3896 = vpop.permute.xlu0 %3895
        %3897 = vrot.lane.b32.xlu0 %v3791, 64
        %v3898 = vpop.permute.xlu0 %3897
        %3899 = vrot.lane.b32.xlu0 %v3800, 64
        %v3900 = vpop.permute.xlu0 %3899
        %3901 = vrot.lane.b32.xlu0 %v3813, 64
        %v3902 = vpop.permute.xlu0 %3901
        %3903 = vrot.lane.b32.xlu0 %v3822, 64
        %v3904 = vpop.permute.xlu0 %3903
        %3905 = vrot.lane.b32.xlu0 %v3835, 64
        %v3906 = vpop.permute.xlu0 %3905
        %3907 = vrot.lane.b32.xlu0 %v3844, 64
        %v3908 = vpop.permute.xlu0 %3907
        %3941 = vst.msk [vmem:[#allocation3 + $0x4] sm:$0xf] %vm2258, %v3846
        %3942 = vst.msk [vmem:[#allocation3 + $0x10] sm:$0xf] %vm2258, %v3848
        %3943 = vst.msk [vmem:[#allocation3 + $0x1c] sm:$0xf] %vm2258, %v3850
        %3944 = vst.msk [vmem:[#allocation3 + $0x28] sm:$0xf] %vm2258, %v3852
        %3945 = vst.msk [vmem:[#allocation3 + $0x34] sm:$0xf] %vm2258, %v3854
        %3946 = vst.msk [vmem:[#allocation3 + $0x40] sm:$0xf] %vm2258, %v3856
        %3947 = vst.msk [vmem:[#allocation3 + $0x4c] sm:$0xf] %vm2258, %v3858
        %3948 = vst.msk [vmem:[#allocation3 + $0x58] sm:$0xf] %vm2258, %v3860
        %3949 = vst.msk [vmem:[#allocation3 + $0x64] sm:$0xf] %vm2258, %v3862
        %3950 = vst.msk [vmem:[#allocation3 + $0x70] sm:$0xf] %vm2258, %v3864
        %3951 = vst.msk [vmem:[#allocation3 + $0x7c] sm:$0xf] %vm2258, %v3866
        %3952 = vst.msk [vmem:[#allocation3 + $0x88] sm:$0xf] %vm2258, %v3868
        %3953 = vst.msk [vmem:[#allocation3 + $0x94] sm:$0xf] %vm2258, %v3870
        %3954 = vst.msk [vmem:[#allocation3 + $0xa0] sm:$0xf] %vm2258, %v3872
        %3955 = vst.msk [vmem:[#allocation3 + $0xac] sm:$0xf] %vm2258, %v3874
        %3956 = vst.msk [vmem:[#allocation3 + $0xb8] sm:$0xf] %vm2258, %v3876
        %3957 = vst.msk [vmem:[#allocation3 + $0xc4] sm:$0xf] %vm2258, %v3878
        %3958 = vst.msk [vmem:[#allocation3 + $0xd0] sm:$0xf] %vm2258, %v3880
        %3959 = vst.msk [vmem:[#allocation3 + $0xdc] sm:$0xf] %vm2258, %v3882
        %3960 = vst.msk [vmem:[#allocation3 + $0xe8] sm:$0xf] %vm2258, %v3884
        %3961 = vst.msk [vmem:[#allocation3 + $0xf4] sm:$0xf] %vm2258, %v3886
        %3962 = vst.msk [vmem:[#allocation3 + $0x100] sm:$0xf] %vm2258, %v3888
        %3963 = vst.msk [vmem:[#allocation3 + $0x10c] sm:$0xf] %vm2258, %v3890
        %3964 = vst.msk [vmem:[#allocation3 + $0x118] sm:$0xf] %vm2258, %v3892
        %3965 = vst.msk [vmem:[#allocation3 + $0x124] sm:$0xf] %vm2258, %v3894
        %3966 = vst.msk [vmem:[#allocation3 + $0x130] sm:$0xf] %vm2258, %v3896
        %3967 = vst.msk [vmem:[#allocation3 + $0x13c] sm:$0xf] %vm2258, %v3898
        %3968 = vst.msk [vmem:[#allocation3 + $0x148] sm:$0xf] %vm2258, %v3900
        %3969 = vst.msk [vmem:[#allocation3 + $0x154] sm:$0xf] %vm2258, %v3902
        %3970 = vst.msk [vmem:[#allocation3 + $0x160] sm:$0xf] %vm2258, %v3904
        %3971 = vst.msk [vmem:[#allocation3 + $0x16c] sm:$0xf] %vm2258, %v3906
        %3972 = vst.msk [vmem:[#allocation3 + $0x178] sm:$0xf] %vm2258, %v3908
        %v3973 = vld [vmem:[%s3444 + $0x8] sm:$0xf]
        %v3974 = vld [vmem:[%s3444 + $0xc] sm:$0xf]
        %v3975 = vld [vmem:[%s3444 + $0x20] sm:$0xf]
        %v3976 = vld [vmem:[%s3444 + $0x24] sm:$0xf]
        %v3977 = vld [vmem:[%s3444 + $0x38] sm:$0xf]
        %v3978 = vld [vmem:[%s3444 + $0x3c] sm:$0xf]
        %v3979 = vld [vmem:[%s3444 + $0x50] sm:$0xf]
        %v3980 = vld [vmem:[%s3444 + $0x54] sm:$0xf]
        %v3981 = vld [vmem:[%s3444 + $0x68] sm:$0xf]
        %v3982 = vld [vmem:[%s3444 + $0x6c] sm:$0xf]
        %v3983 = vld [vmem:[%s3444 + $0x80] sm:$0xf]
        %v3984 = vld [vmem:[%s3444 + $0x84] sm:$0xf]
        %v3985 = vld [vmem:[%s3444 + $0x98] sm:$0xf]
        %v3986 = vld [vmem:[%s3444 + $0x9c] sm:$0xf]
        %v3987 = vld [vmem:[%s3444 + $0xb0] sm:$0xf]
        %v3988 = vld [vmem:[%s3444 + $0xb4] sm:$0xf]
        %v3989 = vld [vmem:[%s3444 + $0xc8] sm:$0xf]
        %v3990 = vld [vmem:[%s3444 + $0xcc] sm:$0xf]
        %v3991 = vld [vmem:[%s3444 + $0xe0] sm:$0xf]
        %v3992 = vld [vmem:[%s3444 + $0xe4] sm:$0xf]
        %v3993 = vld [vmem:[%s3444 + $0xf8] sm:$0xf]
        %v3994 = vld [vmem:[%s3444 + $0xfc] sm:$0xf]
        %v3995 = vld [vmem:[%s3444 + $0x110] sm:$0xf]
        %v3996 = vld [vmem:[%s3444 + $0x114] sm:$0xf]
        %v3997 = vld [vmem:[%s3444 + $0x128] sm:$0xf]
        %v3998 = vld [vmem:[%s3444 + $0x12c] sm:$0xf]
        %v3999 = vld [vmem:[%s3444 + $0x140] sm:$0xf]
        %v4000 = vld [vmem:[%s3444 + $0x144] sm:$0xf]
        %v4001 = vld [vmem:[%s3444 + $0x158] sm:$0xf]
        %v4002 = vld [vmem:[%s3444 + $0x15c] sm:$0xf]
        %v4003 = vld [vmem:[%s3444 + $0x170] sm:$0xf]
        %v4004 = vld [vmem:[%s3444 + $0x174] sm:$0xf]
        %4037 = vrot.lane.b32.xlu0 %v3973, 96
        %v4038 = vpop.permute.xlu0 %4037
        %4039 = vrot.lane.b32.xlu0 %v3974, 96
        %v4040 = vpop.permute.xlu0 %4039
        %4041 = vrot.lane.b32.xlu0 %v3975, 96
        %v4042 = vpop.permute.xlu0 %4041
        %4043 = vrot.lane.b32.xlu0 %v3976, 96
        %v4044 = vpop.permute.xlu0 %4043
        %4045 = vrot.lane.b32.xlu0 %v3977, 96
        %v4046 = vpop.permute.xlu0 %4045
        %4047 = vrot.lane.b32.xlu0 %v3978, 96
        %v4048 = vpop.permute.xlu0 %4047
        %4049 = vrot.lane.b32.xlu0 %v3979, 96
        %v4050 = vpop.permute.xlu0 %4049
        %4051 = vrot.lane.b32.xlu0 %v3980, 96
        %v4052 = vpop.permute.xlu0 %4051
        %4053 = vrot.lane.b32.xlu0 %v3981, 96
        %v4054 = vpop.permute.xlu0 %4053
        %4055 = vrot.lane.b32.xlu0 %v3982, 96
        %v4056 = vpop.permute.xlu0 %4055
        %4057 = vrot.lane.b32.xlu0 %v3983, 96
        %v4058 = vpop.permute.xlu0 %4057
        %4059 = vrot.lane.b32.xlu0 %v3984, 96
        %v4060 = vpop.permute.xlu0 %4059
        %4061 = vrot.lane.b32.xlu0 %v3985, 96
        %v4062 = vpop.permute.xlu0 %4061
        %4063 = vrot.lane.b32.xlu0 %v3986, 96
        %v4064 = vpop.permute.xlu0 %4063
        %4065 = vrot.lane.b32.xlu0 %v3987, 96
        %v4066 = vpop.permute.xlu0 %4065
        %4067 = vrot.lane.b32.xlu0 %v3988, 96
        %v4068 = vpop.permute.xlu0 %4067
        %4069 = vrot.lane.b32.xlu0 %v3989, 96
        %v4070 = vpop.permute.xlu0 %4069
        %4071 = vrot.lane.b32.xlu0 %v3990, 96
        %v4072 = vpop.permute.xlu0 %4071
        %4073 = vrot.lane.b32.xlu0 %v3991, 96
        %v4074 = vpop.permute.xlu0 %4073
        %4075 = vrot.lane.b32.xlu0 %v3992, 96
        %v4076 = vpop.permute.xlu0 %4075
        %4077 = vrot.lane.b32.xlu0 %v3993, 96
        %v4078 = vpop.permute.xlu0 %4077
        %4079 = vrot.lane.b32.xlu0 %v3994, 96
        %v4080 = vpop.permute.xlu0 %4079
        %4081 = vrot.lane.b32.xlu0 %v3995, 96
        %v4082 = vpop.permute.xlu0 %4081
        %4083 = vrot.lane.b32.xlu0 %v3996, 96
        %v4084 = vpop.permute.xlu0 %4083
        %4085 = vrot.lane.b32.xlu0 %v3997, 96
        %v4086 = vpop.permute.xlu0 %4085
        %4087 = vrot.lane.b32.xlu0 %v3998, 96
        %v4088 = vpop.permute.xlu0 %4087
        %4089 = vrot.lane.b32.xlu0 %v3999, 96
        %v4090 = vpop.permute.xlu0 %4089
        %4091 = vrot.lane.b32.xlu0 %v4000, 96
        %v4092 = vpop.permute.xlu0 %4091
        %4093 = vrot.lane.b32.xlu0 %v4001, 96
        %v4094 = vpop.permute.xlu0 %4093
        %4095 = vrot.lane.b32.xlu0 %v4002, 96
        %v4096 = vpop.permute.xlu0 %4095
        %4097 = vrot.lane.b32.xlu0 %v4003, 96
        %v4098 = vpop.permute.xlu0 %4097
        %4099 = vrot.lane.b32.xlu0 %v4004, 96
        %v4100 = vpop.permute.xlu0 %4099
        %4133 = vst.msk [vmem:[#allocation3 + $0x4] sm:$0xf] %vm2787, %v4038
        %4134 = vst.msk [vmem:[#allocation3 + $0x10] sm:$0xf] %vm2787, %v4040
        %4135 = vst.msk [vmem:[#allocation3 + $0x1c] sm:$0xf] %vm2787, %v4042
        %4136 = vst.msk [vmem:[#allocation3 + $0x28] sm:$0xf] %vm2787, %v4044
        %4137 = vst.msk [vmem:[#allocation3 + $0x34] sm:$0xf] %vm2787, %v4046
        %4138 = vst.msk [vmem:[#allocation3 + $0x40] sm:$0xf] %vm2787, %v4048
        %4139 = vst.msk [vmem:[#allocation3 + $0x4c] sm:$0xf] %vm2787, %v4050
        %4140 = vst.msk [vmem:[#allocation3 + $0x58] sm:$0xf] %vm2787, %v4052
        %4141 = vst.msk [vmem:[#allocation3 + $0x64] sm:$0xf] %vm2787, %v4054
        %4142 = vst.msk [vmem:[#allocation3 + $0x70] sm:$0xf] %vm2787, %v4056
        %4143 = vst.msk [vmem:[#allocation3 + $0x7c] sm:$0xf] %vm2787, %v4058
        %4144 = vst.msk [vmem:[#allocation3 + $0x88] sm:$0xf] %vm2787, %v4060
        %4145 = vst.msk [vmem:[#allocation3 + $0x94] sm:$0xf] %vm2787, %v4062
        %4146 = vst.msk [vmem:[#allocation3 + $0xa0] sm:$0xf] %vm2787, %v4064
        %4147 = vst.msk [vmem:[#allocation3 + $0xac] sm:$0xf] %vm2787, %v4066
        %4148 = vst.msk [vmem:[#allocation3 + $0xb8] sm:$0xf] %vm2787, %v4068
        %4149 = vst.msk [vmem:[#allocation3 + $0xc4] sm:$0xf] %vm2787, %v4070
        %4150 = vst.msk [vmem:[#allocation3 + $0xd0] sm:$0xf] %vm2787, %v4072
        %4151 = vst.msk [vmem:[#allocation3 + $0xdc] sm:$0xf] %vm2787, %v4074
        %4152 = vst.msk [vmem:[#allocation3 + $0xe8] sm:$0xf] %vm2787, %v4076
        %4153 = vst.msk [vmem:[#allocation3 + $0xf4] sm:$0xf] %vm2787, %v4078
        %4154 = vst.msk [vmem:[#allocation3 + $0x100] sm:$0xf] %vm2787, %v4080
        %4155 = vst.msk [vmem:[#allocation3 + $0x10c] sm:$0xf] %vm2787, %v4082
        %4156 = vst.msk [vmem:[#allocation3 + $0x118] sm:$0xf] %vm2787, %v4084
        %4157 = vst.msk [vmem:[#allocation3 + $0x124] sm:$0xf] %vm2787, %v4086
        %4158 = vst.msk [vmem:[#allocation3 + $0x130] sm:$0xf] %vm2787, %v4088
        %4159 = vst.msk [vmem:[#allocation3 + $0x13c] sm:$0xf] %vm2787, %v4090
        %4160 = vst.msk [vmem:[#allocation3 + $0x148] sm:$0xf] %vm2787, %v4092
        %4161 = vst.msk [vmem:[#allocation3 + $0x154] sm:$0xf] %vm2787, %v4094
        %4162 = vst.msk [vmem:[#allocation3 + $0x160] sm:$0xf] %vm2787, %v4096
        %4163 = vst.msk [vmem:[#allocation3 + $0x16c] sm:$0xf] %vm2787, %v4098
        %4164 = vst.msk [vmem:[#allocation3 + $0x178] sm:$0xf] %vm2787, %v4100
        %v4165 = vld [vmem:[%s3444 + $0x8] sm:$0xf]
        %v4166 = vld [vmem:[%s3444 + $0xc] sm:$0xf]
        %v4167 = vld [vmem:[%s3444 + $0x10] sm:$0x1]
        %v4168 = vld [vmem:[%s3444 + $0x20] sm:$0xf]
        %v4169 = vld [vmem:[%s3444 + $0x24] sm:$0xf]
        %v4170 = vld [vmem:[%s3444 + $0x28] sm:$0x1]
        %v4171 = vld [vmem:[%s3444 + $0x38] sm:$0xf]
        %v4172 = vld [vmem:[%s3444 + $0x3c] sm:$0xf]
        %v4173 = vld [vmem:[%s3444 + $0x40] sm:$0x1]
        %v4174 = vld [vmem:[%s3444 + $0x50] sm:$0xf]
        %v4175 = vld [vmem:[%s3444 + $0x54] sm:$0xf]
        %v4176 = vld [vmem:[%s3444 + $0x58] sm:$0x1]
        %v4177 = vld [vmem:[%s3444 + $0x68] sm:$0xf]
        %v4178 = vld [vmem:[%s3444 + $0x6c] sm:$0xf]
        %v4179 = vld [vmem:[%s3444 + $0x70] sm:$0x1]
        %v4180 = vld [vmem:[%s3444 + $0x80] sm:$0xf]
        %v4181 = vld [vmem:[%s3444 + $0x84] sm:$0xf]
        %v4182 = vld [vmem:[%s3444 + $0x88] sm:$0x1]
        %v4183 = vld [vmem:[%s3444 + $0x98] sm:$0xf]
        %v4184 = vld [vmem:[%s3444 + $0x9c] sm:$0xf]
        %v4185 = vld [vmem:[%s3444 + $0xa0] sm:$0x1]
        %v4186 = vld [vmem:[%s3444 + $0xb0] sm:$0xf]
        %v4187 = vld [vmem:[%s3444 + $0xb4] sm:$0xf]
        %v4188 = vld [vmem:[%s3444 + $0xb8] sm:$0x1]
        %v4189 = vld [vmem:[%s3444 + $0xc8] sm:$0xf]
        %v4190 = vld [vmem:[%s3444 + $0xcc] sm:$0xf]
        %v4191 = vld [vmem:[%s3444 + $0xd0] sm:$0x1]
        %v4192 = vld [vmem:[%s3444 + $0xe0] sm:$0xf]
        %v4193 = vld [vmem:[%s3444 + $0xe4] sm:$0xf]
        %v4194 = vld [vmem:[%s3444 + $0xe8] sm:$0x1]
        %v4195 = vld [vmem:[%s3444 + $0xf8] sm:$0xf]
        %v4196 = vld [vmem:[%s3444 + $0xfc] sm:$0xf]
        %v4197 = vld [vmem:[%s3444 + $0x100] sm:$0x1]
        %v4198 = vld [vmem:[%s3444 + $0x110] sm:$0xf]
        %v4199 = vld [vmem:[%s3444 + $0x114] sm:$0xf]
        %v4200 = vld [vmem:[%s3444 + $0x118] sm:$0x1]
        %v4201 = vld [vmem:[%s3444 + $0x128] sm:$0xf]
        %v4202 = vld [vmem:[%s3444 + $0x12c] sm:$0xf]
        %v4203 = vld [vmem:[%s3444 + $0x130] sm:$0x1]
        %v4204 = vld [vmem:[%s3444 + $0x140] sm:$0xf]
        %v4205 = vld [vmem:[%s3444 + $0x144] sm:$0xf]
        %v4206 = vld [vmem:[%s3444 + $0x148] sm:$0x1]
        %v4207 = vld [vmem:[%s3444 + $0x158] sm:$0xf]
        %v4208 = vld [vmem:[%s3444 + $0x15c] sm:$0xf]
        %v4209 = vld [vmem:[%s3444 + $0x160] sm:$0x1]
        %v4210 = vld [vmem:[%s3444 + $0x170] sm:$0xf]
        %v4211 = vld [vmem:[%s3444 + $0x174] sm:$0xf]
        %v4212 = vld [vmem:[%s3444 + $0x178] sm:$0x1]
        %v4214 = vshrl.u32 %v4165, 16
        %v4216 = vrot.slane %v4214, 4
        %v4217 = vshll.u32 %v4165, 16
        %v4219 = vrot.slane %v4217, 5
        %v4220 = vor.u32 %v4216, %v4219
        %v4221 = vrot.slane %v4220, 4
        %v4223 = vshll.u32 %v4166, 16
        %v4225 = vrot.slane %v4223, 5
        %v4226 = vsel %vm1777, %v4221, %v4225
        %v4227 = vshrl.u32 %v4166, 16
        %v4229 = vrot.slane %v4227, 4
        %v4230 = vor.u32 %v4229, %v4225
        %v4231 = vrot.slane %v4230, 4
        %v4233 = vshll.u32 %v4167, 16
        %v4235 = vrot.slane %v4233, 5
        %v4236 = vsel %vm1777, %v4231, %v4235
        %v4238 = vshrl.u32 %v4168, 16
        %v4240 = vrot.slane %v4238, 4
        %v4241 = vshll.u32 %v4168, 16
        %v4243 = vrot.slane %v4241, 5
        %v4244 = vor.u32 %v4240, %v4243
        %v4245 = vrot.slane %v4244, 4
        %v4247 = vshll.u32 %v4169, 16
        %v4249 = vrot.slane %v4247, 5
        %v4250 = vsel %vm1777, %v4245, %v4249
        %v4251 = vshrl.u32 %v4169, 16
        %v4253 = vrot.slane %v4251, 4
        %v4254 = vor.u32 %v4253, %v4249
        %v4255 = vrot.slane %v4254, 4
        %v4257 = vshll.u32 %v4170, 16
        %v4259 = vrot.slane %v4257, 5
        %v4260 = vsel %vm1777, %v4255, %v4259
        %v4262 = vshrl.u32 %v4171, 16
        %v4264 = vrot.slane %v4262, 4
        %v4265 = vshll.u32 %v4171, 16
        %v4267 = vrot.slane %v4265, 5
        %v4268 = vor.u32 %v4264, %v4267
        %v4269 = vrot.slane %v4268, 4
        %v4271 = vshll.u32 %v4172, 16
        %v4273 = vrot.slane %v4271, 5
        %v4274 = vsel %vm1777, %v4269, %v4273
        %v4275 = vshrl.u32 %v4172, 16
        %v4277 = vrot.slane %v4275, 4
        %v4278 = vor.u32 %v4277, %v4273
        %v4279 = vrot.slane %v4278, 4
        %v4281 = vshll.u32 %v4173, 16
        %v4283 = vrot.slane %v4281, 5
        %v4284 = vsel %vm1777, %v4279, %v4283
        %v4286 = vshrl.u32 %v4174, 16
        %v4288 = vrot.slane %v4286, 4
        %v4289 = vshll.u32 %v4174, 16
        %v4291 = vrot.slane %v4289, 5
        %v4292 = vor.u32 %v4288, %v4291
        %v4293 = vrot.slane %v4292, 4
        %v4295 = vshll.u32 %v4175, 16
        %v4297 = vrot.slane %v4295, 5
        %v4298 = vsel %vm1777, %v4293, %v4297
        %v4299 = vshrl.u32 %v4175, 16
        %v4301 = vrot.slane %v4299, 4
        %v4302 = vor.u32 %v4301, %v4297
        %v4303 = vrot.slane %v4302, 4
        %v4305 = vshll.u32 %v4176, 16
        %v4307 = vrot.slane %v4305, 5
        %v4308 = vsel %vm1777, %v4303, %v4307
        %v4310 = vshrl.u32 %v4177, 16
        %v4312 = vrot.slane %v4310, 4
        %v4313 = vshll.u32 %v4177, 16
        %v4315 = vrot.slane %v4313, 5
        %v4316 = vor.u32 %v4312, %v4315
        %v4317 = vrot.slane %v4316, 4
        %v4319 = vshll.u32 %v4178, 16
        %v4321 = vrot.slane %v4319, 5
        %v4322 = vsel %vm1777, %v4317, %v4321
        %v4323 = vshrl.u32 %v4178, 16
        %v4325 = vrot.slane %v4323, 4
        %v4326 = vor.u32 %v4325, %v4321
        %v4327 = vrot.slane %v4326, 4
        %v4329 = vshll.u32 %v4179, 16
        %v4331 = vrot.slane %v4329, 5
        %v4332 = vsel %vm1777, %v4327, %v4331
        %v4334 = vshrl.u32 %v4180, 16
        %v4336 = vrot.slane %v4334, 4
        %v4337 = vshll.u32 %v4180, 16
        %v4339 = vrot.slane %v4337, 5
        %v4340 = vor.u32 %v4336, %v4339
        %v4341 = vrot.slane %v4340, 4
        %v4343 = vshll.u32 %v4181, 16
        %v4345 = vrot.slane %v4343, 5
        %v4346 = vsel %vm1777, %v4341, %v4345
        %v4347 = vshrl.u32 %v4181, 16
        %v4349 = vrot.slane %v4347, 4
        %v4350 = vor.u32 %v4349, %v4345
        %v4351 = vrot.slane %v4350, 4
        %v4353 = vshll.u32 %v4182, 16
        %v4355 = vrot.slane %v4353, 5
        %v4356 = vsel %vm1777, %v4351, %v4355
        %v4358 = vshrl.u32 %v4183, 16
        %v4360 = vrot.slane %v4358, 4
        %v4361 = vshll.u32 %v4183, 16
        %v4363 = vrot.slane %v4361, 5
        %v4364 = vor.u32 %v4360, %v4363
        %v4365 = vrot.slane %v4364, 4
        %v4367 = vshll.u32 %v4184, 16
        %v4369 = vrot.slane %v4367, 5
        %v4370 = vsel %vm1777, %v4365, %v4369
        %v4371 = vshrl.u32 %v4184, 16
        %v4373 = vrot.slane %v4371, 4
        %v4374 = vor.u32 %v4373, %v4369
        %v4375 = vrot.slane %v4374, 4
        %v4377 = vshll.u32 %v4185, 16
        %v4379 = vrot.slane %v4377, 5
        %v4380 = vsel %vm1777, %v4375, %v4379
        %v4382 = vshrl.u32 %v4186, 16
        %v4384 = vrot.slane %v4382, 4
        %v4385 = vshll.u32 %v4186, 16
        %v4387 = vrot.slane %v4385, 5
        %v4388 = vor.u32 %v4384, %v4387
        %v4389 = vrot.slane %v4388, 4
        %v4391 = vshll.u32 %v4187, 16
        %v4393 = vrot.slane %v4391, 5
        %v4394 = vsel %vm1777, %v4389, %v4393
        %v4395 = vshrl.u32 %v4187, 16
        %v4397 = vrot.slane %v4395, 4
        %v4398 = vor.u32 %v4397, %v4393
        %v4399 = vrot.slane %v4398, 4
        %v4401 = vshll.u32 %v4188, 16
        %v4403 = vrot.slane %v4401, 5
        %v4404 = vsel %vm1777, %v4399, %v4403
        %v4406 = vshrl.u32 %v4189, 16
        %v4408 = vrot.slane %v4406, 4
        %v4409 = vshll.u32 %v4189, 16
        %v4411 = vrot.slane %v4409, 5
        %v4412 = vor.u32 %v4408, %v4411
        %v4413 = vrot.slane %v4412, 4
        %v4415 = vshll.u32 %v4190, 16
        %v4417 = vrot.slane %v4415, 5
        %v4418 = vsel %vm1777, %v4413, %v4417
        %v4419 = vshrl.u32 %v4190, 16
        %v4421 = vrot.slane %v4419, 4
        %v4422 = vor.u32 %v4421, %v4417
        %v4423 = vrot.slane %v4422, 4
        %v4425 = vshll.u32 %v4191, 16
        %v4427 = vrot.slane %v4425, 5
        %v4428 = vsel %vm1777, %v4423, %v4427
        %v4430 = vshrl.u32 %v4192, 16
        %v4432 = vrot.slane %v4430, 4
        %v4433 = vshll.u32 %v4192, 16
        %v4435 = vrot.slane %v4433, 5
        %v4436 = vor.u32 %v4432, %v4435
        %v4437 = vrot.slane %v4436, 4
        %v4439 = vshll.u32 %v4193, 16
        %v4441 = vrot.slane %v4439, 5
        %v4442 = vsel %vm1777, %v4437, %v4441
        %v4443 = vshrl.u32 %v4193, 16
        %v4445 = vrot.slane %v4443, 4
        %v4446 = vor.u32 %v4445, %v4441
        %v4447 = vrot.slane %v4446, 4
        %v4449 = vshll.u32 %v4194, 16
        %v4451 = vrot.slane %v4449, 5
        %v4452 = vsel %vm1777, %v4447, %v4451
        %v4454 = vshrl.u32 %v4195, 16
        %v4456 = vrot.slane %v4454, 4
        %v4457 = vshll.u32 %v4195, 16
        %v4459 = vrot.slane %v4457, 5
        %v4460 = vor.u32 %v4456, %v4459
        %v4461 = vrot.slane %v4460, 4
        %v4463 = vshll.u32 %v4196, 16
        %v4465 = vrot.slane %v4463, 5
        %v4466 = vsel %vm1777, %v4461, %v4465
        %v4467 = vshrl.u32 %v4196, 16
        %v4469 = vrot.slane %v4467, 4
        %v4470 = vor.u32 %v4469, %v4465
        %v4471 = vrot.slane %v4470, 4
        %v4473 = vshll.u32 %v4197, 16
        %v4475 = vrot.slane %v4473, 5
        %v4476 = vsel %vm1777, %v4471, %v4475
        %v4478 = vshrl.u32 %v4198, 16
        %v4480 = vrot.slane %v4478, 4
        %v4481 = vshll.u32 %v4198, 16
        %v4483 = vrot.slane %v4481, 5
        %v4484 = vor.u32 %v4480, %v4483
        %v4485 = vrot.slane %v4484, 4
        %v4487 = vshll.u32 %v4199, 16
        %v4489 = vrot.slane %v4487, 5
        %v4490 = vsel %vm1777, %v4485, %v4489
        %v4491 = vshrl.u32 %v4199, 16
        %v4493 = vrot.slane %v4491, 4
        %v4494 = vor.u32 %v4493, %v4489
        %v4495 = vrot.slane %v4494, 4
        %v4497 = vshll.u32 %v4200, 16
        %v4499 = vrot.slane %v4497, 5
        %v4500 = vsel %vm1777, %v4495, %v4499
        %v4502 = vshrl.u32 %v4201, 16
        %v4504 = vrot.slane %v4502, 4
        %v4505 = vshll.u32 %v4201, 16
        %v4507 = vrot.slane %v4505, 5
        %v4508 = vor.u32 %v4504, %v4507
        %v4509 = vrot.slane %v4508, 4
        %v4511 = vshll.u32 %v4202, 16
        %v4513 = vrot.slane %v4511, 5
        %v4514 = vsel %vm1777, %v4509, %v4513
        %v4515 = vshrl.u32 %v4202, 16
        %v4517 = vrot.slane %v4515, 4
        %v4518 = vor.u32 %v4517, %v4513
        %v4519 = vrot.slane %v4518, 4
        %v4521 = vshll.u32 %v4203, 16
        %v4523 = vrot.slane %v4521, 5
        %v4524 = vsel %vm1777, %v4519, %v4523
        %v4526 = vshrl.u32 %v4204, 16
        %v4528 = vrot.slane %v4526, 4
        %v4529 = vshll.u32 %v4204, 16
        %v4531 = vrot.slane %v4529, 5
        %v4532 = vor.u32 %v4528, %v4531
        %v4533 = vrot.slane %v4532, 4
        %v4535 = vshll.u32 %v4205, 16
        %v4537 = vrot.slane %v4535, 5
        %v4538 = vsel %vm1777, %v4533, %v4537
        %v4539 = vshrl.u32 %v4205, 16
        %v4541 = vrot.slane %v4539, 4
        %v4542 = vor.u32 %v4541, %v4537
        %v4543 = vrot.slane %v4542, 4
        %v4545 = vshll.u32 %v4206, 16
        %v4547 = vrot.slane %v4545, 5
        %v4548 = vsel %vm1777, %v4543, %v4547
        %v4550 = vshrl.u32 %v4207, 16
        %v4552 = vrot.slane %v4550, 4
        %v4553 = vshll.u32 %v4207, 16
        %v4555 = vrot.slane %v4553, 5
        %v4556 = vor.u32 %v4552, %v4555
        %v4557 = vrot.slane %v4556, 4
        %v4559 = vshll.u32 %v4208, 16
        %v4561 = vrot.slane %v4559, 5
        %v4562 = vsel %vm1777, %v4557, %v4561
        %v4563 = vshrl.u32 %v4208, 16
        %v4565 = vrot.slane %v4563, 4
        %v4566 = vor.u32 %v4565, %v4561
        %v4567 = vrot.slane %v4566, 4
        %v4569 = vshll.u32 %v4209, 16
        %v4571 = vrot.slane %v4569, 5
        %v4572 = vsel %vm1777, %v4567, %v4571
        %v4574 = vshrl.u32 %v4210, 16
        %v4576 = vrot.slane %v4574, 4
        %v4577 = vshll.u32 %v4210, 16
        %v4579 = vrot.slane %v4577, 5
        %v4580 = vor.u32 %v4576, %v4579
        %v4581 = vrot.slane %v4580, 4
        %v4583 = vshll.u32 %v4211, 16
        %v4585 = vrot.slane %v4583, 5
        %v4586 = vsel %vm1777, %v4581, %v4585
        %v4587 = vshrl.u32 %v4211, 16
        %v4589 = vrot.slane %v4587, 4
        %v4590 = vor.u32 %v4589, %v4585
        %v4591 = vrot.slane %v4590, 4
        %v4593 = vshll.u32 %v4212, 16
        %v4595 = vrot.slane %v4593, 5
        %v4596 = vsel %vm1777, %v4591, %v4595
        %4629 = vst.msk [vmem:[#allocation3 + $0x8] sm:$0xf] %vm820, %v4226
        %4630 = vst.msk [vmem:[#allocation3 + $0x14] sm:$0xf] %vm820, %v4236
        %4631 = vst.msk [vmem:[#allocation3 + $0x20] sm:$0xf] %vm820, %v4250
        %4632 = vst.msk [vmem:[#allocation3 + $0x2c] sm:$0xf] %vm820, %v4260
        %4633 = vst.msk [vmem:[#allocation3 + $0x38] sm:$0xf] %vm820, %v4274
        %4634 = vst.msk [vmem:[#allocation3 + $0x44] sm:$0xf] %vm820, %v4284
        %4635 = vst.msk [vmem:[#allocation3 + $0x50] sm:$0xf] %vm820, %v4298
        %4636 = vst.msk [vmem:[#allocation3 + $0x5c] sm:$0xf] %vm820, %v4308
        %4637 = vst.msk [vmem:[#allocation3 + $0x68] sm:$0xf] %vm820, %v4322
        %4638 = vst.msk [vmem:[#allocation3 + $0x74] sm:$0xf] %vm820, %v4332
        %4639 = vst.msk [vmem:[#allocation3 + $0x80] sm:$0xf] %vm820, %v4346
        %4640 = vst.msk [vmem:[#allocation3 + $0x8c] sm:$0xf] %vm820, %v4356
        %4641 = vst.msk [vmem:[#allocation3 + $0x98] sm:$0xf] %vm820, %v4370
        %4642 = vst.msk [vmem:[#allocation3 + $0xa4] sm:$0xf] %vm820, %v4380
        %4643 = vst.msk [vmem:[#allocation3 + $0xb0] sm:$0xf] %vm820, %v4394
        %4644 = vst.msk [vmem:[#allocation3 + $0xbc] sm:$0xf] %vm820, %v4404
        %4645 = vst.msk [vmem:[#allocation3 + $0xc8] sm:$0xf] %vm820, %v4418
        %4646 = vst.msk [vmem:[#allocation3 + $0xd4] sm:$0xf] %vm820, %v4428
        %4647 = vst.msk [vmem:[#allocation3 + $0xe0] sm:$0xf] %vm820, %v4442
        %4648 = vst.msk [vmem:[#allocation3 + $0xec] sm:$0xf] %vm820, %v4452
        %4649 = vst.msk [vmem:[#allocation3 + $0xf8] sm:$0xf] %vm820, %v4466
        %4650 = vst.msk [vmem:[#allocation3 + $0x104] sm:$0xf] %vm820, %v4476
        %4651 = vst.msk [vmem:[#allocation3 + $0x110] sm:$0xf] %vm820, %v4490
        %4652 = vst.msk [vmem:[#allocation3 + $0x11c] sm:$0xf] %vm820, %v4500
        %4653 = vst.msk [vmem:[#allocation3 + $0x128] sm:$0xf] %vm820, %v4514
        %4654 = vst.msk [vmem:[#allocation3 + $0x134] sm:$0xf] %vm820, %v4524
        %4655 = vst.msk [vmem:[#allocation3 + $0x140] sm:$0xf] %vm820, %v4538
        %4656 = vst.msk [vmem:[#allocation3 + $0x14c] sm:$0xf] %vm820, %v4548
        %4657 = vst.msk [vmem:[#allocation3 + $0x158] sm:$0xf] %vm820, %v4562
        %4658 = vst.msk [vmem:[#allocation3 + $0x164] sm:$0xf] %vm820, %v4572
        %4659 = vst.msk [vmem:[#allocation3 + $0x170] sm:$0xf] %vm820, %v4586
        %4660 = vst.msk [vmem:[#allocation3 + $0x17c] sm:$0xf] %vm820, %v4596
        %v4661 = vld [vmem:[#allocation3] sm:$0xff]
        %v4662 = vld [vmem:[#allocation3 + $0x8] sm:$0xf]
        %v4663 = vld [vmem:[#allocation3 + $0xc] sm:$0xff]
        %v4664 = vld [vmem:[#allocation3 + $0x14] sm:$0xf]
        %v4665 = vld [vmem:[#allocation3 + $0x18] sm:$0xff]
        %v4666 = vld [vmem:[#allocation3 + $0x20] sm:$0xf]
        %v4667 = vld [vmem:[#allocation3 + $0x24] sm:$0xff]
        %v4668 = vld [vmem:[#allocation3 + $0x2c] sm:$0xf]
        %v4669 = vld [vmem:[#allocation3 + $0x30] sm:$0xff]
        %v4670 = vld [vmem:[#allocation3 + $0x38] sm:$0xf]
        %v4671 = vld [vmem:[#allocation3 + $0x3c] sm:$0xff]
        %v4672 = vld [vmem:[#allocation3 + $0x44] sm:$0xf]
        %v4673 = vld [vmem:[#allocation3 + $0x48] sm:$0xff]
        %v4674 = vld [vmem:[#allocation3 + $0x50] sm:$0xf]
        %v4675 = vld [vmem:[#allocation3 + $0x54] sm:$0xff]
        %v4676 = vld [vmem:[#allocation3 + $0x5c] sm:$0xf]
        %v4677 = vld [vmem:[#allocation3 + $0x60] sm:$0xff]
        %v4678 = vld [vmem:[#allocation3 + $0x68] sm:$0xf]
        %v4679 = vld [vmem:[#allocation3 + $0x6c] sm:$0xff]
        %v4680 = vld [vmem:[#allocation3 + $0x74] sm:$0xf]
        %v4681 = vld [vmem:[#allocation3 + $0x78] sm:$0xff]
        %v4682 = vld [vmem:[#allocation3 + $0x80] sm:$0xf]
        %v4683 = vld [vmem:[#allocation3 + $0x84] sm:$0xff]
        %v4684 = vld [vmem:[#allocation3 + $0x8c] sm:$0xf]
        %v4685 = vld [vmem:[#allocation3 + $0x90] sm:$0xff]
        %v4686 = vld [vmem:[#allocation3 + $0x98] sm:$0xf]
        %v4687 = vld [vmem:[#allocation3 + $0x9c] sm:$0xff]
        %v4688 = vld [vmem:[#allocation3 + $0xa4] sm:$0xf]
        %v4689 = vld [vmem:[#allocation3 + $0xa8] sm:$0xff]
        %v4690 = vld [vmem:[#allocation3 + $0xb0] sm:$0xf]
        %v4691 = vld [vmem:[#allocation3 + $0xb4] sm:$0xff]
        %v4692 = vld [vmem:[#allocation3 + $0xbc] sm:$0xf]
        %v4693 = vld [vmem:[#allocation3 + $0xc0] sm:$0xff]
        %v4694 = vld [vmem:[#allocation3 + $0xc8] sm:$0xf]
        %v4695 = vld [vmem:[#allocation3 + $0xcc] sm:$0xff]
        %v4696 = vld [vmem:[#allocation3 + $0xd4] sm:$0xf]
        %v4697 = vld [vmem:[#allocation3 + $0xd8] sm:$0xff]
        %v4698 = vld [vmem:[#allocation3 + $0xe0] sm:$0xf]
        %v4699 = vld [vmem:[#allocation3 + $0xe4] sm:$0xff]
        %v4700 = vld [vmem:[#allocation3 + $0xec] sm:$0xf]
        %v4701 = vld [vmem:[#allocation3 + $0xf0] sm:$0xff]
        %v4702 = vld [vmem:[#allocation3 + $0xf8] sm:$0xf]
        %v4703 = vld [vmem:[#allocation3 + $0xfc] sm:$0xff]
        %v4704 = vld [vmem:[#allocation3 + $0x104] sm:$0xf]
        %v4705 = vld [vmem:[#allocation3 + $0x108] sm:$0xff]
        %v4706 = vld [vmem:[#allocation3 + $0x110] sm:$0xf]
        %v4707 = vld [vmem:[#allocation3 + $0x114] sm:$0xff]
        %v4708 = vld [vmem:[#allocation3 + $0x11c] sm:$0xf]
        %v4709 = vld [vmem:[#allocation3 + $0x120] sm:$0xff]
        %v4710 = vld [vmem:[#allocation3 + $0x128] sm:$0xf]
        %v4711 = vld [vmem:[#allocation3 + $0x12c] sm:$0xff]
        %v4712 = vld [vmem:[#allocation3 + $0x134] sm:$0xf]
        %v4713 = vld [vmem:[#allocation3 + $0x138] sm:$0xff]
        %v4714 = vld [vmem:[#allocation3 + $0x140] sm:$0xf]
        %v4715 = vld [vmem:[#allocation3 + $0x144] sm:$0xff]
        %v4716 = vld [vmem:[#allocation3 + $0x14c] sm:$0xf]
        %v4717 = vld [vmem:[#allocation3 + $0x150] sm:$0xff]
        %v4718 = vld [vmem:[#allocation3 + $0x158] sm:$0xf]
        %v4719 = vld [vmem:[#allocation3 + $0x15c] sm:$0xff]
        %v4720 = vld [vmem:[#allocation3 + $0x164] sm:$0xf]
        %v4721 = vld [vmem:[#allocation3 + $0x168] sm:$0xff]
        %v4722 = vld [vmem:[#allocation3 + $0x170] sm:$0xf]
        %v4723 = vld [vmem:[#allocation3 + $0x174] sm:$0xff]
        %v4724 = vld [vmem:[#allocation3 + $0x17c] sm:$0xf]
        %v4725 = vld [vmem:[#allocation10] sm:$0xf]
        %v4726 = vld [vmem:[#allocation10 + $0x4] sm:$0xf]
        %v4727 = vld [vmem:[#allocation10 + $0x8] sm:$0xf]
        %v4728 = vld [vmem:[#allocation10 + $0xc] sm:$0xf]
        %v4729 = vld [vmem:[#allocation10 + $0x10] sm:$0xf]
        %v4730 = vld [vmem:[#allocation10 + $0x14] sm:$0xf]
        %v4731 = vld [vmem:[#allocation10 + $0x18] sm:$0xf]
        %v4732 = vld [vmem:[#allocation10 + $0x1c] sm:$0xf]
        %v4733 = vld [vmem:[#allocation10 + $0x20] sm:$0xf]
        %v4734 = vld [vmem:[#allocation10 + $0x24] sm:$0xf]
        %v4735 = vld [vmem:[#allocation10 + $0x28] sm:$0xf]
        %v4736 = vld [vmem:[#allocation10 + $0x2c] sm:$0xf]
        %v4737 = vld [vmem:[#allocation10 + $0x30] sm:$0xf]
        %v4738 = vld [vmem:[#allocation10 + $0x34] sm:$0xf]
        %v4739 = vld [vmem:[#allocation10 + $0x38] sm:$0xf]
        %v4740 = vld [vmem:[#allocation10 + $0x3c] sm:$0xf]
        %v4741 = vld [vmem:[#allocation10 + $0x40] sm:$0xf]
        %v4742 = vld [vmem:[#allocation10 + $0x44] sm:$0xf]
        %v4743 = vld [vmem:[#allocation10 + $0x48] sm:$0xf]
        %v4744 = vld [vmem:[#allocation10 + $0x4c] sm:$0xf]
        %v4745 = vld [vmem:[#allocation10 + $0x50] sm:$0xf]
        %v4746 = vld [vmem:[#allocation10 + $0x54] sm:$0xf]
        %v4747 = vld [vmem:[#allocation10 + $0x58] sm:$0xf]
        %v4748 = vld [vmem:[#allocation10 + $0x5c] sm:$0xf]
        %v4749 = vld [vmem:[#allocation10 + $0x60] sm:$0xf]
        %v4750 = vld [vmem:[#allocation10 + $0x64] sm:$0xf]
        %v4751 = vld [vmem:[#allocation10 + $0x68] sm:$0xf]
        %v4752 = vld [vmem:[#allocation10 + $0x6c] sm:$0xf]
        %v4753 = vld [vmem:[#allocation10 + $0x70] sm:$0xf]
        %v4754 = vld [vmem:[#allocation10 + $0x74] sm:$0xf]
        %v4755 = vld [vmem:[#allocation10 + $0x78] sm:$0xf]
        %v4756 = vld [vmem:[#allocation10 + $0x7c] sm:$0xf]
        %v4757 = vld [vmem:[#allocation10 + $0x80] sm:$0xf]
        %v4758 = vld [vmem:[#allocation10 + $0x84] sm:$0xf]
        %v4759 = vld [vmem:[#allocation10 + $0x88] sm:$0xf]
        %v4760 = vld [vmem:[#allocation10 + $0x8c] sm:$0xf]
        %v4825 = vunpack.c.l.b16 %v4661
        %v4826 = vunpack.c.h.b16 %v4661
        %v4827 = vunpack.c.l.b16 %v4662
        %v4828 = vunpack.c.l.b16 %v4663
        %v4829 = vunpack.c.h.b16 %v4663
        %v4830 = vunpack.c.l.b16 %v4664
        %v4831 = vunpack.c.l.b16 %v4665
        %v4832 = vunpack.c.h.b16 %v4665
        %v4833 = vunpack.c.l.b16 %v4666
        %v4834 = vunpack.c.l.b16 %v4667
        %v4835 = vunpack.c.h.b16 %v4667
        %v4836 = vunpack.c.l.b16 %v4668
        %v4837 = vunpack.c.l.b16 %v4669
        %v4838 = vunpack.c.h.b16 %v4669
        %v4839 = vunpack.c.l.b16 %v4670
        %v4840 = vunpack.c.l.b16 %v4671
        %v4841 = vunpack.c.h.b16 %v4671
        %v4842 = vunpack.c.l.b16 %v4672
        %v4843 = vunpack.c.l.b16 %v4673
        %v4844 = vunpack.c.h.b16 %v4673
        %v4845 = vunpack.c.l.b16 %v4674
        %v4846 = vunpack.c.l.b16 %v4675
        %v4847 = vunpack.c.h.b16 %v4675
        %v4848 = vunpack.c.l.b16 %v4676
        %v4849 = vunpack.c.l.b16 %v4677
        %v4850 = vunpack.c.h.b16 %v4677
        %v4851 = vunpack.c.l.b16 %v4678
        %v4852 = vunpack.c.l.b16 %v4679
        %v4853 = vunpack.c.h.b16 %v4679
        %v4854 = vunpack.c.l.b16 %v4680
        %v4855 = vunpack.c.l.b16 %v4681
        %v4856 = vunpack.c.h.b16 %v4681
        %v4857 = vunpack.c.l.b16 %v4682
        %v4858 = vunpack.c.l.b16 %v4683
        %v4859 = vunpack.c.h.b16 %v4683
        %v4860 = vunpack.c.l.b16 %v4684
        %v4861 = vunpack.c.l.b16 %v4685
        %v4862 = vunpack.c.h.b16 %v4685
        %v4863 = vunpack.c.l.b16 %v4686
        %v4864 = vunpack.c.l.b16 %v4687
        %v4865 = vunpack.c.h.b16 %v4687
        %v4866 = vunpack.c.l.b16 %v4688
        %v4867 = vunpack.c.l.b16 %v4689
        %v4868 = vunpack.c.h.b16 %v4689
        %v4869 = vunpack.c.l.b16 %v4690
        %v4870 = vunpack.c.l.b16 %v4691
        %v4871 = vunpack.c.h.b16 %v4691
        %v4872 = vunpack.c.l.b16 %v4692
        %v4873 = vunpack.c.l.b16 %v4693
        %v4874 = vunpack.c.h.b16 %v4693
        %v4875 = vunpack.c.l.b16 %v4694
        %v4876 = vunpack.c.l.b16 %v4695
        %v4877 = vunpack.c.h.b16 %v4695
        %v4878 = vunpack.c.l.b16 %v4696
        %v4879 = vunpack.c.l.b16 %v4697
        %v4880 = vunpack.c.h.b16 %v4697
        %v4881 = vunpack.c.l.b16 %v4698
        %v4882 = vunpack.c.l.b16 %v4699
        %v4883 = vunpack.c.h.b16 %v4699
        %v4884 = vunpack.c.l.b16 %v4700
        %v4885 = vunpack.c.l.b16 %v4701
        %v4886 = vunpack.c.h.b16 %v4701
        %v4887 = vunpack.c.l.b16 %v4702
        %v4888 = vunpack.c.l.b16 %v4703
        %v4889 = vunpack.c.h.b16 %v4703
        %v4890 = vunpack.c.l.b16 %v4704
        %v4891 = vunpack.c.l.b16 %v4705
        %v4892 = vunpack.c.h.b16 %v4705
        %v4893 = vunpack.c.l.b16 %v4706
        %v4894 = vunpack.c.l.b16 %v4707
        %v4895 = vunpack.c.h.b16 %v4707
        %v4896 = vunpack.c.l.b16 %v4708
        %v4897 = vunpack.c.l.b16 %v4709
        %v4898 = vunpack.c.h.b16 %v4709
        %v4899 = vunpack.c.l.b16 %v4710
        %v4900 = vunpack.c.l.b16 %v4711
        %v4901 = vunpack.c.h.b16 %v4711
        %v4902 = vunpack.c.l.b16 %v4712
        %v4903 = vunpack.c.l.b16 %v4713
        %v4904 = vunpack.c.h.b16 %v4713
        %v4905 = vunpack.c.l.b16 %v4714
        %v4906 = vunpack.c.l.b16 %v4715
        %v4907 = vunpack.c.h.b16 %v4715
        %v4908 = vunpack.c.l.b16 %v4716
        %v4909 = vunpack.c.l.b16 %v4717
        %v4910 = vunpack.c.h.b16 %v4717
        %v4911 = vunpack.c.l.b16 %v4718
        %v4912 = vunpack.c.l.b16 %v4719
        %v4913 = vunpack.c.h.b16 %v4719
        %v4914 = vunpack.c.l.b16 %v4720
        %v4915 = vunpack.c.l.b16 %v4721
        %v4916 = vunpack.c.h.b16 %v4721
        %v4917 = vunpack.c.l.b16 %v4722
        %v4918 = vunpack.c.l.b16 %v4723
        %v4919 = vunpack.c.h.b16 %v4723
        %v4920 = vunpack.c.l.b16 %v4724
        %v4921 = vpack.c.b16 %v4828, %v4825
        %v4922 = vpack.c.b16 %v4829, %v4826
        %v4923 = vpack.c.b16 %v4830, %v4827
        %v4924 = vpack.c.b16 %v4834, %v4831
        %v4925 = vpack.c.b16 %v4835, %v4832
        %v4926 = vpack.c.b16 %v4836, %v4833
        %v4927 = vpack.c.b16 %v4840, %v4837
        %v4928 = vpack.c.b16 %v4841, %v4838
        %v4929 = vpack.c.b16 %v4842, %v4839
        %v4930 = vpack.c.b16 %v4846, %v4843
        %v4931 = vpack.c.b16 %v4847, %v4844
        %v4932 = vpack.c.b16 %v4848, %v4845
        %v4933 = vpack.c.b16 %v4852, %v4849
        %v4934 = vpack.c.b16 %v4853, %v4850
        %v4935 = vpack.c.b16 %v4854, %v4851
        %v4936 = vpack.c.b16 %v4858, %v4855
        %v4937 = vpack.c.b16 %v4859, %v4856
        %v4938 = vpack.c.b16 %v4860, %v4857
        %v4939 = vpack.c.b16 %v4864, %v4861
        %v4940 = vpack.c.b16 %v4865, %v4862
        %v4941 = vpack.c.b16 %v4866, %v4863
        %v4942 = vpack.c.b16 %v4870, %v4867
        %v4943 = vpack.c.b16 %v4871, %v4868
        %v4944 = vpack.c.b16 %v4872, %v4869
        %v4945 = vpack.c.b16 %v4876, %v4873
        %v4946 = vpack.c.b16 %v4877, %v4874
        %v4947 = vpack.c.b16 %v4878, %v4875
        %v4948 = vpack.c.b16 %v4882, %v4879
        %v4949 = vpack.c.b16 %v4883, %v4880
        %v4950 = vpack.c.b16 %v4884, %v4881
        %v4951 = vpack.c.b16 %v4888, %v4885
        %v4952 = vpack.c.b16 %v4889, %v4886
        %v4953 = vpack.c.b16 %v4890, %v4887
        %v4954 = vpack.c.b16 %v4894, %v4891
        %v4955 = vpack.c.b16 %v4895, %v4892
        %v4956 = vpack.c.b16 %v4896, %v4893
        %v4957 = vpack.c.b16 %v4900, %v4897
        %v4958 = vpack.c.b16 %v4901, %v4898
        %v4959 = vpack.c.b16 %v4902, %v4899
        %v4960 = vpack.c.b16 %v4906, %v4903
        %v4961 = vpack.c.b16 %v4907, %v4904
        %v4962 = vpack.c.b16 %v4908, %v4905
        %v4963 = vpack.c.b16 %v4912, %v4909
        %v4964 = vpack.c.b16 %v4913, %v4910
        %v4965 = vpack.c.b16 %v4914, %v4911
        %v4966 = vpack.c.b16 %v4918, %v4915
        %v4967 = vpack.c.b16 %v4919, %v4916
        %v4968 = vpack.c.b16 %v4920, %v4917
        %v5037 = vunpack.c.l.b16 %v4725
        %v5038 = vunpack.c.l.b16 %v4726
        %v5039 = vunpack.c.l.b16 %v4727
        %v5040 = vunpack.c.l.b16 %v4728
        %v5041 = vunpack.c.l.b16 %v4729
        %v5042 = vunpack.c.l.b16 %v4730
        %v5043 = vunpack.c.l.b16 %v4731
        %v5044 = vunpack.c.l.b16 %v4732
        %v5045 = vunpack.c.l.b16 %v4733
        %v5046 = vunpack.c.l.b16 %v4734
        %v5047 = vunpack.c.l.b16 %v4735
        %v5048 = vunpack.c.l.b16 %v4736
        %v5049 = vunpack.c.l.b16 %v4737
        %v5050 = vunpack.c.l.b16 %v4738
        %v5051 = vunpack.c.l.b16 %v4739
        %v5052 = vunpack.c.l.b16 %v4740
        %v5053 = vunpack.c.l.b16 %v4741
        %v5054 = vunpack.c.l.b16 %v4742
        %v5055 = vunpack.c.l.b16 %v4743
        %v5056 = vunpack.c.l.b16 %v4744
        %v5057 = vunpack.c.l.b16 %v4745
        %v5058 = vunpack.c.l.b16 %v4746
        %v5059 = vunpack.c.l.b16 %v4747
        %v5060 = vunpack.c.l.b16 %v4748
        %v5061 = vunpack.c.l.b16 %v4749
        %v5062 = vunpack.c.l.b16 %v4750
        %v5063 = vunpack.c.l.b16 %v4751
        %v5064 = vunpack.c.l.b16 %v4752
        %v5065 = vunpack.c.l.b16 %v4753
        %v5066 = vunpack.c.l.b16 %v4754
        %v5067 = vunpack.c.l.b16 %v4755
        %v5068 = vunpack.c.l.b16 %v4756
        %v5069 = vunpack.c.l.b16 %v4757
        %v5070 = vunpack.c.l.b16 %v4758
        %v5071 = vunpack.c.l.b16 %v4759
        %v5072 = vunpack.c.l.b16 %v4760
        %v5073 = vpack.c.b16 %v5038, %v5037
        %v5074 = vpack.c.b16 %v5040, %v5039
        %v5075 = vpack.c.b16 %v5042, %v5041
        %v5076 = vpack.c.b16 %v5044, %v5043
        %v5077 = vpack.c.b16 %v5046, %v5045
        %v5078 = vpack.c.b16 %v5048, %v5047
        %v5079 = vpack.c.b16 %v5050, %v5049
        %v5080 = vpack.c.b16 %v5052, %v5051
        %v5081 = vpack.c.b16 %v5054, %v5053
        %v5082 = vpack.c.b16 %v5056, %v5055
        %v5083 = vpack.c.b16 %v5058, %v5057
        %v5084 = vpack.c.b16 %v5060, %v5059
        %v5085 = vpack.c.b16 %v5062, %v5061
        %v5086 = vpack.c.b16 %v5064, %v5063
        %v5087 = vpack.c.b16 %v5066, %v5065
        %v5088 = vpack.c.b16 %v5068, %v5067
        %v5089 = vpack.c.b16 %v5070, %v5069
        %v5090 = vpack.c.b16 %v5072, %v5071
        %vm5109 = vcmask 261120
        %v5111 = vsel %vm5109, %v4923, 0
        %v5114 = vsel %vm5109, %v4926, 0
        %v5117 = vsel %vm5109, %v4929, 0
        %v5120 = vsel %vm5109, %v4932, 0
        %v5123 = vsel %vm5109, %v4935, 0
        %v5126 = vsel %vm5109, %v4938, 0
        %v5129 = vsel %vm5109, %v4941, 0
        %v5132 = vsel %vm5109, %v4944, 0
        %v5135 = vsel %vm5109, %v4947, 0
        %v5138 = vsel %vm5109, %v4950, 0
        %v5141 = vsel %vm5109, %v4953, 0
        %v5144 = vsel %vm5109, %v4956, 0
        %v5147 = vsel %vm5109, %v4959, 0
        %v5150 = vsel %vm5109, %v4962, 0
        %v5153 = vsel %vm5109, %v4965, 0
        %v5156 = vsel %vm5109, %v4968, 0
        %5158 = vmatprep.subr.bf16.mxu0 0
        %5159 = vmatpush1.bf16.msra.mxu0 %v5080
        %5160 = vmatprep.subr.bf16.mxu0 0
        %5161 = vmatpush1.bf16.msra.mxu0 %v5079
        %5162 = vmatprep.subr.bf16.mxu0 0
        %5163 = vmatpush1.bf16.msra.mxu0 %v5078
        %5164 = vmatprep.subr.bf16.mxu0 0
        %5165 = vmatpush1.bf16.msra.mxu0 %v5077
        %5166 = vmatprep.subr.bf16.mxu0 0
        %5167 = vmatpush1.bf16.msra.mxu0 %v5076
        %5168 = vmatprep.subr.bf16.mxu0 0
        %5169 = vmatpush1.bf16.msra.mxu0 %v5075
        %5170 = vmatprep.subr.bf16.mxu0 0
        %5171 = vmatpush1.bf16.msra.mxu0 %v5074
        %5172 = vmatprep.subr.bf16.mxu0 0
        %5173 = vmatpush1.bf16.msra.mxu0 %v5073
        %5174 = vmatprep.subr.bf16.mxu0 0
        %5175 = vmatpush2.bf16.msra.mxu0 %v5088
        %5176 = vmatprep.subr.bf16.mxu0 0
        %5177 = vmatpush2.bf16.msra.mxu0 %v5087
        %5178 = vmatprep.subr.bf16.mxu0 0
        %5179 = vmatpush2.bf16.msra.mxu0 %v5086
        %5180 = vmatprep.subr.bf16.mxu0 0
        %5181 = vmatpush2.bf16.msra.mxu0 %v5085
        %5182 = vmatprep.subr.bf16.mxu0 0
        %5183 = vmatpush2.bf16.msra.mxu0 %v5084
        %5184 = vmatprep.subr.bf16.mxu0 0
        %5185 = vmatpush2.bf16.msra.mxu0 %v5083
        %5186 = vmatprep.subr.bf16.mxu0 0
        %5187 = vmatpush2.bf16.msra.mxu0 %v5082
        %5188 = vmatprep.subr.bf16.mxu0 0
        %5189 = vmatpush2.bf16.msra.mxu0 %v5081
        %5190 = vmatprep.mubr.bf16.mxu0 %v4922
        %5191 = vmatmul.mubr.bf16.gmra.mxu0 %v4921
        %v5192 = vpop.f32.mrf.mxu0
        %v5193 = vadd.f32 0.0, %v5192
        %v5194 = vpop.f32.mrf.mxu0
        %v5195 = vpop.f32.mrf.mxu0
        %v5196 = vadd.f32 0.0, %v5195
        %v5197 = vpop.f32.mrf.mxu0
        %5198 = vmatprep.mubr.bf16.mxu0 %v4925
        %5199 = vmatmul.mubr.bf16.gmra.mxu0 %v4924
        %v5200 = vpop.f32.mrf.mxu0
        %v5201 = vadd.f32 0.0, %v5200
        %v5202 = vpop.f32.mrf.mxu0
        %v5203 = vpop.f32.mrf.mxu0
        %v5204 = vadd.f32 0.0, %v5203
        %v5205 = vpop.f32.mrf.mxu0
        %5206 = vmatprep.mubr.bf16.mxu0 %v4928
        %5207 = vmatmul.mubr.bf16.gmra.mxu0 %v4927
        %v5208 = vpop.f32.mrf.mxu0
        %v5209 = vadd.f32 0.0, %v5208
        %v5210 = vpop.f32.mrf.mxu0
        %v5211 = vpop.f32.mrf.mxu0
        %v5212 = vadd.f32 0.0, %v5211
        %v5213 = vpop.f32.mrf.mxu0
        %5214 = vmatprep.mubr.bf16.mxu0 %v4931
        %5215 = vmatmul.mubr.bf16.gmra.mxu0 %v4930
        %v5216 = vpop.f32.mrf.mxu0
        %v5217 = vadd.f32 0.0, %v5216
        %v5218 = vpop.f32.mrf.mxu0
        %v5219 = vpop.f32.mrf.mxu0
        %v5220 = vadd.f32 0.0, %v5219
        %v5221 = vpop.f32.mrf.mxu0
        %5222 = vmatprep.mubr.bf16.mxu0 %v4934
        %5223 = vmatmul.mubr.bf16.gmra.mxu0 %v4933
        %v5224 = vpop.f32.mrf.mxu0
        %v5225 = vadd.f32 0.0, %v5224
        %v5226 = vpop.f32.mrf.mxu0
        %v5227 = vpop.f32.mrf.mxu0
        %v5228 = vadd.f32 0.0, %v5227
        %v5229 = vpop.f32.mrf.mxu0
        %5230 = vmatprep.mubr.bf16.mxu0 %v4937
        %5231 = vmatmul.mubr.bf16.gmra.mxu0 %v4936
        %v5232 = vpop.f32.mrf.mxu0
        %v5233 = vadd.f32 0.0, %v5232
        %v5234 = vpop.f32.mrf.mxu0
        %v5235 = vpop.f32.mrf.mxu0
        %v5236 = vadd.f32 0.0, %v5235
        %v5237 = vpop.f32.mrf.mxu0
        %5238 = vmatprep.mubr.bf16.mxu0 %v4940
        %5239 = vmatmul.mubr.bf16.gmra.mxu0 %v4939
        %v5240 = vpop.f32.mrf.mxu0
        %v5241 = vadd.f32 0.0, %v5240
        %v5242 = vpop.f32.mrf.mxu0
        %v5243 = vpop.f32.mrf.mxu0
        %v5244 = vadd.f32 0.0, %v5243
        %v5245 = vpop.f32.mrf.mxu0
        %5246 = vmatprep.mubr.bf16.mxu0 %v4943
        %5247 = vmatmul.mubr.bf16.gmra.mxu0 %v4942
        %v5248 = vpop.f32.mrf.mxu0
        %v5249 = vadd.f32 0.0, %v5248
        %v5250 = vpop.f32.mrf.mxu0
        %v5251 = vpop.f32.mrf.mxu0
        %v5252 = vadd.f32 0.0, %v5251
        %v5253 = vpop.f32.mrf.mxu0
        %5254 = vmatprep.mubr.bf16.mxu0 %v4946
        %5255 = vmatmul.mubr.bf16.gmra.mxu0 %v4945
        %v5256 = vpop.f32.mrf.mxu0
        %v5257 = vadd.f32 0.0, %v5256
        %v5258 = vpop.f32.mrf.mxu0
        %v5259 = vpop.f32.mrf.mxu0
        %v5260 = vadd.f32 0.0, %v5259
        %v5261 = vpop.f32.mrf.mxu0
        %5262 = vmatprep.mubr.bf16.mxu0 %v4949
        %5263 = vmatmul.mubr.bf16.gmra.mxu0 %v4948
        %v5264 = vpop.f32.mrf.mxu0
        %v5265 = vadd.f32 0.0, %v5264
        %v5266 = vpop.f32.mrf.mxu0
        %v5267 = vpop.f32.mrf.mxu0
        %v5268 = vadd.f32 0.0, %v5267
        %v5269 = vpop.f32.mrf.mxu0
        %5270 = vmatprep.mubr.bf16.mxu0 %v4952
        %5271 = vmatmul.mubr.bf16.gmra.mxu0 %v4951
        %v5272 = vpop.f32.mrf.mxu0
        %v5273 = vadd.f32 0.0, %v5272
        %v5274 = vpop.f32.mrf.mxu0
        %v5275 = vpop.f32.mrf.mxu0
        %v5276 = vadd.f32 0.0, %v5275
        %v5277 = vpop.f32.mrf.mxu0
        %5278 = vmatprep.mubr.bf16.mxu0 %v4955
        %5279 = vmatmul.mubr.bf16.gmra.mxu0 %v4954
        %v5280 = vpop.f32.mrf.mxu0
        %v5281 = vadd.f32 0.0, %v5280
        %v5282 = vpop.f32.mrf.mxu0
        %v5283 = vpop.f32.mrf.mxu0
        %v5284 = vadd.f32 0.0, %v5283
        %v5285 = vpop.f32.mrf.mxu0
        %5286 = vmatprep.mubr.bf16.mxu0 %v4958
        %5287 = vmatmul.mubr.bf16.gmra.mxu0 %v4957
        %v5288 = vpop.f32.mrf.mxu0
        %v5289 = vadd.f32 0.0, %v5288
        %v5290 = vpop.f32.mrf.mxu0
        %v5291 = vpop.f32.mrf.mxu0
        %v5292 = vadd.f32 0.0, %v5291
        %v5293 = vpop.f32.mrf.mxu0
        %5294 = vmatprep.mubr.bf16.mxu0 %v4961
        %5295 = vmatmul.mubr.bf16.gmra.mxu0 %v4960
        %v5296 = vpop.f32.mrf.mxu0
        %v5297 = vadd.f32 0.0, %v5296
        %v5298 = vpop.f32.mrf.mxu0
        %v5299 = vpop.f32.mrf.mxu0
        %v5300 = vadd.f32 0.0, %v5299
        %v5301 = vpop.f32.mrf.mxu0
        %5302 = vmatprep.mubr.bf16.mxu0 %v4964
        %5303 = vmatmul.mubr.bf16.gmra.mxu0 %v4963
        %v5304 = vpop.f32.mrf.mxu0
        %v5305 = vadd.f32 0.0, %v5304
        %v5306 = vpop.f32.mrf.mxu0
        %v5307 = vpop.f32.mrf.mxu0
        %v5308 = vadd.f32 0.0, %v5307
        %v5309 = vpop.f32.mrf.mxu0
        %5310 = vmatprep.mubr.bf16.mxu0 %v4967
        %5311 = vmatmul.mubr.bf16.gmra.mxu0 %v4966
        %v5312 = vpop.f32.mrf.mxu0
        %v5313 = vadd.f32 0.0, %v5312
        %v5314 = vpop.f32.mrf.mxu0
        %v5315 = vpop.f32.mrf.mxu0
        %v5316 = vadd.f32 0.0, %v5315
        %v5317 = vpop.f32.mrf.mxu0
        %5318 = vdwg.mxu0
        %5319 = vmatprep.subr.bf16.mxu0 0
        %5320 = vmatpush1.bf16.msra.mxu0 0
        %5321 = vmatprep.subr.bf16.mxu0 0
        %5322 = vmatpush1.bf16.msra.mxu0 0
        %5323 = vmatprep.subr.bf16.mxu0 0
        %5324 = vmatpush1.bf16.msra.mxu0 0
        %5325 = vmatprep.subr.bf16.mxu0 0
        %5326 = vmatpush1.bf16.msra.mxu0 0
        %5327 = vmatprep.subr.bf16.mxu0 0
        %5328 = vmatpush1.bf16.msra.mxu0 0
        %5329 = vmatprep.subr.bf16.mxu0 0
        %5330 = vmatpush1.bf16.msra.mxu0 0
        %5331 = vmatprep.subr.bf16.mxu0 0
        %5332 = vmatpush1.bf16.msra.mxu0 %v5090
        %5333 = vmatprep.subr.bf16.mxu0 0
        %5334 = vmatpush1.bf16.msra.mxu0 %v5089
        %5335 = vmatprep.subr.bf16.mxu0 0
        %5336 = vmatpush2.bf16.msra.mxu0 0
        %5337 = vmatprep.subr.bf16.mxu0 0
        %5338 = vmatpush2.bf16.msra.mxu0 0
        %5339 = vmatprep.subr.bf16.mxu0 0
        %5340 = vmatpush2.bf16.msra.mxu0 0
        %5341 = vmatprep.subr.bf16.mxu0 0
        %5342 = vmatpush2.bf16.msra.mxu0 0
        %5343 = vmatprep.subr.bf16.mxu0 0
        %5344 = vmatpush2.bf16.msra.mxu0 0
        %5345 = vmatprep.subr.bf16.mxu0 0
        %5346 = vmatpush2.bf16.msra.mxu0 0
        %5347 = vmatprep.subr.bf16.mxu0 0
        %5348 = vmatpush2.bf16.msra.mxu0 0
        %5349 = vmatprep.subr.bf16.mxu0 0
        %5350 = vmatpush2.bf16.msra.mxu0 0
        %5351 = vmatprep.mubr.bf16.mxu0 0
        %5352 = vmatmul.mubr.bf16.gmra.mxu0 %v5111
        %v5353 = vpop.f32.mrf.mxu0
        %v5354 = vadd.f32 %v5193, %v5353
        %v5355 = vpop.f32.mrf.mxu0
        %v5356 = vpop.f32.mrf.mxu0
        %v5357 = vadd.f32 %v5196, %v5356
        %v5358 = vpop.f32.mrf.mxu0
        %5359 = vmatprep.mubr.bf16.mxu0 0
        %5360 = vmatmul.mubr.bf16.gmra.mxu0 %v5114
        %v5361 = vpop.f32.mrf.mxu0
        %v5362 = vadd.f32 %v5201, %v5361
        %v5363 = vpop.f32.mrf.mxu0
        %v5364 = vpop.f32.mrf.mxu0
        %v5365 = vadd.f32 %v5204, %v5364
        %v5366 = vpop.f32.mrf.mxu0
        %5367 = vmatprep.mubr.bf16.mxu0 0
        %5368 = vmatmul.mubr.bf16.gmra.mxu0 %v5117
        %v5369 = vpop.f32.mrf.mxu0
        %v5370 = vadd.f32 %v5209, %v5369
        %v5371 = vpop.f32.mrf.mxu0
        %v5372 = vpop.f32.mrf.mxu0
        %v5373 = vadd.f32 %v5212, %v5372
        %v5374 = vpop.f32.mrf.mxu0
        %5375 = vmatprep.mubr.bf16.mxu0 0
        %5376 = vmatmul.mubr.bf16.gmra.mxu0 %v5120
        %v5377 = vpop.f32.mrf.mxu0
        %v5378 = vadd.f32 %v5217, %v5377
        %v5379 = vpop.f32.mrf.mxu0
        %v5380 = vpop.f32.mrf.mxu0
        %v5381 = vadd.f32 %v5220, %v5380
        %v5382 = vpop.f32.mrf.mxu0
        %5383 = vmatprep.mubr.bf16.mxu0 0
        %5384 = vmatmul.mubr.bf16.gmra.mxu0 %v5123
        %v5385 = vpop.f32.mrf.mxu0
        %v5386 = vadd.f32 %v5225, %v5385
        %v5387 = vpop.f32.mrf.mxu0
        %v5388 = vpop.f32.mrf.mxu0
        %v5389 = vadd.f32 %v5228, %v5388
        %v5390 = vpop.f32.mrf.mxu0
        %5391 = vmatprep.mubr.bf16.mxu0 0
        %5392 = vmatmul.mubr.bf16.gmra.mxu0 %v5126
        %v5393 = vpop.f32.mrf.mxu0
        %v5394 = vadd.f32 %v5233, %v5393
        %v5395 = vpop.f32.mrf.mxu0
        %v5396 = vpop.f32.mrf.mxu0
        %v5397 = vadd.f32 %v5236, %v5396
        %v5398 = vpop.f32.mrf.mxu0
        %5399 = vmatprep.mubr.bf16.mxu0 0
        %5400 = vmatmul.mubr.bf16.gmra.mxu0 %v5129
        %v5401 = vpop.f32.mrf.mxu0
        %v5402 = vadd.f32 %v5241, %v5401
        %v5403 = vpop.f32.mrf.mxu0
        %v5404 = vpop.f32.mrf.mxu0
        %v5405 = vadd.f32 %v5244, %v5404
        %v5406 = vpop.f32.mrf.mxu0
        %5407 = vmatprep.mubr.bf16.mxu0 0
        %5408 = vmatmul.mubr.bf16.gmra.mxu0 %v5132
        %v5409 = vpop.f32.mrf.mxu0
        %v5410 = vadd.f32 %v5249, %v5409
        %v5411 = vpop.f32.mrf.mxu0
        %v5412 = vpop.f32.mrf.mxu0
        %v5413 = vadd.f32 %v5252, %v5412
        %v5414 = vpop.f32.mrf.mxu0
        %5415 = vmatprep.mubr.bf16.mxu0 0
        %5416 = vmatmul.mubr.bf16.gmra.mxu0 %v5135
        %v5417 = vpop.f32.mrf.mxu0
        %v5418 = vadd.f32 %v5257, %v5417
        %v5419 = vpop.f32.mrf.mxu0
        %v5420 = vpop.f32.mrf.mxu0
        %v5421 = vadd.f32 %v5260, %v5420
        %v5422 = vpop.f32.mrf.mxu0
        %5423 = vmatprep.mubr.bf16.mxu0 0
        %5424 = vmatmul.mubr.bf16.gmra.mxu0 %v5138
        %v5425 = vpop.f32.mrf.mxu0
        %v5426 = vadd.f32 %v5265, %v5425
        %v5427 = vpop.f32.mrf.mxu0
        %v5428 = vpop.f32.mrf.mxu0
        %v5429 = vadd.f32 %v5268, %v5428
        %v5430 = vpop.f32.mrf.mxu0
        %5431 = vmatprep.mubr.bf16.mxu0 0
        %5432 = vmatmul.mubr.bf16.gmra.mxu0 %v5141
        %v5433 = vpop.f32.mrf.mxu0
        %v5434 = vadd.f32 %v5273, %v5433
        %v5435 = vpop.f32.mrf.mxu0
        %v5436 = vpop.f32.mrf.mxu0
        %v5437 = vadd.f32 %v5276, %v5436
        %v5438 = vpop.f32.mrf.mxu0
        %5439 = vmatprep.mubr.bf16.mxu0 0
        %5440 = vmatmul.mubr.bf16.gmra.mxu0 %v5144
        %v5441 = vpop.f32.mrf.mxu0
        %v5442 = vadd.f32 %v5281, %v5441
        %v5443 = vpop.f32.mrf.mxu0
        %v5444 = vpop.f32.mrf.mxu0
        %v5445 = vadd.f32 %v5284, %v5444
        %v5446 = vpop.f32.mrf.mxu0
        %5447 = vmatprep.mubr.bf16.mxu0 0
        %5448 = vmatmul.mubr.bf16.gmra.mxu0 %v5147
        %v5449 = vpop.f32.mrf.mxu0
        %v5450 = vadd.f32 %v5289, %v5449
        %v5451 = vpop.f32.mrf.mxu0
        %v5452 = vpop.f32.mrf.mxu0
        %v5453 = vadd.f32 %v5292, %v5452
        %v5454 = vpop.f32.mrf.mxu0
        %5455 = vmatprep.mubr.bf16.mxu0 0
        %5456 = vmatmul.mubr.bf16.gmra.mxu0 %v5150
        %v5457 = vpop.f32.mrf.mxu0
        %v5458 = vadd.f32 %v5297, %v5457
        %v5459 = vpop.f32.mrf.mxu0
        %v5460 = vpop.f32.mrf.mxu0
        %v5461 = vadd.f32 %v5300, %v5460
        %v5462 = vpop.f32.mrf.mxu0
        %5463 = vmatprep.mubr.bf16.mxu0 0
        %5464 = vmatmul.mubr.bf16.gmra.mxu0 %v5153
        %v5465 = vpop.f32.mrf.mxu0
        %v5466 = vadd.f32 %v5305, %v5465
        %v5467 = vpop.f32.mrf.mxu0
        %v5468 = vpop.f32.mrf.mxu0
        %v5469 = vadd.f32 %v5308, %v5468
        %v5470 = vpop.f32.mrf.mxu0
        %5471 = vmatprep.mubr.bf16.mxu0 0
        %5472 = vmatmul.mubr.bf16.gmra.mxu0 %v5156
        %v5473 = vpop.f32.mrf.mxu0
        %v5474 = vadd.f32 %v5313, %v5473
        %v5475 = vpop.f32.mrf.mxu0
        %v5476 = vpop.f32.mrf.mxu0
        %v5477 = vadd.f32 %v5316, %v5476
        %v5478 = vpop.f32.mrf.mxu0
        %5479 = vdwg.mxu0
        %v5480 = vld [vmem:[%s5] sm:$0x1]
        %v5482 = vlaneseq
        %v5483 = vshrl.u32 %v5482, 7
        %v5484 = vsub.s32 0, %v5483
        %v5485 = vrot.slane %v5480, %v5484
        %v5487 = vmul.f32 %v5354, %v5485
        %v5488 = vmul.f32 %v5357, %v5485
        %v5489 = vmul.f32 %v5362, %v5485
        %v5490 = vmul.f32 %v5365, %v5485
        %v5491 = vmul.f32 %v5370, %v5485
        %v5492 = vmul.f32 %v5373, %v5485
        %v5493 = vmul.f32 %v5378, %v5485
        %v5494 = vmul.f32 %v5381, %v5485
        %v5495 = vmul.f32 %v5386, %v5485
        %v5496 = vmul.f32 %v5389, %v5485
        %v5497 = vmul.f32 %v5394, %v5485
        %v5498 = vmul.f32 %v5397, %v5485
        %v5499 = vmul.f32 %v5402, %v5485
        %v5500 = vmul.f32 %v5405, %v5485
        %v5501 = vmul.f32 %v5410, %v5485
        %v5502 = vmul.f32 %v5413, %v5485
        %v5503 = vmul.f32 %v5418, %v5485
        %v5504 = vmul.f32 %v5421, %v5485
        %v5505 = vmul.f32 %v5426, %v5485
        %v5506 = vmul.f32 %v5429, %v5485
        %v5507 = vmul.f32 %v5434, %v5485
        %v5508 = vmul.f32 %v5437, %v5485
        %v5509 = vmul.f32 %v5442, %v5485
        %v5510 = vmul.f32 %v5445, %v5485
        %v5511 = vmul.f32 %v5450, %v5485
        %v5512 = vmul.f32 %v5453, %v5485
        %v5513 = vmul.f32 %v5458, %v5485
        %v5514 = vmul.f32 %v5461, %v5485
        %v5515 = vmul.f32 %v5466, %v5485
        %v5516 = vmul.f32 %v5469, %v5485
        %v5517 = vmul.f32 %v5474, %v5485
        %v5518 = vmul.f32 %v5477, %v5485
        %v5519 = vld [vmem:[%s6] sm:$0x1]
        %v5521 = vlaneseq
        %v5522 = vshrl.u32 %v5521, 7
        %v5523 = vsub.s32 0, %v5522
        %v5524 = vrot.slane %v5519, %v5523
        %v5526 = vadd.f32 %v5487, %v5524
        %v5527 = vadd.f32 %v5488, %v5524
        %v5528 = vadd.f32 %v5489, %v5524
        %v5529 = vadd.f32 %v5490, %v5524
        %v5530 = vadd.f32 %v5491, %v5524
        %v5531 = vadd.f32 %v5492, %v5524
        %v5532 = vadd.f32 %v5493, %v5524
        %v5533 = vadd.f32 %v5494, %v5524
        %v5534 = vadd.f32 %v5495, %v5524
        %v5535 = vadd.f32 %v5496, %v5524
        %v5536 = vadd.f32 %v5497, %v5524
        %v5537 = vadd.f32 %v5498, %v5524
        %v5538 = vadd.f32 %v5499, %v5524
        %v5539 = vadd.f32 %v5500, %v5524
        %v5540 = vadd.f32 %v5501, %v5524
        %v5541 = vadd.f32 %v5502, %v5524
        %v5542 = vadd.f32 %v5503, %v5524
        %v5543 = vadd.f32 %v5504, %v5524
        %v5544 = vadd.f32 %v5505, %v5524
        %v5545 = vadd.f32 %v5506, %v5524
        %v5546 = vadd.f32 %v5507, %v5524
        %v5547 = vadd.f32 %v5508, %v5524
        %v5548 = vadd.f32 %v5509, %v5524
        %v5549 = vadd.f32 %v5510, %v5524
        %v5550 = vadd.f32 %v5511, %v5524
        %v5551 = vadd.f32 %v5512, %v5524
        %v5552 = vadd.f32 %v5513, %v5524
        %v5553 = vadd.f32 %v5514, %v5524
        %v5554 = vadd.f32 %v5515, %v5524
        %v5555 = vadd.f32 %v5516, %v5524
        %v5556 = vadd.f32 %v5517, %v5524
        %v5557 = vadd.f32 %v5518, %v5524
        %v5558 = vmax.f32 %v5526, 0.0
        %v5559 = vmax.f32 %v5527, 0.0
        %v5560 = vmax.f32 %v5528, 0.0
        %v5561 = vmax.f32 %v5529, 0.0
        %v5562 = vmax.f32 %v5530, 0.0
        %v5563 = vmax.f32 %v5531, 0.0
        %v5564 = vmax.f32 %v5532, 0.0
        %v5565 = vmax.f32 %v5533, 0.0
        %v5566 = vmax.f32 %v5534, 0.0
        %v5567 = vmax.f32 %v5535, 0.0
        %v5568 = vmax.f32 %v5536, 0.0
        %v5569 = vmax.f32 %v5537, 0.0
        %v5570 = vmax.f32 %v5538, 0.0
        %v5571 = vmax.f32 %v5539, 0.0
        %v5572 = vmax.f32 %v5540, 0.0
        %v5573 = vmax.f32 %v5541, 0.0
        %v5574 = vmax.f32 %v5542, 0.0
        %v5575 = vmax.f32 %v5543, 0.0
        %v5576 = vmax.f32 %v5544, 0.0
        %v5577 = vmax.f32 %v5545, 0.0
        %v5578 = vmax.f32 %v5546, 0.0
        %v5579 = vmax.f32 %v5547, 0.0
        %v5580 = vmax.f32 %v5548, 0.0
        %v5581 = vmax.f32 %v5549, 0.0
        %v5582 = vmax.f32 %v5550, 0.0
        %v5583 = vmax.f32 %v5551, 0.0
        %v5584 = vmax.f32 %v5552, 0.0
        %v5585 = vmax.f32 %v5553, 0.0
        %v5586 = vmax.f32 %v5554, 0.0
        %v5587 = vmax.f32 %v5555, 0.0
        %v5588 = vmax.f32 %v5556, 0.0
        %v5589 = vmax.f32 %v5557, 0.0
        %v5590 = vpack.c.bf16 %v5559, %v5558
        %v5591 = vpack.c.bf16 %v5561, %v5560
        %v5592 = vpack.c.bf16 %v5563, %v5562
        %v5593 = vpack.c.bf16 %v5565, %v5564
        %v5594 = vpack.c.bf16 %v5567, %v5566
        %v5595 = vpack.c.bf16 %v5569, %v5568
        %v5596 = vpack.c.bf16 %v5571, %v5570
        %v5597 = vpack.c.bf16 %v5573, %v5572
        %v5598 = vpack.c.bf16 %v5575, %v5574
        %v5599 = vpack.c.bf16 %v5577, %v5576
        %v5600 = vpack.c.bf16 %v5579, %v5578
        %v5601 = vpack.c.bf16 %v5581, %v5580
        %v5602 = vpack.c.bf16 %v5583, %v5582
        %v5603 = vpack.c.bf16 %v5585, %v5584
        %v5604 = vpack.c.bf16 %v5587, %v5586
        %v5605 = vpack.c.bf16 %v5589, %v5588
        %v5606 = vld [vmem:[#allocation12] sm:$0xf]
        %v5607 = vld [vmem:[#allocation12 + $0x4] sm:$0xf]
        %v5608 = vld [vmem:[#allocation12 + $0x8] sm:$0xf]
        %v5609 = vld [vmem:[#allocation12 + $0xc] sm:$0xf]
        %v5614 = vunpack.c.l.b16 %v5606
        %v5615 = vunpack.c.l.b16 %v5607
        %v5616 = vunpack.c.l.b16 %v5608
        %v5617 = vunpack.c.l.b16 %v5609
        %v5618 = vpack.c.b16 %v5615, %v5614
        %v5619 = vpack.c.b16 %v5617, %v5616
        %v5623 = vsel %vm5109, %v5590, 0
        %v5626 = vsel %vm5109, %v5591, 0
        %v5629 = vsel %vm5109, %v5592, 0
        %v5632 = vsel %vm5109, %v5593, 0
        %v5635 = vsel %vm5109, %v5594, 0
        %v5638 = vsel %vm5109, %v5595, 0
        %v5641 = vsel %vm5109, %v5596, 0
        %v5644 = vsel %vm5109, %v5597, 0
        %v5647 = vsel %vm5109, %v5598, 0
        %v5650 = vsel %vm5109, %v5599, 0
        %v5653 = vsel %vm5109, %v5600, 0
        %v5656 = vsel %vm5109, %v5601, 0
        %v5659 = vsel %vm5109, %v5602, 0
        %v5662 = vsel %vm5109, %v5603, 0
        %v5665 = vsel %vm5109, %v5604, 0
        %v5668 = vsel %vm5109, %v5605, 0
        %5670 = vmatprep.subr.bf16.mxu0 0
        %5671 = vmatpush1.bf16.msra.mxu0 0
        %5672 = vmatprep.subr.bf16.mxu0 0
        %5673 = vmatpush1.bf16.msra.mxu0 0
        %5674 = vmatprep.subr.bf16.mxu0 0
        %5675 = vmatpush1.bf16.msra.mxu0 0
        %5676 = vmatprep.subr.bf16.mxu0 0
        %5677 = vmatpush1.bf16.msra.mxu0 0
        %5678 = vmatprep.subr.bf16.mxu0 0
        %5679 = vmatpush1.bf16.msra.mxu0 0
        %5680 = vmatprep.subr.bf16.mxu0 0
        %5681 = vmatpush1.bf16.msra.mxu0 0
        %5682 = vmatprep.subr.bf16.mxu0 0
        %5683 = vmatpush1.bf16.msra.mxu0 %v5619
        %5684 = vmatprep.subr.bf16.mxu0 0
        %5685 = vmatpush1.bf16.msra.mxu0 %v5618
        %5686 = vmatprep.subr.bf16.mxu0 0
        %5687 = vmatpush2.bf16.msra.mxu0 0
        %5688 = vmatprep.subr.bf16.mxu0 0
        %5689 = vmatpush2.bf16.msra.mxu0 0
        %5690 = vmatprep.subr.bf16.mxu0 0
        %5691 = vmatpush2.bf16.msra.mxu0 0
        %5692 = vmatprep.subr.bf16.mxu0 0
        %5693 = vmatpush2.bf16.msra.mxu0 0
        %5694 = vmatprep.subr.bf16.mxu0 0
        %5695 = vmatpush2.bf16.msra.mxu0 0
        %5696 = vmatprep.subr.bf16.mxu0 0
        %5697 = vmatpush2.bf16.msra.mxu0 0
        %5698 = vmatprep.subr.bf16.mxu0 0
        %5699 = vmatpush2.bf16.msra.mxu0 0
        %5700 = vmatprep.subr.bf16.mxu0 0
        %5701 = vmatpush2.bf16.msra.mxu0 0
        %5702 = vmatprep.mubr.bf16.mxu0 0
        %5703 = vmatmul.mubr.bf16.gmra.mxu0 %v5623
        %v5704 = vpop.f32.mrf.mxu0
        %v5705 = vadd.f32 0.0, %v5704
        %v5706 = vpop.f32.mrf.mxu0
        %v5707 = vpop.f32.mrf.mxu0
        %v5708 = vadd.f32 0.0, %v5707
        %v5709 = vpop.f32.mrf.mxu0
        %5710 = vmatprep.mubr.bf16.mxu0 0
        %5711 = vmatmul.mubr.bf16.gmra.mxu0 %v5626
        %v5712 = vpop.f32.mrf.mxu0
        %v5713 = vadd.f32 0.0, %v5712
        %v5714 = vpop.f32.mrf.mxu0
        %v5715 = vpop.f32.mrf.mxu0
        %v5716 = vadd.f32 0.0, %v5715
        %v5717 = vpop.f32.mrf.mxu0
        %5718 = vmatprep.mubr.bf16.mxu0 0
        %5719 = vmatmul.mubr.bf16.gmra.mxu0 %v5629
        %v5720 = vpop.f32.mrf.mxu0
        %v5721 = vadd.f32 0.0, %v5720
        %v5722 = vpop.f32.mrf.mxu0
        %v5723 = vpop.f32.mrf.mxu0
        %v5724 = vadd.f32 0.0, %v5723
        %v5725 = vpop.f32.mrf.mxu0
        %5726 = vmatprep.mubr.bf16.mxu0 0
        %5727 = vmatmul.mubr.bf16.gmra.mxu0 %v5632
        %v5728 = vpop.f32.mrf.mxu0
        %v5729 = vadd.f32 0.0, %v5728
        %v5730 = vpop.f32.mrf.mxu0
        %v5731 = vpop.f32.mrf.mxu0
        %v5732 = vadd.f32 0.0, %v5731
        %v5733 = vpop.f32.mrf.mxu0
        %5734 = vmatprep.mubr.bf16.mxu0 0
        %5735 = vmatmul.mubr.bf16.gmra.mxu0 %v5635
        %v5736 = vpop.f32.mrf.mxu0
        %v5737 = vadd.f32 0.0, %v5736
        %v5738 = vpop.f32.mrf.mxu0
        %v5739 = vpop.f32.mrf.mxu0
        %v5740 = vadd.f32 0.0, %v5739
        %v5741 = vpop.f32.mrf.mxu0
        %5742 = vmatprep.mubr.bf16.mxu0 0
        %5743 = vmatmul.mubr.bf16.gmra.mxu0 %v5638
        %v5744 = vpop.f32.mrf.mxu0
        %v5745 = vadd.f32 0.0, %v5744
        %v5746 = vpop.f32.mrf.mxu0
        %v5747 = vpop.f32.mrf.mxu0
        %v5748 = vadd.f32 0.0, %v5747
        %v5749 = vpop.f32.mrf.mxu0
        %5750 = vmatprep.mubr.bf16.mxu0 0
        %5751 = vmatmul.mubr.bf16.gmra.mxu0 %v5641
        %v5752 = vpop.f32.mrf.mxu0
        %v5753 = vadd.f32 0.0, %v5752
        %v5754 = vpop.f32.mrf.mxu0
        %v5755 = vpop.f32.mrf.mxu0
        %v5756 = vadd.f32 0.0, %v5755
        %v5757 = vpop.f32.mrf.mxu0
        %5758 = vmatprep.mubr.bf16.mxu0 0
        %5759 = vmatmul.mubr.bf16.gmra.mxu0 %v5644
        %v5760 = vpop.f32.mrf.mxu0
        %v5761 = vadd.f32 0.0, %v5760
        %v5762 = vpop.f32.mrf.mxu0
        %v5763 = vpop.f32.mrf.mxu0
        %v5764 = vadd.f32 0.0, %v5763
        %v5765 = vpop.f32.mrf.mxu0
        %5766 = vmatprep.mubr.bf16.mxu0 0
        %5767 = vmatmul.mubr.bf16.gmra.mxu0 %v5647
        %v5768 = vpop.f32.mrf.mxu0
        %v5769 = vadd.f32 0.0, %v5768
        %v5770 = vpop.f32.mrf.mxu0
        %v5771 = vpop.f32.mrf.mxu0
        %v5772 = vadd.f32 0.0, %v5771
        %v5773 = vpop.f32.mrf.mxu0
        %5774 = vmatprep.mubr.bf16.mxu0 0
        %5775 = vmatmul.mubr.bf16.gmra.mxu0 %v5650
        %v5776 = vpop.f32.mrf.mxu0
        %v5777 = vadd.f32 0.0, %v5776
        %v5778 = vpop.f32.mrf.mxu0
        %v5779 = vpop.f32.mrf.mxu0
        %v5780 = vadd.f32 0.0, %v5779
        %v5781 = vpop.f32.mrf.mxu0
        %5782 = vmatprep.mubr.bf16.mxu0 0
        %5783 = vmatmul.mubr.bf16.gmra.mxu0 %v5653
        %v5784 = vpop.f32.mrf.mxu0
        %v5785 = vadd.f32 0.0, %v5784
        %v5786 = vpop.f32.mrf.mxu0
        %v5787 = vpop.f32.mrf.mxu0
        %v5788 = vadd.f32 0.0, %v5787
        %v5789 = vpop.f32.mrf.mxu0
        %5790 = vmatprep.mubr.bf16.mxu0 0
        %5791 = vmatmul.mubr.bf16.gmra.mxu0 %v5656
        %v5792 = vpop.f32.mrf.mxu0
        %v5793 = vadd.f32 0.0, %v5792
        %v5794 = vpop.f32.mrf.mxu0
        %v5795 = vpop.f32.mrf.mxu0
        %v5796 = vadd.f32 0.0, %v5795
        %v5797 = vpop.f32.mrf.mxu0
        %5798 = vmatprep.mubr.bf16.mxu0 0
        %5799 = vmatmul.mubr.bf16.gmra.mxu0 %v5659
        %v5800 = vpop.f32.mrf.mxu0
        %v5801 = vadd.f32 0.0, %v5800
        %v5802 = vpop.f32.mrf.mxu0
        %v5803 = vpop.f32.mrf.mxu0
        %v5804 = vadd.f32 0.0, %v5803
        %v5805 = vpop.f32.mrf.mxu0
        %5806 = vmatprep.mubr.bf16.mxu0 0
        %5807 = vmatmul.mubr.bf16.gmra.mxu0 %v5662
        %v5808 = vpop.f32.mrf.mxu0
        %v5809 = vadd.f32 0.0, %v5808
        %v5810 = vpop.f32.mrf.mxu0
        %v5811 = vpop.f32.mrf.mxu0
        %v5812 = vadd.f32 0.0, %v5811
        %v5813 = vpop.f32.mrf.mxu0
        %5814 = vmatprep.mubr.bf16.mxu0 0
        %5815 = vmatmul.mubr.bf16.gmra.mxu0 %v5665
        %v5816 = vpop.f32.mrf.mxu0
        %v5817 = vadd.f32 0.0, %v5816
        %v5818 = vpop.f32.mrf.mxu0
        %v5819 = vpop.f32.mrf.mxu0
        %v5820 = vadd.f32 0.0, %v5819
        %v5821 = vpop.f32.mrf.mxu0
        %5822 = vmatprep.mubr.bf16.mxu0 0
        %5823 = vmatmul.mubr.bf16.gmra.mxu0 %v5668
        %v5824 = vpop.f32.mrf.mxu0
        %v5825 = vadd.f32 0.0, %v5824
        %v5826 = vpop.f32.mrf.mxu0
        %v5827 = vpop.f32.mrf.mxu0
        %v5828 = vadd.f32 0.0, %v5827
        %v5829 = vpop.f32.mrf.mxu0
        %5830 = vdwg.mxu0
        %v5831 = vld [vmem:[%s8] sm:$0x1]
        %v5833 = vlaneseq
        %v5834 = vshrl.u32 %v5833, 7
        %v5835 = vsub.s32 0, %v5834
        %v5836 = vrot.slane %v5831, %v5835
        %v5838 = vmul.f32 %v5705, %v5836
        %v5839 = vmul.f32 %v5708, %v5836
        %v5840 = vmul.f32 %v5713, %v5836
        %v5841 = vmul.f32 %v5716, %v5836
        %v5842 = vmul.f32 %v5721, %v5836
        %v5843 = vmul.f32 %v5724, %v5836
        %v5844 = vmul.f32 %v5729, %v5836
        %v5845 = vmul.f32 %v5732, %v5836
        %v5846 = vmul.f32 %v5737, %v5836
        %v5847 = vmul.f32 %v5740, %v5836
        %v5848 = vmul.f32 %v5745, %v5836
        %v5849 = vmul.f32 %v5748, %v5836
        %v5850 = vmul.f32 %v5753, %v5836
        %v5851 = vmul.f32 %v5756, %v5836
        %v5852 = vmul.f32 %v5761, %v5836
        %v5853 = vmul.f32 %v5764, %v5836
        %v5854 = vmul.f32 %v5769, %v5836
        %v5855 = vmul.f32 %v5772, %v5836
        %v5856 = vmul.f32 %v5777, %v5836
        %v5857 = vmul.f32 %v5780, %v5836
        %v5858 = vmul.f32 %v5785, %v5836
        %v5859 = vmul.f32 %v5788, %v5836
        %v5860 = vmul.f32 %v5793, %v5836
        %v5861 = vmul.f32 %v5796, %v5836
        %v5862 = vmul.f32 %v5801, %v5836
        %v5863 = vmul.f32 %v5804, %v5836
        %v5864 = vmul.f32 %v5809, %v5836
        %v5865 = vmul.f32 %v5812, %v5836
        %v5866 = vmul.f32 %v5817, %v5836
        %v5867 = vmul.f32 %v5820, %v5836
        %v5868 = vmul.f32 %v5825, %v5836
        %v5869 = vmul.f32 %v5828, %v5836
        %v5870 = vld [vmem:[%s9] sm:$0x1]
        %v5872 = vlaneseq
        %v5873 = vshrl.u32 %v5872, 7
        %v5874 = vsub.s32 0, %v5873
        %v5875 = vrot.slane %v5870, %v5874
        %v5877 = vadd.f32 %v5838, %v5875
        %v5878 = vadd.f32 %v5839, %v5875
        %v5879 = vadd.f32 %v5840, %v5875
        %v5880 = vadd.f32 %v5841, %v5875
        %v5881 = vadd.f32 %v5842, %v5875
        %v5882 = vadd.f32 %v5843, %v5875
        %v5883 = vadd.f32 %v5844, %v5875
        %v5884 = vadd.f32 %v5845, %v5875
        %v5885 = vadd.f32 %v5846, %v5875
        %v5886 = vadd.f32 %v5847, %v5875
        %v5887 = vadd.f32 %v5848, %v5875
        %v5888 = vadd.f32 %v5849, %v5875
        %v5889 = vadd.f32 %v5850, %v5875
        %v5890 = vadd.f32 %v5851, %v5875
        %v5891 = vadd.f32 %v5852, %v5875
        %v5892 = vadd.f32 %v5853, %v5875
        %v5893 = vadd.f32 %v5854, %v5875
        %v5894 = vadd.f32 %v5855, %v5875
        %v5895 = vadd.f32 %v5856, %v5875
        %v5896 = vadd.f32 %v5857, %v5875
        %v5897 = vadd.f32 %v5858, %v5875
        %v5898 = vadd.f32 %v5859, %v5875
        %v5899 = vadd.f32 %v5860, %v5875
        %v5900 = vadd.f32 %v5861, %v5875
        %v5901 = vadd.f32 %v5862, %v5875
        %v5902 = vadd.f32 %v5863, %v5875
        %v5903 = vadd.f32 %v5864, %v5875
        %v5904 = vadd.f32 %v5865, %v5875
        %v5905 = vadd.f32 %v5866, %v5875
        %v5906 = vadd.f32 %v5867, %v5875
        %v5907 = vadd.f32 %v5868, %v5875
        %v5908 = vadd.f32 %v5869, %v5875
        %v5909 = vld [vmem:[%s381] sm:$0xff]
        %v5910 = vld [vmem:[%s381 + $0x8] sm:$0xff]
        %v5911 = vld [vmem:[%s381 + $0x10] sm:$0xff]
        %v5912 = vld [vmem:[%s381 + $0x18] sm:$0xff]
        %v5913 = vld [vmem:[%s381 + $0x20] sm:$0xff]
        %v5914 = vld [vmem:[%s381 + $0x28] sm:$0xff]
        %v5915 = vld [vmem:[%s381 + $0x30] sm:$0xff]
        %v5916 = vld [vmem:[%s381 + $0x38] sm:$0xff]
        %v5917 = vld [vmem:[%s381 + $0x40] sm:$0xff]
        %v5918 = vld [vmem:[%s381 + $0x48] sm:$0xff]
        %v5919 = vld [vmem:[%s381 + $0x50] sm:$0xff]
        %v5920 = vld [vmem:[%s381 + $0x58] sm:$0xff]
        %v5921 = vld [vmem:[%s381 + $0x60] sm:$0xff]
        %v5922 = vld [vmem:[%s381 + $0x68] sm:$0xff]
        %v5923 = vld [vmem:[%s381 + $0x70] sm:$0xff]
        %v5924 = vld [vmem:[%s381 + $0x78] sm:$0xff]
        %v5925 = vld [vmem:[%s381 + $0x80] sm:$0xff]
        %v5926 = vld [vmem:[%s381 + $0x88] sm:$0xff]
        %v5927 = vld [vmem:[%s381 + $0x90] sm:$0xff]
        %v5928 = vld [vmem:[%s381 + $0x98] sm:$0xff]
        %v5929 = vld [vmem:[%s381 + $0xa0] sm:$0xff]
        %v5930 = vld [vmem:[%s381 + $0xa8] sm:$0xff]
        %v5931 = vld [vmem:[%s381 + $0xb0] sm:$0xff]
        %v5932 = vld [vmem:[%s381 + $0xb8] sm:$0xff]
        %v5933 = vld [vmem:[%s381 + $0xc0] sm:$0xff]
        %v5934 = vld [vmem:[%s381 + $0xc8] sm:$0xff]
        %v5935 = vld [vmem:[%s381 + $0xd0] sm:$0xff]
        %v5936 = vld [vmem:[%s381 + $0xd8] sm:$0xff]
        %v5937 = vld [vmem:[%s381 + $0xe0] sm:$0xff]
        %v5938 = vld [vmem:[%s381 + $0xe8] sm:$0xff]
        %v5939 = vld [vmem:[%s381 + $0xf0] sm:$0xff]
        %v5940 = vld [vmem:[%s381 + $0xf8] sm:$0xff]
        %v5941 = vadd.f32 %v5877, %v5909
        %v5942 = vadd.f32 %v5878, %v5910
        %v5943 = vadd.f32 %v5879, %v5911
        %v5944 = vadd.f32 %v5880, %v5912
        %v5945 = vadd.f32 %v5881, %v5913
        %v5946 = vadd.f32 %v5882, %v5914
        %v5947 = vadd.f32 %v5883, %v5915
        %v5948 = vadd.f32 %v5884, %v5916
        %v5949 = vadd.f32 %v5885, %v5917
        %v5950 = vadd.f32 %v5886, %v5918
        %v5951 = vadd.f32 %v5887, %v5919
        %v5952 = vadd.f32 %v5888, %v5920
        %v5953 = vadd.f32 %v5889, %v5921
        %v5954 = vadd.f32 %v5890, %v5922
        %v5955 = vadd.f32 %v5891, %v5923
        %v5956 = vadd.f32 %v5892, %v5924
        %v5957 = vadd.f32 %v5893, %v5925
        %v5958 = vadd.f32 %v5894, %v5926
        %v5959 = vadd.f32 %v5895, %v5927
        %v5960 = vadd.f32 %v5896, %v5928
        %v5961 = vadd.f32 %v5897, %v5929
        %v5962 = vadd.f32 %v5898, %v5930
        %v5963 = vadd.f32 %v5899, %v5931
        %v5964 = vadd.f32 %v5900, %v5932
        %v5965 = vadd.f32 %v5901, %v5933
        %v5966 = vadd.f32 %v5902, %v5934
        %v5967 = vadd.f32 %v5903, %v5935
        %v5968 = vadd.f32 %v5904, %v5936
        %v5969 = vadd.f32 %v5905, %v5937
        %v5970 = vadd.f32 %v5906, %v5938
        %v5971 = vadd.f32 %v5907, %v5939
        %v5972 = vadd.f32 %v5908, %v5940
        %v5973 = vmax.f32 %v5941, 0.0
        %v5974 = vmax.f32 %v5942, 0.0
        %v5975 = vmax.f32 %v5943, 0.0
        %v5976 = vmax.f32 %v5944, 0.0
        %v5977 = vmax.f32 %v5945, 0.0
        %v5978 = vmax.f32 %v5946, 0.0
        %v5979 = vmax.f32 %v5947, 0.0
        %v5980 = vmax.f32 %v5948, 0.0
        %v5981 = vmax.f32 %v5949, 0.0
        %v5982 = vmax.f32 %v5950, 0.0
        %v5983 = vmax.f32 %v5951, 0.0
        %v5984 = vmax.f32 %v5952, 0.0
        %v5985 = vmax.f32 %v5953, 0.0
        %v5986 = vmax.f32 %v5954, 0.0
        %v5987 = vmax.f32 %v5955, 0.0
        %v5988 = vmax.f32 %v5956, 0.0
        %v5989 = vmax.f32 %v5957, 0.0
        %v5990 = vmax.f32 %v5958, 0.0
        %v5991 = vmax.f32 %v5959, 0.0
        %v5992 = vmax.f32 %v5960, 0.0
        %v5993 = vmax.f32 %v5961, 0.0
        %v5994 = vmax.f32 %v5962, 0.0
        %v5995 = vmax.f32 %v5963, 0.0
        %v5996 = vmax.f32 %v5964, 0.0
        %v5997 = vmax.f32 %v5965, 0.0
        %v5998 = vmax.f32 %v5966, 0.0
        %v5999 = vmax.f32 %v5967, 0.0
        %v6000 = vmax.f32 %v5968, 0.0
        %v6001 = vmax.f32 %v5969, 0.0
        %v6002 = vmax.f32 %v5970, 0.0
        %v6003 = vmax.f32 %v5971, 0.0
        %v6004 = vmax.f32 %v5972, 0.0
        %6005 = vst [vmem:[%s433] sm:$0xff] %v5973
        %6006 = vst [vmem:[%s433 + $0x8] sm:$0xff] %v5974
        %6007 = vst [vmem:[%s433 + $0x10] sm:$0xff] %v5975
        %6008 = vst [vmem:[%s433 + $0x18] sm:$0xff] %v5976
        %6009 = vst [vmem:[%s433 + $0x20] sm:$0xff] %v5977
        %6010 = vst [vmem:[%s433 + $0x28] sm:$0xff] %v5978
        %6011 = vst [vmem:[%s433 + $0x30] sm:$0xff] %v5979
        %6012 = vst [vmem:[%s433 + $0x38] sm:$0xff] %v5980
        %6013 = vst [vmem:[%s433 + $0x40] sm:$0xff] %v5981
        %6014 = vst [vmem:[%s433 + $0x48] sm:$0xff] %v5982
        %6015 = vst [vmem:[%s433 + $0x50] sm:$0xff] %v5983
        %6016 = vst [vmem:[%s433 + $0x58] sm:$0xff] %v5984
        %6017 = vst [vmem:[%s433 + $0x60] sm:$0xff] %v5985
        %6018 = vst [vmem:[%s433 + $0x68] sm:$0xff] %v5986
        %6019 = vst [vmem:[%s433 + $0x70] sm:$0xff] %v5987
        %6020 = vst [vmem:[%s433 + $0x78] sm:$0xff] %v5988
        %6021 = vst [vmem:[%s433 + $0x80] sm:$0xff] %v5989
        %6022 = vst [vmem:[%s433 + $0x88] sm:$0xff] %v5990
        %6023 = vst [vmem:[%s433 + $0x90] sm:$0xff] %v5991
        %6024 = vst [vmem:[%s433 + $0x98] sm:$0xff] %v5992
        %6025 = vst [vmem:[%s433 + $0xa0] sm:$0xff] %v5993
        %6026 = vst [vmem:[%s433 + $0xa8] sm:$0xff] %v5994
        %6027 = vst [vmem:[%s433 + $0xb0] sm:$0xff] %v5995
        %6028 = vst [vmem:[%s433 + $0xb8] sm:$0xff] %v5996
        %6029 = vst [vmem:[%s433 + $0xc0] sm:$0xff] %v5997
        %6030 = vst [vmem:[%s433 + $0xc8] sm:$0xff] %v5998
        %6031 = vst [vmem:[%s433 + $0xd0] sm:$0xff] %v5999
        %6032 = vst [vmem:[%s433 + $0xd8] sm:$0xff] %v6000
        %6033 = vst [vmem:[%s433 + $0xe0] sm:$0xff] %v6001
        %6034 = vst [vmem:[%s433 + $0xe8] sm:$0xff] %v6002
        %6035 = vst [vmem:[%s433 + $0xf0] sm:$0xff] %v6003
        %6036 = vst [vmem:[%s433 + $0xf8] sm:$0xff] %v6004
        %s6037 = sand.u32 %s252, 1
        %s6038 = scalar_lea.sflag [#allocation6], %s6037
        %s6039 = sand.u32 %s252, 1
        %s6040 = smul.addr %s6039, 256
        %s6041 = scalar_lea.vmem [#allocation13], %s6040
        // Predicated region
        $region81: #{_lambda_.1} parent=59 // pred_check
          %p6042 = pneg %p262
        $region82: #{_lambda_.1} parent=59 // pred_check_branch
          %6044 = sbr.rel (%p6042) target = $region84
        $region83: #{_lambda_.1} parent=59 // pred_region
          %s6045 = smul.u32 32, %s29
          %s6047 = ssub.s32 4096, 4096
          %6048 = vsyncadd %s6038, %s6047
          %s6049 = smul.addr %s6045, 128
          %s6050 = scalar_lea.hbm %s10, %s6049
          %s6051 = sshll.u32 %s6041, 4
          %s6052 = int_to_ptr.vmem [resolvable:$true] %s6051
          %6057 = dma.vmem_to_hbm [thread:$0]  %s6052, 4096, %s6050, %s6038, 128, 128, 8
        $region84: #{_lambda_.1} parent=59 // pred_fallthru
          _
      $region60: #{_lambda_.1} parent=5 // pred_fallthru
        _
      %p6058 = scmp.le.s32.totalorder 2, %s24
      // Predicated region
      $region85: #{_lambda_.1} parent=5 // pred_check
        %p6059 = pneg %p6058
      $region86: #{_lambda_.1} parent=5 // pred_check_branch
        %6061 = sbr.rel (%p6059) target = $region88
      $region87: #{_lambda_.1} parent=5 // pred_region
        %s6062 = ssub.s32 %s24, 2
        // Predicated region
        $region89: #{_lambda_.1} parent=87 // pred_check
          %p6063 = pneg %p268
        $region90: #{_lambda_.1} parent=87 // pred_check_branch
          %6065 = sbr.rel (%p6063) target = $region92
        $region91: #{_lambda_.1} parent=87 // pred_region
          %s6066 = sand.u32 %s253, 1
          %s6067 = scalar_lea.sflag [#allocation6], %s6066
          %s6068 = sand.u32 %s253, 1
          %s6069 = smul.addr %s6068, 256
          %s6070 = scalar_lea.vmem [#allocation13], %s6069
          %6071 = dma.done %s6067, 4096
        $region92: #{_lambda_.1} parent=87 // pred_fallthru
          _
      $region88: #{_lambda_.1} parent=5 // pred_fallthru
        _
    $region6: #{_lambda_.1} parent=1 // loop_footer
      %s28 = sadd.s32 1, %s24
    $region7: #{_lambda_.1} parent=1 // loop_footer_branch
      %23 = sbr.rel target = $region3
    $region8: #{_lambda_.1} parent=1 // loop_exit
      _
    %6072 = vsyncpa [#allocation5], 1
    %s6073 = scalar_lea.sflag [#allocation5], 1
    %6074 = vsyncpa %s6073, 1
    %6075 = vsyncpa [#allocation8], 1
    %6076 = vsyncpa [#allocation11], 1
    %6077 = vsyncpa [#allocation6], 1
    %s6078 = scalar_lea.sflag [#allocation6], 1
    %6079 = vsyncpa %s6078, 1

</llo_original>
